<compile_context>
chip_gen: v7x
topology: tpu7x:2x2x1
jax: 0.10.0
libtpu: 0.0.40
codegen_flags: <defaults>
</compile_context>

<pallas_src>
from functools import partial

import jax
import jax.numpy as jnp
from jax.experimental import pallas as pl
from jax.experimental.pallas import tpu as pltpu

LN_EPS = 1e-6        # timm ViT LayerNorm eps
BN_EPS = 1e-5        # nn.BatchNorm1d eps
L2_EPS = 1e-12       # F.normalize eps
ACT_DTYPE = jnp.bfloat16   # inter-kernel token-stream dtype


# ----------------------------------------------------------------------------
# In-kernel math helpers
# ----------------------------------------------------------------------------
def _layernorm(x):
    """Zero-mean / unit-var LayerNorm; affine terms are folded into weights."""
    mu = jnp.mean(x, axis=-1, keepdims=True)
    xc = x - mu
    var = jnp.mean(xc * xc, axis=-1, keepdims=True)
    return xc * jax.lax.rsqrt(var + LN_EPS)


_ERF_P = 0.3275911
_ERF_A = (0.254829592, -0.284496736, 1.421413741, -1.453152027, 1.061405429)


def _erf(x):
    """erf via Abramowitz&Stegun 7.1.26 (|err| < 1.5e-7): exact-GELU parity
    with PyTorch using only exp / mul / div (guaranteed Mosaic lowerings)."""
    a1, a2, a3, a4, a5 = _ERF_A
    ax = jnp.abs(x)
    t = 1.0 / (1.0 + _ERF_P * ax)
    poly = ((((a5 * t + a4) * t + a3) * t + a2) * t + a1) * t
    e = 1.0 - poly * jnp.exp(-ax * ax)
    return jnp.where(x < 0, -e, e)


def _gelu_exact(x):
    """PyTorch/timm default GELU (erf form, not tanh approximation)."""
    return 0.5 * x * (1.0 + _erf(x * 0.7071067811865476))


# ----------------------------------------------------------------------------
# Pallas kernels
# ----------------------------------------------------------------------------
def _patch_embed_kernel(x_ref, w_ref, pos_ref, o_ref):
    """One image: padded patch matrix (T, K) @ pe_w -> + folded table.

    Row 0 of x is zeros (stands in for CLS); pos_ref row 0 = cls + pos[0],
    rows 1.. = pos[1..] + conv bias, so the epilogue add produces the full
    (cls | patch tokens) + pos tensor in one lane-dense store.
    """
    x = x_ref[0].astype(jnp.bfloat16)                               # (T, K)
    tok = jnp.dot(x, w_ref[...], preferred_element_type=jnp.float32)
    o_ref[0] = (tok + pos_ref[0]).astype(o_ref.dtype)


def _block_kernel(x_ref, qkv_w_ref, qkv_b_ref, proj_w_ref, proj_b_ref,
                  fc1_w_ref, fc1_b_ref, fc2_w_ref, fc2_b_ref, o_ref,
                  *, heads, scale):
    """Full transformer block for one batch element, entirely in VMEM/vregs.

    LayerNorm affine terms are pre-folded into qkv/fc1 weights at init time.
    """
    x = x_ref[0].astype(jnp.float32)                                # (T, D)
    D = x.shape[-1]
    dh = D // heads

    # --- LN1 + fused QKV projection (bf16 MXU, f32 accumulate) --------------
    xn = _layernorm(x)
    qkv = jnp.dot(xn.astype(jnp.bfloat16), qkv_w_ref[...],
                  preferred_element_type=jnp.float32) + qkv_b_ref[...]   # (T, 3D)

    # --- multi-head attention; per-head output folded into the projection ---
    # acc accumulates  attn @ proj_w + proj_b + residual  without ever
    # materializing the concatenated (T, D) attention output.
    acc = x + proj_b_ref[...]
    for h in range(heads):
        q = qkv[:, h * dh:(h + 1) * dh].astype(jnp.bfloat16)
        k = qkv[:, D + h * dh:D + (h + 1) * dh].astype(jnp.bfloat16)
        v = qkv[:, 2 * D + h * dh:2 * D + (h + 1) * dh].astype(jnp.bfloat16)
        # q @ k^T without materializing a transpose: contract the dh axes.
        s = jax.lax.dot_general(q, k, (((1,), (1,)), ((), ())),
                                preferred_element_type=jnp.float32) * scale
        m = jnp.max(s, axis=-1, keepdims=True)
        p = jnp.exp(s - m)
        l = jnp.sum(p, axis=-1, keepdims=True)
        p = p * pl.reciprocal(l, approx=True)
        o_h = jnp.dot(p.astype(jnp.bfloat16), v,
                      preferred_element_type=jnp.float32)           # (T, dh)
        acc = acc + jnp.dot(o_h.astype(jnp.bfloat16),
                            proj_w_ref[h * dh:(h + 1) * dh, :],
                            preferred_element_type=jnp.float32)
    x = acc                                                          # residual 1 done

    # --- LN2 + MLP (exact GELU) + residual ----------------------------------
    xn = _layernorm(x)
    hid = jnp.dot(xn.astype(jnp.bfloat16), fc1_w_ref[...],
                  preferred_element_type=jnp.float32) + fc1_b_ref[...]
    hid = _gelu_exact(hid)
    x = jnp.dot(hid.astype(jnp.bfloat16), fc2_w_ref[...],
                preferred_element_type=jnp.float32) + fc2_b_ref[...] + x
    o_ref[0] = x.astype(o_ref.dtype)


def _heads_kernel(x_ref, wh_ref, bh_ref, wc_ref, bc_ref, emb_ref, cat_ref,
                  *, cls_from_backbone):
    """One batch element: final LayerNorm on the CLS row -> head Linear
    (+ eval-mode BatchNorm1d folded) -> emb; cat_head on F.normalize(emb)
    (or on the LN'd backbone feature when cls_from_backbone)."""
    cls = x_ref[0].astype(jnp.float32)[0:1, :]        # (1, D) CLS row
    h = _layernorm(cls)                               # final-LN affine folded into wh/wc
    emb = jnp.dot(h.astype(jnp.bfloat16), wh_ref[...],
                  preferred_element_type=jnp.float32) + bh_ref[...]
    emb_ref[0] = emb
    if cls_from_backbone:
        cat_in = h
    else:
        nrm = jnp.sqrt(jnp.sum(emb * emb, axis=-1, keepdims=True))
        cat_in = emb / jnp.maximum(nrm, L2_EPS)       # F.normalize
    cat_ref[0] = (jnp.dot(cat_in.astype(jnp.bfloat16), wc_ref[...],
                          preferred_element_type=jnp.float32) + bc_ref[...])


# ----------------------------------------------------------------------------
# Pallas wrappers (all gridded over batch -> >=2 parallel steps for v7x)
# ----------------------------------------------------------------------------
def _const(shape):
    return pl.BlockSpec(shape, lambda b, _s=shape: tuple(0 for _ in _s))


def patch_embed(x, pe_w, pos_fold):
    """x: (B, T, K) f32 padded patch matrix (row 0 zeros) -> (B, T, D) bf16."""
    B, T, K = x.shape
    D = pe_w.shape[1]
    return pl.pallas_call(
        _patch_embed_kernel,
        out_shape=jax.ShapeDtypeStruct((B, T, D), ACT_DTYPE),
        grid=(B,),
        in_specs=[pl.BlockSpec((1, T, K), lambda b: (b, 0, 0)),
                  _const((K, D)),
                  _const((1, T, D))],
        out_specs=pl.BlockSpec((1, T, D), lambda b: (b, 0, 0)),
        compiler_params=pltpu.CompilerParams(dimension_semantics=("parallel",)),
    )(x, pe_w, pos_fold)


def transformer_block(tok, blk, *, heads):
    """tok: (B, T, D) bf16 -> (B, T, D) bf16, one fused kernel per block."""
    B, T, D = tok.shape
    hidden = blk["fc1_w"].shape[1]
    scale = 1.0 / float(D // heads) ** 0.5
    return pl.pallas_call(
        partial(_block_kernel, heads=heads, scale=scale),
        out_shape=jax.ShapeDtypeStruct((B, T, D), ACT_DTYPE),
        grid=(B,),
        in_specs=[
            pl.BlockSpec((1, T, D), lambda b: (b, 0, 0)),
            _const((D, 3 * D)), _const((1, 3 * D)),
            _const((D, D)), _const((1, D)),
            _const((D, hidden)), _const((1, hidden)),
            _const((hidden, D)), _const((1, D)),
        ],
        out_specs=pl.BlockSpec((1, T, D), lambda b: (b, 0, 0)),
        compiler_params=pltpu.CompilerParams(dimension_semantics=("parallel",)),
    )(tok, blk["qkv_w"], blk["qkv_b"], blk["proj_w"], blk["proj_b"],
      blk["fc1_w"], blk["fc1_b"], blk["fc2_w"], blk["fc2_b"])


def two_heads(tok, params, *, cls_from_backbone):
    """tok: (B, T, D) bf16 token stream.  Returns (emb (B,E) f32, cat (B,C) f32)."""
    B, T, D = tok.shape
    E = params["head_w"].shape[1]
    Dc, C = params["cat_w"].shape
    emb3, cat3 = pl.pallas_call(
        partial(_heads_kernel, cls_from_backbone=cls_from_backbone),
        out_shape=(jax.ShapeDtypeStruct((B, 1, E), jnp.float32),
                   jax.ShapeDtypeStruct((B, 1, C), jnp.float32)),
        grid=(B,),
        in_specs=[
            pl.BlockSpec((1, T, D), lambda b: (b, 0, 0)),
            _const((D, E)), _const((1, E)),
            _const((Dc, C)), _const((1, C)),
        ],
        out_specs=(pl.BlockSpec((1, 1, E), lambda b: (b, 0, 0)),
                   pl.BlockSpec((1, 1, C), lambda b: (b, 0, 0))),
        compiler_params=pltpu.CompilerParams(dimension_semantics=("parallel",)),
    )(tok, params["head_w"], params["head_b"], params["cat_w"], params["cat_b"])
    return emb3.reshape(B, E), cat3.reshape(B, C)


# ----------------------------------------------------------------------------
# Parameter init (synthetic, deterministic) with compile-time folding of
# LayerNorm affine / BatchNorm1d(eval) / biases / cls+pos into the matmuls.
# ----------------------------------------------------------------------------
def _fold_ln(gamma, beta, w, b):
    # (LN(x)*gamma + beta) @ w + b  ==  LN(x) @ (gamma[:,None]*w) + (beta@w + b)
    return gamma[:, None] * w, beta @ w + b


def init_params(key, *, img, patch, in_chans, dim, depth, heads, mlp_ratio,
                embedding_size, n_categories, cls_from_backbone):
    del heads
    n_tokens = (img // patch) ** 2 + 1
    ks = iter(jax.random.split(key, 16 + 16 * depth))

    def nrm(shape, s=0.02):
        return s * jax.random.normal(next(ks), shape, jnp.float32)

    params = {}
    k_pe = patch * patch * in_chans
    pe_w = nrm((k_pe, dim))
    pe_b = nrm((dim,))
    cls = nrm((dim,))
    pos = nrm((1, n_tokens, dim))
    params["pe_w"] = pe_w.astype(jnp.bfloat16)
    # Fold conv bias + cls token + pos embed into one (1, T, D) epilogue table.
    # Row 0 of the padded patch matrix is zeros, so row 0 here is cls + pos[0].
    pos_fold = pos + pe_b[None, None, :]
    pos_fold = pos_fold.at[0, 0, :].set(cls + pos[0, 0, :])
    params["pos_fold"] = pos_fold

    hidden = dim * mlp_ratio
    blocks = []
    for _ in range(depth):
        g1 = 1.0 + nrm((dim,), 0.05)
        be1 = nrm((dim,), 0.05)
        w_qkv = nrm((dim, 3 * dim)); b_qkv = nrm((3 * dim,), 0.01)
        qkv_w, qkv_b = _fold_ln(g1, be1, w_qkv, b_qkv)        # LN1 folded into QKV
        w_proj = nrm((dim, dim)); b_proj = nrm((dim,), 0.01)
        g2 = 1.0 + nrm((dim,), 0.05)
        be2 = nrm((dim,), 0.05)
        w1 = nrm((dim, hidden)); b1 = nrm((hidden,), 0.01)
        fc1_w, fc1_b = _fold_ln(g2, be2, w1, b1)              # LN2 folded into fc1
        w2 = nrm((hidden, dim)); b2 = nrm((dim,), 0.01)
        blocks.append(dict(
            qkv_w=qkv_w.astype(jnp.bfloat16), qkv_b=qkv_b.reshape(1, -1),
            proj_w=w_proj.astype(jnp.bfloat16), proj_b=b_proj.reshape(1, -1),
            fc1_w=fc1_w.astype(jnp.bfloat16), fc1_b=fc1_b.reshape(1, -1),
            fc2_w=w2.astype(jnp.bfloat16), fc2_b=b2.reshape(1, -1)))
    params["blocks"] = blocks

    # final norm + model.head (Linear) + BatchNorm1d(eval) + cat_head, folded.
    gN = 1.0 + nrm((dim,), 0.05)
    bN = nrm((dim,), 0.05)
    w_head = nrm((dim, embedding_size)); b_head = nrm((embedding_size,), 0.01)
    bn_g = 1.0 + nrm((embedding_size,), 0.05)
    bn_b = nrm((embedding_size,), 0.05)
    bn_m = nrm((embedding_size,), 0.05)
    bn_v = 1.0 + 0.1 * jax.random.uniform(next(ks), (embedding_size,), jnp.float32)
    w_h1, b_h1 = _fold_ln(gN, bN, w_head, b_head)
    s_bn = bn_g / jnp.sqrt(bn_v + BN_EPS)                     # eval-mode BN fold
    params["head_w"] = (w_h1 * s_bn[None, :]).astype(jnp.bfloat16)
    params["head_b"] = ((b_h1 - bn_m) * s_bn + bn_b).reshape(1, -1)

    cat_in = dim if cls_from_backbone else embedding_size
    w_cat = nrm((cat_in, n_categories)); b_cat = nrm((n_categories,), 0.01)
    if cls_from_backbone:
        w_cat, b_cat = _fold_ln(gN, bN, w_cat, b_cat)
    params["cat_w"] = w_cat.astype(jnp.bfloat16)
    params["cat_b"] = b_cat.reshape(1, -1)
    return params


# ----------------------------------------------------------------------------
# Forward pass (DeitForMetricLearning2head.forward, eval mode)
# ----------------------------------------------------------------------------
def forward(params, cfg, x_nchw):
    p, D, H = cfg["patch"], cfg["dim"], cfg["heads"]
    B, C, Hs, Ws = x_nchw.shape
    hp, wp = Hs // p, Ws // p
    Np = hp * wp

    # Patch extraction: stride == kernel conv -> pure reshape (no im2col).
    # Prepend one zero row per image standing in for the CLS position; the cls
    # token, conv bias and positional embedding are folded into the patch-embed
    # kernel epilogue (pos_fold), so no concat / broadcast-add over the token
    # tensor happens in XLA.
    x = jnp.transpose(x_nchw, (0, 2, 3, 1))                          # NHWC
    x = x.reshape(B, hp, p, wp, p, C).transpose(0, 1, 3, 2, 4, 5)
    x = x.reshape(B, Np, p * p * C)
    x = jnp.pad(x, ((0, 0), (1, 0), (0, 0)))                         # (B, T, K)

    tok = patch_embed(x, params["pe_w"], params["pos_fold"])         # (B, T, D) bf16

    # One fused Pallas kernel per transformer block, gridded over batch.
    for blk in params["blocks"]:
        tok = transformer_block(tok, blk, heads=H)

    # TODO(synk): dropout is None in this configuration (identity at inference);
    # BatchNorm1d uses eval-mode running statistics (folded into head_w/head_b).
    emb, cat = two_heads(tok, params,
                         cls_from_backbone=cfg["cls_from_backbone"])
    return emb, cat


if __name__ == "__main__":
    key = jax.random.PRNGKey(0)
    k_params, k_input = jax.random.split(key)
    cfg = dict(img=32, patch=8, in_chans=3, dim=128, depth=2, heads=4,
               mlp_ratio=4, embedding_size=32, n_categories=16,
               cls_from_backbone=False)
    params = init_params(k_params, **cfg)
    x = jax.random.normal(k_input, (2, 3, 32, 32), jnp.float32)      # NCHW like PyTorch

    fwd = jax.jit(partial(forward, params, cfg))
    emb, cat = fwd(x)
    jax.block_until_ready((emb, cat))
    assert emb.shape == (2, cfg["embedding_size"]) and emb.dtype == jnp.float32
    assert cat.shape == (2, cfg["n_categories"]) and cat.dtype == jnp.float32
    assert bool(jnp.all(jnp.isfinite(emb))) and bool(jnp.all(jnp.isfinite(cat)))
    print("KERNEL_OK")
</pallas_src>

<mosaic_0001>
module attributes {stable_mosaic.version = 11 : i64} {
  func.func @_patch_embed_kernel(%arg0: i32, %arg1: memref<1x17x192xf32, #tpu.memory_space<vmem>>, %arg2: memref<192x128xbf16, #tpu.memory_space<vmem>>, %arg3: memref<1x17x128xf32, #tpu.memory_space<vmem>>, %arg4: memref<1x17x128xbf16, #tpu.memory_space<vmem>>) attributes {dimension_semantics = [#tpu.dimension_semantics<parallel>], iteration_bounds = array<i64: 2>, scalar_prefetch = 0 : i64, scratch_operands = 0 : i64, tpu.core_type = #tpu.core_type<tc>, window_params = [{transform_indices = @transform_0, window_bounds = array<i64: 1, 17, 192>}, {pipeline_mode = #tpu.pipeline_mode<synchronous>, transform_indices = @transform_1, window_bounds = array<i64: 192, 128>}, {pipeline_mode = #tpu.pipeline_mode<synchronous>, transform_indices = @transform_2, window_bounds = array<i64: 1, 17, 128>}, {transform_indices = @transform_3, window_bounds = array<i64: 1, 17, 128>}]} {
    %c0 = arith.constant 0 : index
    %c0_0 = arith.constant 0 : index
    %c0_1 = arith.constant 0 : index
    %0 = vector.load %arg1[%c0, %c0_0, %c0_1] : memref<1x17x192xf32, #tpu.memory_space<vmem>>, vector<1x17x192xf32>
    %1 = vector.shape_cast %0 : vector<1x17x192xf32> to vector<17x192xf32>
    %2 = arith.truncf %1 : vector<17x192xf32> to vector<17x192xbf16>
    %c0_2 = arith.constant 0 : index
    %c0_3 = arith.constant 0 : index
    %3 = vector.load %arg2[%c0_2, %c0_3] : memref<192x128xbf16, #tpu.memory_space<vmem>>, vector<192x128xbf16>
    %cst = arith.constant dense<0.000000e+00> : vector<17x128xf32>
    %4 = tpu.matmul %2, %3, %cst {dimension_numbers = #tpu.dot_dimension_numbers<[1], [0], [0], [1], [0, 0, 1, 1], [], []>} : vector<17x192xbf16>, vector<192x128xbf16>, vector<17x128xf32> -> vector<17x128xf32>
    %c0_4 = arith.constant 0 : index
    %c0_5 = arith.constant 0 : index
    %c0_6 = arith.constant 0 : index
    %5 = vector.load %arg3[%c0_4, %c0_5, %c0_6] : memref<1x17x128xf32, #tpu.memory_space<vmem>>, vector<1x17x128xf32>
    %6 = vector.shape_cast %5 : vector<1x17x128xf32> to vector<17x128xf32>
    %7 = arith.addf %4, %6 : vector<17x128xf32>
    %8 = arith.truncf %7 : vector<17x128xf32> to vector<17x128xbf16>
    %c0_7 = arith.constant 0 : index
    %c0_8 = arith.constant 0 : index
    %c0_9 = arith.constant 0 : index
    %9 = vector.load %arg4[%c0_7, %c0_8, %c0_9] : memref<1x17x128xbf16, #tpu.memory_space<vmem>>, vector<1x17x128xbf16>
    %10 = vector.shape_cast %9 : vector<1x17x128xbf16> to vector<17x128xbf16>
    %11 = vector.shape_cast %8 : vector<17x128xbf16> to vector<1x17x128xbf16>
    tpu.vector_store %arg4[%c0_7, %c0_8, %c0_9], %11 {strides = array<i32>} : memref<1x17x128xbf16, #tpu.memory_space<vmem>>, vector<1x17x128xbf16>,
    return
  }
  func.func @transform_0(%arg0: i32) -> (i32, i32, i32) {
    %c0_i32 = arith.constant 0 : i32
    %c0_i32_0 = arith.constant 0 : i32
    %c0_i32_1 = arith.constant 0 : i32
    return %arg0, %c0_i32, %c0_i32_0 : i32, i32, i32
  }
  func.func @transform_1(%arg0: i32) -> (i32, i32) {
    %c0_i32 = arith.constant 0 : i32
    %c0_i32_0 = arith.constant 0 : i32
    %c0_i32_1 = arith.constant 0 : i32
    return %c0_i32, %c0_i32_0 : i32, i32
  }
  func.func @transform_2(%arg0: i32) -> (i32, i32, i32) {
    %c0_i32 = arith.constant 0 : i32
    %c0_i32_0 = arith.constant 0 : i32
    %c0_i32_1 = arith.constant 0 : i32
    %c0_i32_2 = arith.constant 0 : i32
    return %c0_i32, %c0_i32_0, %c0_i32_1 : i32, i32, i32
  }
  func.func @transform_3(%arg0: i32) -> (i32, i32, i32) {
    %c0_i32 = arith.constant 0 : i32
    %c0_i32_0 = arith.constant 0 : i32
    %c0_i32_1 = arith.constant 0 : i32
    return %arg0, %c0_i32, %c0_i32_0 : i32, i32, i32
  }
}

module attributes {stable_mosaic.version = 11 : i64} {
  func.func @_block_kernel(%arg0: i32, %arg1: memref<1x17x128xbf16, #tpu.memory_space<vmem>>, %arg2: memref<128x384xbf16, #tpu.memory_space<vmem>>, %arg3: memref<1x384xf32, #tpu.memory_space<vmem>>, %arg4: memref<128x128xbf16, #tpu.memory_space<vmem>>, %arg5: memref<1x128xf32, #tpu.memory_space<vmem>>, %arg6: memref<128x512xbf16, #tpu.memory_space<vmem>>, %arg7: memref<1x512xf32, #tpu.memory_space<vmem>>, %arg8: memref<512x128xbf16, #tpu.memory_space<vmem>>, %arg9: memref<1x128xf32, #tpu.memory_space<vmem>>, %arg10: memref<1x17x128xbf16, #tpu.memory_space<vmem>>) attributes {dimension_semantics = [#tpu.dimension_semantics<parallel>], iteration_bounds = array<i64: 2>, scalar_prefetch = 0 : i64, scratch_operands = 0 : i64, tpu.core_type = #tpu.core_type<tc>, window_params = [{transform_indices = @transform_0, window_bounds = array<i64: 1, 17, 128>}, {pipeline_mode = #tpu.pipeline_mode<synchronous>, transform_indices = @transform_1, window_bounds = array<i64: 128, 384>}, {pipeline_mode = #tpu.pipeline_mode<synchronous>, transform_indices = @transform_2, window_bounds = array<i64: 1, 384>}, {pipeline_mode = #tpu.pipeline_mode<synchronous>, transform_indices = @transform_3, window_bounds = array<i64: 128, 128>}, {pipeline_mode = #tpu.pipeline_mode<synchronous>, transform_indices = @transform_4, window_bounds = array<i64: 1, 128>}, {pipeline_mode = #tpu.pipeline_mode<synchronous>, transform_indices = @transform_5, window_bounds = array<i64: 128, 512>}, {pipeline_mode = #tpu.pipeline_mode<synchronous>, transform_indices = @transform_6, window_bounds = array<i64: 1, 512>}, {pipeline_mode = #tpu.pipeline_mode<synchronous>, transform_indices = @transform_7, window_bounds = array<i64: 512, 128>}, {pipeline_mode = #tpu.pipeline_mode<synchronous>, transform_indices = @transform_8, window_bounds = array<i64: 1, 128>}, {transform_indices = @transform_9, window_bounds = array<i64: 1, 17, 128>}]} {
    %c0 = arith.constant 0 : index
    %c0_0 = arith.constant 0 : index
    %c0_1 = arith.constant 0 : index
    %0 = vector.load %arg1[%c0, %c0_0, %c0_1] : memref<1x17x128xbf16, #tpu.memory_space<vmem>>, vector<1x17x128xbf16>
    %1 = vector.shape_cast %0 : vector<1x17x128xbf16> to vector<17x128xbf16>
    %2 = arith.extf %1 : vector<17x128xbf16> to vector<17x128xf32>
    %cst = arith.constant dense<0.000000e+00> : vector<17xf32>
    %3 = vector.multi_reduction <add>, %2, %cst [1] : vector<17x128xf32> to vector<17xf32>
    %4 = vector.shape_cast %3 : vector<17xf32> to vector<17x1xf32>
    %cst_2 = arith.constant 1.280000e+02 : f32
    %5 = vector.broadcast %cst_2 : f32 to vector<17x1xf32>
    %6 = arith.divf %4, %5 : vector<17x1xf32>
    %7 = vector.broadcast %6 : vector<17x1xf32> to vector<17x128xf32>
    %8 = arith.subf %2, %7 : vector<17x128xf32>
    %9 = arith.mulf %8, %8 : vector<17x128xf32>
    %cst_3 = arith.constant dense<0.000000e+00> : vector<17xf32>
    %10 = vector.multi_reduction <add>, %9, %cst_3 [1] : vector<17x128xf32> to vector<17xf32>
    %11 = vector.shape_cast %10 : vector<17xf32> to vector<17x1xf32>
    %cst_4 = arith.constant 1.280000e+02 : f32
    %12 = vector.broadcast %cst_4 : f32 to vector<17x1xf32>
    %13 = arith.divf %11, %12 : vector<17x1xf32>
    %cst_5 = arith.constant 9.99999997E-7 : f32
    %14 = vector.broadcast %cst_5 : f32 to vector<17x1xf32>
    %15 = arith.addf %13, %14 : vector<17x1xf32>
    %16 = math.rsqrt %15 : vector<17x1xf32>
    %17 = vector.broadcast %16 : vector<17x1xf32> to vector<17x128xf32>
    %18 = arith.mulf %8, %17 : vector<17x128xf32>
    %19 = arith.truncf %18 : vector<17x128xf32> to vector<17x128xbf16>
    %c0_6 = arith.constant 0 : index
    %c0_7 = arith.constant 0 : index
    %20 = vector.load %arg2[%c0_6, %c0_7] : memref<128x384xbf16, #tpu.memory_space<vmem>>, vector<128x384xbf16>
    %cst_8 = arith.constant dense<0.000000e+00> : vector<17x384xf32>
    %21 = tpu.matmul %19, %20, %cst_8 {dimension_numbers = #tpu.dot_dimension_numbers<[1], [0], [0], [1], [0, 0, 1, 1], [], []>} : vector<17x128xbf16>, vector<128x384xbf16>, vector<17x384xf32> -> vector<17x384xf32>
    %c0_9 = arith.constant 0 : index
    %c0_10 = arith.constant 0 : index
    %22 = vector.load %arg3[%c0_9, %c0_10] : memref<1x384xf32, #tpu.memory_space<vmem>>, vector<1x384xf32>
    %23 = vector.broadcast %22 : vector<1x384xf32> to vector<17x384xf32>
    %24 = arith.addf %21, %23 : vector<17x384xf32>
    %c0_11 = arith.constant 0 : index
    %c0_12 = arith.constant 0 : index
    %25 = vector.load %arg5[%c0_11, %c0_12] : memref<1x128xf32, #tpu.memory_space<vmem>>, vector<1x128xf32>
    %26 = vector.broadcast %25 : vector<1x128xf32> to vector<17x128xf32>
    %27 = arith.addf %2, %26 : vector<17x128xf32>
    %28 = vector.extract_strided_slice %24 {offsets = [0, 0], sizes = [17, 32], strides = [1, 1]} : vector<17x384xf32> to vector<17x32xf32>
    %29 = arith.truncf %28 : vector<17x32xf32> to vector<17x32xbf16>
    %30 = vector.extract_strided_slice %24 {offsets = [0, 128], sizes = [17, 32], strides = [1, 1]} : vector<17x384xf32> to vector<17x32xf32>
    %31 = arith.truncf %30 : vector<17x32xf32> to vector<17x32xbf16>
    %32 = vector.extract_strided_slice %24 {offsets = [0, 256], sizes = [17, 32], strides = [1, 1]} : vector<17x384xf32> to vector<17x32xf32>
    %33 = arith.truncf %32 : vector<17x32xf32> to vector<17x32xbf16>
    %cst_13 = arith.constant dense<0.000000e+00> : vector<17x17xf32>
    %34 = tpu.matmul %29, %31, %cst_13 {dimension_numbers = #tpu.dot_dimension_numbers<[1], [1], [0], [0], [0, 0, 1, 0], [], []>} : vector<17x32xbf16>, vector<17x32xbf16>, vector<17x17xf32> -> vector<17x17xf32>
    %cst_14 = arith.constant 0.176776692 : f32
    %35 = vector.broadcast %cst_14 : f32 to vector<17x17xf32>
    %36 = arith.mulf %34, %35 : vector<17x17xf32>
    %cst_15 = arith.constant dense<0xFF800000> : vector<17xf32>
    %37 = vector.multi_reduction <maximumf>, %36, %cst_15 [1] : vector<17x17xf32> to vector<17xf32>
    %38 = vector.shape_cast %37 : vector<17xf32> to vector<17x1xf32>
    %39 = vector.broadcast %38 : vector<17x1xf32> to vector<17x17xf32>
    %40 = arith.subf %36, %39 : vector<17x17xf32>
    %41 = math.exp %40 : vector<17x17xf32>
    %cst_16 = arith.constant dense<0.000000e+00> : vector<17xf32>
    %42 = vector.multi_reduction <add>, %41, %cst_16 [1] : vector<17x17xf32> to vector<17xf32>
    %43 = vector.shape_cast %42 : vector<17xf32> to vector<17x1xf32>
    %44 = tpu.reciprocal %43 {approx = true} : vector<17x1xf32> -> vector<17x1xf32>
    %45 = vector.broadcast %44 : vector<17x1xf32> to vector<17x17xf32>
    %46 = arith.mulf %41, %45 : vector<17x17xf32>
    %47 = arith.truncf %46 : vector<17x17xf32> to vector<17x17xbf16>
    %cst_17 = arith.constant dense<0.000000e+00> : vector<17x32xf32>
    %48 = tpu.matmul %47, %33, %cst_17 {dimension_numbers = #tpu.dot_dimension_numbers<[1], [0], [0], [1], [0, 0, 1, 1], [], []>} : vector<17x17xbf16>, vector<17x32xbf16>, vector<17x32xf32> -> vector<17x32xf32>
    %49 = arith.truncf %48 : vector<17x32xf32> to vector<17x32xbf16>
    %c0_18 = arith.constant 0 : index
    %c0_19 = arith.constant 0 : index
    %50 = vector.load %arg4[%c0_18, %c0_19] : memref<128x128xbf16, #tpu.memory_space<vmem>>, vector<32x128xbf16>
    %cst_20 = arith.constant dense<0.000000e+00> : vector<17x128xf32>
    %51 = tpu.matmul %49, %50, %cst_20 {dimension_numbers = #tpu.dot_dimension_numbers<[1], [0], [0], [1], [0, 0, 1, 1], [], []>} : vector<17x32xbf16>, vector<32x128xbf16>, vector<17x128xf32> -> vector<17x128xf32>
    %52 = arith.addf %27, %51 : vector<17x128xf32>
    %53 = vector.extract_strided_slice %24 {offsets = [0, 32], sizes = [17, 32], strides = [1, 1]} : vector<17x384xf32> to vector<17x32xf32>
    %54 = arith.truncf %53 : vector<17x32xf32> to vector<17x32xbf16>
    %55 = vector.extract_strided_slice %24 {offsets = [0, 160], sizes = [17, 32], strides = [1, 1]} : vector<17x384xf32> to vector<17x32xf32>
    %56 = arith.truncf %55 : vector<17x32xf32> to vector<17x32xbf16>
    %57 = vector.extract_strided_slice %24 {offsets = [0, 288], sizes = [17, 32], strides = [1, 1]} : vector<17x384xf32> to vector<17x32xf32>
    %58 = arith.truncf %57 : vector<17x32xf32> to vector<17x32xbf16>
    %cst_21 = arith.constant dense<0.000000e+00> : vector<17x17xf32>
    %59 = tpu.matmul %54, %56, %cst_21 {dimension_numbers = #tpu.dot_dimension_numbers<[1], [1], [0], [0], [0, 0, 1, 0], [], []>} : vector<17x32xbf16>, vector<17x32xbf16>, vector<17x17xf32> -> vector<17x17xf32>
    %cst_22 = arith.constant 0.176776692 : f32
    %60 = vector.broadcast %cst_22 : f32 to vector<17x17xf32>
    %61 = arith.mulf %59, %60 : vector<17x17xf32>
    %cst_23 = arith.constant dense<0xFF800000> : vector<17xf32>
    %62 = vector.multi_reduction <maximumf>, %61, %cst_23 [1] : vector<17x17xf32> to vector<17xf32>
    %63 = vector.shape_cast %62 : vector<17xf32> to vector<17x1xf32>
    %64 = vector.broadcast %63 : vector<17x1xf32> to vector<17x17xf32>
    %65 = arith.subf %61, %64 : vector<17x17xf32>
    %66 = math.exp %65 : vector<17x17xf32>
    %cst_24 = arith.constant dense<0.000000e+00> : vector<17xf32>
    %67 = vector.multi_reduction <add>, %66, %cst_24 [1] : vector<17x17xf32> to vector<17xf32>
    %68 = vector.shape_cast %67 : vector<17xf32> to vector<17x1xf32>
    %69 = tpu.reciprocal %68 {approx = true} : vector<17x1xf32> -> vector<17x1xf32>
    %70 = vector.broadcast %69 : vector<17x1xf32> to vector<17x17xf32>
    %71 = arith.mulf %66, %70 : vector<17x17xf32>
    %72 = arith.truncf %71 : vector<17x17xf32> to vector<17x17xbf16>
    %cst_25 = arith.constant dense<0.000000e+00> : vector<17x32xf32>
    %73 = tpu.matmul %72, %58, %cst_25 {dimension_numbers = #tpu.dot_dimension_numbers<[1], [0], [0], [1], [0, 0, 1, 1], [], []>} : vector<17x17xbf16>, vector<17x32xbf16>, vector<17x32xf32> -> vector<17x32xf32>
    %74 = arith.truncf %73 : vector<17x32xf32> to vector<17x32xbf16>
    %c32 = arith.constant 32 : index
    %c0_26 = arith.constant 0 : index
    %75 = vector.load %arg4[%c32, %c0_26] : memref<128x128xbf16, #tpu.memory_space<vmem>>, vector<32x128xbf16>
    %cst_27 = arith.constant dense<0.000000e+00> : vector<17x128xf32>
    %76 = tpu.matmul %74, %75, %cst_27 {dimension_numbers = #tpu.dot_dimension_numbers<[1], [0], [0], [1], [0, 0, 1, 1], [], []>} : vector<17x32xbf16>, vector<32x128xbf16>, vector<17x128xf32> -> vector<17x128xf32>
    %77 = arith.addf %52, %76 : vector<17x128xf32>
    %78 = vector.extract_strided_slice %24 {offsets = [0, 64], sizes = [17, 32], strides = [1, 1]} : vector<17x384xf32> to vector<17x32xf32>
    %79 = arith.truncf %78 : vector<17x32xf32> to vector<17x32xbf16>
    %80 = vector.extract_strided_slice %24 {offsets = [0, 192], sizes = [17, 32], strides = [1, 1]} : vector<17x384xf32> to vector<17x32xf32>
    %81 = arith.truncf %80 : vector<17x32xf32> to vector<17x32xbf16>
    %82 = vector.extract_strided_slice %24 {offsets = [0, 320], sizes = [17, 32], strides = [1, 1]} : vector<17x384xf32> to vector<17x32xf32>
    %83 = arith.truncf %82 : vector<17x32xf32> to vector<17x32xbf16>
    %cst_28 = arith.constant dense<0.000000e+00> : vector<17x17xf32>
    %84 = tpu.matmul %79, %81, %cst_28 {dimension_numbers = #tpu.dot_dimension_numbers<[1], [1], [0], [0], [0, 0, 1, 0], [], []>} : vector<17x32xbf16>, vector<17x32xbf16>, vector<17x17xf32> -> vector<17x17xf32>
    %cst_29 = arith.constant 0.176776692 : f32
    %85 = vector.broadcast %cst_29 : f32 to vector<17x17xf32>
    %86 = arith.mulf %84, %85 : vector<17x17xf32>
    %cst_30 = arith.constant dense<0xFF800000> : vector<17xf32>
    %87 = vector.multi_reduction <maximumf>, %86, %cst_30 [1] : vector<17x17xf32> to vector<17xf32>
    %88 = vector.shape_cast %87 : vector<17xf32> to vector<17x1xf32>
    %89 = vector.broadcast %88 : vector<17x1xf32> to vector<17x17xf32>
    %90 = arith.subf %86, %89 : vector<17x17xf32>
    %91 = math.exp %90 : vector<17x17xf32>
    %cst_31 = arith.constant dense<0.000000e+00> : vector<17xf32>
    %92 = vector.multi_reduction <add>, %91, %cst_31 [1] : vector<17x17xf32> to vector<17xf32>
    %93 = vector.shape_cast %92 : vector<17xf32> to vector<17x1xf32>
    %94 = tpu.reciprocal %93 {approx = true} : vector<17x1xf32> -> vector<17x1xf32>
    %95 = vector.broadcast %94 : vector<17x1xf32> to vector<17x17xf32>
    %96 = arith.mulf %91, %95 : vector<17x17xf32>
    %97 = arith.truncf %96 : vector<17x17xf32> to vector<17x17xbf16>
    %cst_32 = arith.constant dense<0.000000e+00> : vector<17x32xf32>
    %98 = tpu.matmul %97, %83, %cst_32 {dimension_numbers = #tpu.dot_dimension_numbers<[1], [0], [0], [1], [0, 0, 1, 1], [], []>} : vector<17x17xbf16>, vector<17x32xbf16>, vector<17x32xf32> -> vector<17x32xf32>
    %99 = arith.truncf %98 : vector<17x32xf32> to vector<17x32xbf16>
    %c64 = arith.constant 64 : index
    %c0_33 = arith.constant 0 : index
    %100 = vector.load %arg4[%c64, %c0_33] : memref<128x128xbf16, #tpu.memory_space<vmem>>, vector<32x128xbf16>
    %cst_34 = arith.constant dense<0.000000e+00> : vector<17x128xf32>
    %101 = tpu.matmul %99, %100, %cst_34 {dimension_numbers = #tpu.dot_dimension_numbers<[1], [0], [0], [1], [0, 0, 1, 1], [], []>} : vector<17x32xbf16>, vector<32x128xbf16>, vector<17x128xf32> -> vector<17x128xf32>
    %102 = arith.addf %77, %101 : vector<17x128xf32>
    %103 = vector.extract_strided_slice %24 {offsets = [0, 96], sizes = [17, 32], strides = [1, 1]} : vector<17x384xf32> to vector<17x32xf32>
    %104 = arith.truncf %103 : vector<17x32xf32> to vector<17x32xbf16>
    %105 = vector.extract_strided_slice %24 {offsets = [0, 224], sizes = [17, 32], strides = [1, 1]} : vector<17x384xf32> to vector<17x32xf32>
    %106 = arith.truncf %105 : vector<17x32xf32> to vector<17x32xbf16>
    %107 = vector.extract_strided_slice %24 {offsets = [0, 352], sizes = [17, 32], strides = [1, 1]} : vector<17x384xf32> to vector<17x32xf32>
    %108 = arith.truncf %107 : vector<17x32xf32> to vector<17x32xbf16>
    %cst_35 = arith.constant dense<0.000000e+00> : vector<17x17xf32>
    %109 = tpu.matmul %104, %106, %cst_35 {dimension_numbers = #tpu.dot_dimension_numbers<[1], [1], [0], [0], [0, 0, 1, 0], [], []>} : vector<17x32xbf16>, vector<17x32xbf16>, vector<17x17xf32> -> vector<17x17xf32>
    %cst_36 = arith.constant 0.176776692 : f32
    %110 = vector.broadcast %cst_36 : f32 to vector<17x17xf32>
    %111 = arith.mulf %109, %110 : vector<17x17xf32>
    %cst_37 = arith.constant dense<0xFF800000> : vector<17xf32>
    %112 = vector.multi_reduction <maximumf>, %111, %cst_37 [1] : vector<17x17xf32> to vector<17xf32>
    %113 = vector.shape_cast %112 : vector<17xf32> to vector<17x1xf32>
    %114 = vector.broadcast %113 : vector<17x1xf32> to vector<17x17xf32>
    %115 = arith.subf %111, %114 : vector<17x17xf32>
    %116 = math.exp %115 : vector<17x17xf32>
    %cst_38 = arith.constant dense<0.000000e+00> : vector<17xf32>
    %117 = vector.multi_reduction <add>, %116, %cst_38 [1] : vector<17x17xf32> to vector<17xf32>
    %118 = vector.shape_cast %117 : vector<17xf32> to vector<17x1xf32>
    %119 = tpu.reciprocal %118 {approx = true} : vector<17x1xf32> -> vector<17x1xf32>
    %120 = vector.broadcast %119 : vector<17x1xf32> to vector<17x17xf32>
    %121 = arith.mulf %116, %120 : vector<17x17xf32>
    %122 = arith.truncf %121 : vector<17x17xf32> to vector<17x17xbf16>
    %cst_39 = arith.constant dense<0.000000e+00> : vector<17x32xf32>
    %123 = tpu.matmul %122, %108, %cst_39 {dimension_numbers = #tpu.dot_dimension_numbers<[1], [0], [0], [1], [0, 0, 1, 1], [], []>} : vector<17x17xbf16>, vector<17x32xbf16>, vector<17x32xf32> -> vector<17x32xf32>
    %124 = arith.truncf %123 : vector<17x32xf32> to vector<17x32xbf16>
    %c96 = arith.constant 96 : index
    %c0_40 = arith.constant 0 : index
    %125 = vector.load %arg4[%c96, %c0_40] : memref<128x128xbf16, #tpu.memory_space<vmem>>, vector<32x128xbf16>
    %cst_41 = arith.constant dense<0.000000e+00> : vector<17x128xf32>
    %126 = tpu.matmul %124, %125, %cst_41 {dimension_numbers = #tpu.dot_dimension_numbers<[1], [0], [0], [1], [0, 0, 1, 1], [], []>} : vector<17x32xbf16>, vector<32x128xbf16>, vector<17x128xf32> -> vector<17x128xf32>
    %127 = arith.addf %102, %126 : vector<17x128xf32>
    %cst_42 = arith.constant dense<0.000000e+00> : vector<17xf32>
    %128 = vector.multi_reduction <add>, %127, %cst_42 [1] : vector<17x128xf32> to vector<17xf32>
    %129 = vector.shape_cast %128 : vector<17xf32> to vector<17x1xf32>
    %cst_43 = arith.constant 1.280000e+02 : f32
    %130 = vector.broadcast %cst_43 : f32 to vector<17x1xf32>
    %131 = arith.divf %129, %130 : vector<17x1xf32>
    %132 = vector.broadcast %131 : vector<17x1xf32> to vector<17x128xf32>
    %133 = arith.subf %127, %132 : vector<17x128xf32>
    %134 = arith.mulf %133, %133 : vector<17x128xf32>
    %cst_44 = arith.constant dense<0.000000e+00> : vector<17xf32>
    %135 = vector.multi_reduction <add>, %134, %cst_44 [1] : vector<17x128xf32> to vector<17xf32>
    %136 = vector.shape_cast %135 : vector<17xf32> to vector<17x1xf32>
    %cst_45 = arith.constant 1.280000e+02 : f32
    %137 = vector.broadcast %cst_45 : f32 to vector<17x1xf32>
    %138 = arith.divf %136, %137 : vector<17x1xf32>
    %cst_46 = arith.constant 9.99999997E-7 : f32
    %139 = vector.broadcast %cst_46 : f32 to vector<17x1xf32>
    %140 = arith.addf %138, %139 : vector<17x1xf32>
    %141 = math.rsqrt %140 : vector<17x1xf32>
    %142 = vector.broadcast %141 : vector<17x1xf32> to vector<17x128xf32>
    %143 = arith.mulf %133, %142 : vector<17x128xf32>
    %144 = arith.truncf %143 : vector<17x128xf32> to vector<17x128xbf16>
    %c0_47 = arith.constant 0 : index
    %c0_48 = arith.constant 0 : index
    %145 = vector.load %arg6[%c0_47, %c0_48] : memref<128x512xbf16, #tpu.memory_space<vmem>>, vector<128x512xbf16>
    %cst_49 = arith.constant dense<0.000000e+00> : vector<17x512xf32>
    %146 = tpu.matmul %144, %145, %cst_49 {dimension_numbers = #tpu.dot_dimension_numbers<[1], [0], [0], [1], [0, 0, 1, 1], [], []>} : vector<17x128xbf16>, vector<128x512xbf16>, vector<17x512xf32> -> vector<17x512xf32>
    %c0_50 = arith.constant 0 : index
    %c0_51 = arith.constant 0 : index
    %147 = vector.load %arg7[%c0_50, %c0_51] : memref<1x512xf32, #tpu.memory_space<vmem>>, vector<1x512xf32>
    %148 = vector.broadcast %147 : vector<1x512xf32> to vector<17x512xf32>
    %149 = arith.addf %146, %148 : vector<17x512xf32>
    %cst_52 = arith.constant 5.000000e-01 : f32
    %150 = vector.broadcast %cst_52 : f32 to vector<17x512xf32>
    %151 = arith.mulf %150, %149 : vector<17x512xf32>
    %cst_53 = arith.constant 0.707106769 : f32
    %152 = vector.broadcast %cst_53 : f32 to vector<17x512xf32>
    %153 = arith.mulf %149, %152 : vector<17x512xf32>
    %154 = math.absf %153 : vector<17x512xf32>
    %cst_54 = arith.constant 0.327591091 : f32
    %155 = vector.broadcast %cst_54 : f32 to vector<17x512xf32>
    %156 = arith.mulf %155, %154 : vector<17x512xf32>
    %cst_55 = arith.constant 1.000000e+00 : f32
    %157 = vector.broadcast %cst_55 : f32 to vector<17x512xf32>
    %158 = arith.addf %157, %156 : vector<17x512xf32>
    %cst_56 = arith.constant 1.000000e+00 : f32
    %159 = vector.broadcast %cst_56 : f32 to vector<17x512xf32>
    %160 = arith.divf %159, %158 : vector<17x512xf32>
    %cst_57 = arith.constant 1.06140542 : f32
    %161 = vector.broadcast %cst_57 : f32 to vector<17x512xf32>
    %162 = arith.mulf %161, %160 : vector<17x512xf32>
    %cst_58 = arith.constant -1.45315206 : f32
    %163 = vector.broadcast %cst_58 : f32 to vector<17x512xf32>
    %164 = arith.addf %162, %163 : vector<17x512xf32>
    %165 = arith.mulf %164, %160 : vector<17x512xf32>
    %cst_59 = arith.constant 1.42141378 : f32
    %166 = vector.broadcast %cst_59 : f32 to vector<17x512xf32>
    %167 = arith.addf %165, %166 : vector<17x512xf32>
    %168 = arith.mulf %167, %160 : vector<17x512xf32>
    %cst_60 = arith.constant -0.284496725 : f32
    %169 = vector.broadcast %cst_60 : f32 to vector<17x512xf32>
    %170 = arith.addf %168, %169 : vector<17x512xf32>
    %171 = arith.mulf %170, %160 : vector<17x512xf32>
    %cst_61 = arith.constant 0.254829586 : f32
    %172 = vector.broadcast %cst_61 : f32 to vector<17x512xf32>
    %173 = arith.addf %171, %172 : vector<17x512xf32>
    %174 = arith.mulf %173, %160 : vector<17x512xf32>
    %cst_62 = arith.constant 0.000000e+00 : f32
    %175 = vector.broadcast %cst_62 : f32 to vector<17x512xf32>
    %176 = arith.subf %175, %154 : vector<17x512xf32>
    %177 = arith.mulf %176, %154 : vector<17x512xf32>
    %178 = math.exp %177 : vector<17x512xf32>
    %179 = arith.mulf %174, %178 : vector<17x512xf32>
    %cst_63 = arith.constant 1.000000e+00 : f32
    %180 = vector.broadcast %cst_63 : f32 to vector<17x512xf32>
    %181 = arith.subf %180, %179 : vector<17x512xf32>
    %cst_64 = arith.constant 0.000000e+00 : f32
    %182 = vector.broadcast %cst_64 : f32 to vector<17x512xf32>
    %183 = arith.cmpf olt, %153, %182 : vector<17x512xf32>
    %cst_65 = arith.constant 0.000000e+00 : f32
    %184 = vector.broadcast %cst_65 : f32 to vector<17x512xf32>
    %185 = arith.subf %184, %181 : vector<17x512xf32>
    %186 = arith.select %183, %185, %181 : vector<17x512xi1>, vector<17x512xf32>
    %cst_66 = arith.constant 1.000000e+00 : f32
    %187 = vector.broadcast %cst_66 : f32 to vector<17x512xf32>
    %188 = arith.addf %187, %186 : vector<17x512xf32>
    %189 = arith.mulf %151, %188 : vector<17x512xf32>
    %190 = arith.truncf %189 : vector<17x512xf32> to vector<17x512xbf16>
    %c0_67 = arith.constant 0 : index
    %c0_68 = arith.constant 0 : index
    %191 = vector.load %arg8[%c0_67, %c0_68] : memref<512x128xbf16, #tpu.memory_space<vmem>>, vector<512x128xbf16>
    %cst_69 = arith.constant dense<0.000000e+00> : vector<17x128xf32>
    %192 = tpu.matmul %190, %191, %cst_69 {dimension_numbers = #tpu.dot_dimension_numbers<[1], [0], [0], [1], [0, 0, 1, 1], [], []>} : vector<17x512xbf16>, vector<512x128xbf16>, vector<17x128xf32> -> vector<17x128xf32>
    %c0_70 = arith.constant 0 : index
    %c0_71 = arith.constant 0 : index
    %193 = vector.load %arg9[%c0_70, %c0_71] : memref<1x128xf32, #tpu.memory_space<vmem>>, vector<1x128xf32>
    %194 = vector.broadcast %193 : vector<1x128xf32> to vector<17x128xf32>
    %195 = arith.addf %192, %194 : vector<17x128xf32>
    %196 = arith.addf %195, %127 : vector<17x128xf32>
    %197 = arith.truncf %196 : vector<17x128xf32> to vector<17x128xbf16>
    %c0_72 = arith.constant 0 : index
    %c0_73 = arith.constant 0 : index
    %c0_74 = arith.constant 0 : index
    %198 = vector.load %arg10[%c0_72, %c0_73, %c0_74] : memref<1x17x128xbf16, #tpu.memory_space<vmem>>, vector<1x17x128xbf16>
    %199 = vector.shape_cast %198 : vector<1x17x128xbf16> to vector<17x128xbf16>
    %200 = vector.shape_cast %197 : vector<17x128xbf16> to vector<1x17x128xbf16>
    tpu.vector_store %arg10[%c0_72, %c0_73, %c0_74], %200 {strides = array<i32>} : memref<1x17x128xbf16, #tpu.memory_space<vmem>>, vector<1x17x128xbf16>,
    return
  }
  func.func @transform_0(%arg0: i32) -> (i32, i32, i32) {
    %c0_i32 = arith.constant 0 : i32
    %c0_i32_0 = arith.constant 0 : i32
    %c0_i32_1 = arith.constant 0 : i32
    return %arg0, %c0_i32, %c0_i32_0 : i32, i32, i32
  }
  func.func @transform_1(%arg0: i32) -> (i32, i32) {
    %c0_i32 = arith.constant 0 : i32
    %c0_i32_0 = arith.constant 0 : i32
    %c0_i32_1 = arith.constant 0 : i32
    return %c0_i32, %c0_i32_0 : i32, i32
  }
  func.func @transform_2(%arg0: i32) -> (i32, i32) {
    %c0_i32 = arith.constant 0 : i32
    %c0_i32_0 = arith.constant 0 : i32
    %c0_i32_1 = arith.constant 0 : i32
    return %c0_i32, %c0_i32_0 : i32, i32
  }
  func.func @transform_3(%arg0: i32) -> (i32, i32) {
    %c0_i32 = arith.constant 0 : i32
    %c0_i32_0 = arith.constant 0 : i32
    %c0_i32_1 = arith.constant 0 : i32
    return %c0_i32, %c0_i32_0 : i32, i32
  }
  func.func @transform_4(%arg0: i32) -> (i32, i32) {
    %c0_i32 = arith.constant 0 : i32
    %c0_i32_0 = arith.constant 0 : i32
    %c0_i32_1 = arith.constant 0 : i32
    return %c0_i32, %c0_i32_0 : i32, i32
  }
  func.func @transform_5(%arg0: i32) -> (i32, i32) {
    %c0_i32 = arith.constant 0 : i32
    %c0_i32_0 = arith.constant 0 : i32
    %c0_i32_1 = arith.constant 0 : i32
    return %c0_i32, %c0_i32_0 : i32, i32
  }
  func.func @transform_6(%arg0: i32) -> (i32, i32) {
    %c0_i32 = arith.constant 0 : i32
    %c0_i32_0 = arith.constant 0 : i32
    %c0_i32_1 = arith.constant 0 : i32
    return %c0_i32, %c0_i32_0 : i32, i32
  }
  func.func @transform_7(%arg0: i32) -> (i32, i32) {
    %c0_i32 = arith.constant 0 : i32
    %c0_i32_0 = arith.constant 0 : i32
    %c0_i32_1 = arith.constant 0 : i32
    return %c0_i32, %c0_i32_0 : i32, i32
  }
  func.func @transform_8(%arg0: i32) -> (i32, i32) {
    %c0_i32 = arith.constant 0 : i32
    %c0_i32_0 = arith.constant 0 : i32
    %c0_i32_1 = arith.constant 0 : i32
    return %c0_i32, %c0_i32_0 : i32, i32
  }
  func.func @transform_9(%arg0: i32) -> (i32, i32, i32) {
    %c0_i32 = arith.constant 0 : i32
    %c0_i32_0 = arith.constant 0 : i32
    %c0_i32_1 = arith.constant 0 : i32
    return %arg0, %c0_i32, %c0_i32_0 : i32, i32, i32
  }
}

module attributes {stable_mosaic.version = 11 : i64} {
  func.func @_heads_kernel(%arg0: i32, %arg1: memref<1x17x128xbf16, #tpu.memory_space<vmem>>, %arg2: memref<128x32xbf16, #tpu.memory_space<vmem>>, %arg3: memref<1x32xf32, #tpu.memory_space<vmem>>, %arg4: memref<32x16xbf16, #tpu.memory_space<vmem>>, %arg5: memref<1x16xf32, #tpu.memory_space<vmem>>, %arg6: memref<1x1x32xf32, #tpu.memory_space<vmem>>, %arg7: memref<1x1x16xf32, #tpu.memory_space<vmem>>) attributes {dimension_semantics = [#tpu.dimension_semantics<parallel>], iteration_bounds = array<i64: 2>, scalar_prefetch = 0 : i64, scratch_operands = 0 : i64, tpu.core_type = #tpu.core_type<tc>, window_params = [{transform_indices = @transform_0, window_bounds = array<i64: 1, 17, 128>}, {pipeline_mode = #tpu.pipeline_mode<synchronous>, transform_indices = @transform_1, window_bounds = array<i64: 128, 32>}, {pipeline_mode = #tpu.pipeline_mode<synchronous>, transform_indices = @transform_2, window_bounds = array<i64: 1, 32>}, {pipeline_mode = #tpu.pipeline_mode<synchronous>, transform_indices = @transform_3, window_bounds = array<i64: 32, 16>}, {pipeline_mode = #tpu.pipeline_mode<synchronous>, transform_indices = @transform_4, window_bounds = array<i64: 1, 16>}, {transform_indices = @transform_5, window_bounds = array<i64: 1, 1, 32>}, {transform_indices = @transform_6, window_bounds = array<i64: 1, 1, 16>}]} {
    %c0 = arith.constant 0 : index
    %c0_0 = arith.constant 0 : index
    %c0_1 = arith.constant 0 : index
    %0 = vector.load %arg1[%c0, %c0_0, %c0_1] : memref<1x17x128xbf16, #tpu.memory_space<vmem>>, vector<1x17x128xbf16>
    %1 = vector.shape_cast %0 : vector<1x17x128xbf16> to vector<17x128xbf16>
    %2 = arith.extf %1 : vector<17x128xbf16> to vector<17x128xf32>
    %3 = vector.extract_strided_slice %2 {offsets = [0, 0], sizes = [1, 128], strides = [1, 1]} : vector<17x128xf32> to vector<1x128xf32>
    %cst = arith.constant dense<0.000000e+00> : vector<1xf32>
    %4 = vector.multi_reduction <add>, %3, %cst [1] : vector<1x128xf32> to vector<1xf32>
    %5 = vector.shape_cast %4 : vector<1xf32> to vector<1x1xf32>
    %cst_2 = arith.constant 1.280000e+02 : f32
    %6 = vector.broadcast %cst_2 : f32 to vector<1x1xf32>
    %7 = arith.divf %5, %6 : vector<1x1xf32>
    %8 = vector.broadcast %7 : vector<1x1xf32> to vector<1x128xf32>
    %9 = arith.subf %3, %8 : vector<1x128xf32>
    %10 = arith.mulf %9, %9 : vector<1x128xf32>
    %cst_3 = arith.constant dense<0.000000e+00> : vector<1xf32>
    %11 = vector.multi_reduction <add>, %10, %cst_3 [1] : vector<1x128xf32> to vector<1xf32>
    %12 = vector.shape_cast %11 : vector<1xf32> to vector<1x1xf32>
    %cst_4 = arith.constant 1.280000e+02 : f32
    %13 = vector.broadcast %cst_4 : f32 to vector<1x1xf32>
    %14 = arith.divf %12, %13 : vector<1x1xf32>
    %cst_5 = arith.constant 9.99999997E-7 : f32
    %15 = vector.broadcast %cst_5 : f32 to vector<1x1xf32>
    %16 = arith.addf %14, %15 : vector<1x1xf32>
    %17 = math.rsqrt %16 : vector<1x1xf32>
    %18 = vector.broadcast %17 : vector<1x1xf32> to vector<1x128xf32>
    %19 = arith.mulf %9, %18 : vector<1x128xf32>
    %20 = arith.truncf %19 : vector<1x128xf32> to vector<1x128xbf16>
    %c0_6 = arith.constant 0 : index
    %c0_7 = arith.constant 0 : index
    %21 = vector.load %arg2[%c0_6, %c0_7] : memref<128x32xbf16, #tpu.memory_space<vmem>>, vector<128x32xbf16>
    %cst_8 = arith.constant dense<0.000000e+00> : vector<1x32xf32>
    %22 = tpu.matmul %20, %21, %cst_8 {dimension_numbers = #tpu.dot_dimension_numbers<[1], [0], [0], [1], [0, 0, 1, 1], [], []>} : vector<1x128xbf16>, vector<128x32xbf16>, vector<1x32xf32> -> vector<1x32xf32>
    %c0_9 = arith.constant 0 : index
    %c0_10 = arith.constant 0 : index
    %23 = vector.load %arg3[%c0_9, %c0_10] : memref<1x32xf32, #tpu.memory_space<vmem>>, vector<1x32xf32>
    %24 = arith.addf %22, %23 : vector<1x32xf32>
    %c0_11 = arith.constant 0 : index
    %c0_12 = arith.constant 0 : index
    %c0_13 = arith.constant 0 : index
    %25 = vector.load %arg6[%c0_11, %c0_12, %c0_13] : memref<1x1x32xf32, #tpu.memory_space<vmem>>, vector<1x1x32xf32>
    %26 = vector.shape_cast %25 : vector<1x1x32xf32> to vector<1x32xf32>
    %27 = vector.shape_cast %24 : vector<1x32xf32> to vector<1x1x32xf32>
    tpu.vector_store %arg6[%c0_11, %c0_12, %c0_13], %27 {strides = array<i32>} : memref<1x1x32xf32, #tpu.memory_space<vmem>>, vector<1x1x32xf32>,
    %28 = arith.mulf %24, %24 : vector<1x32xf32>
    %cst_14 = arith.constant dense<0.000000e+00> : vector<1xf32>
    %29 = vector.multi_reduction <add>, %28, %cst_14 [1] : vector<1x32xf32> to vector<1xf32>
    %30 = vector.shape_cast %29 : vector<1xf32> to vector<1x1xf32>
    %31 = math.sqrt %30 : vector<1x1xf32>
    %cst_15 = arith.constant 9.99999996E-13 : f32
    %32 = vector.broadcast %cst_15 : f32 to vector<1x1xf32>
    %33 = arith.maximumf %31, %32 : vector<1x1xf32>
    %34 = vector.broadcast %33 : vector<1x1xf32> to vector<1x32xf32>
    %35 = arith.divf %24, %34 : vector<1x32xf32>
    %36 = arith.truncf %35 : vector<1x32xf32> to vector<1x32xbf16>
    %c0_16 = arith.constant 0 : index
    %c0_17 = arith.constant 0 : index
    %37 = vector.load %arg4[%c0_16, %c0_17] : memref<32x16xbf16, #tpu.memory_space<vmem>>, vector<32x16xbf16>
    %cst_18 = arith.constant dense<0.000000e+00> : vector<1x16xf32>
    %38 = tpu.matmul %36, %37, %cst_18 {dimension_numbers = #tpu.dot_dimension_numbers<[1], [0], [0], [1], [0, 0, 1, 1], [], []>} : vector<1x32xbf16>, vector<32x16xbf16>, vector<1x16xf32> -> vector<1x16xf32>
    %c0_19 = arith.constant 0 : index
    %c0_20 = arith.constant 0 : index
    %39 = vector.load %arg5[%c0_19, %c0_20] : memref<1x16xf32, #tpu.memory_space<vmem>>, vector<1x16xf32>
    %40 = arith.addf %38, %39 : vector<1x16xf32>
    %c0_21 = arith.constant 0 : index
    %c0_22 = arith.constant 0 : index
    %c0_23 = arith.constant 0 : index
    %41 = vector.load %arg7[%c0_21, %c0_22, %c0_23] : memref<1x1x16xf32, #tpu.memory_space<vmem>>, vector<1x1x16xf32>
    %42 = vector.shape_cast %41 : vector<1x1x16xf32> to vector<1x16xf32>
    %43 = vector.shape_cast %40 : vector<1x16xf32> to vector<1x1x16xf32>
    tpu.vector_store %arg7[%c0_21, %c0_22, %c0_23], %43 {strides = array<i32>} : memref<1x1x16xf32, #tpu.memory_space<vmem>>, vector<1x1x16xf32>,
    return
  }
  func.func @transform_0(%arg0: i32) -> (i32, i32, i32) {
    %c0_i32 = arith.constant 0 : i32
    %c0_i32_0 = arith.constant 0 : i32
    %c0_i32_1 = arith.constant 0 : i32
    return %arg0, %c0_i32, %c0_i32_0 : i32, i32, i32
  }
  func.func @transform_1(%arg0: i32) -> (i32, i32) {
    %c0_i32 = arith.constant 0 : i32
    %c0_i32_0 = arith.constant 0 : i32
    %c0_i32_1 = arith.constant 0 : i32
    return %c0_i32, %c0_i32_0 : i32, i32
  }
  func.func @transform_2(%arg0: i32) -> (i32, i32) {
    %c0_i32 = arith.constant 0 : i32
    %c0_i32_0 = arith.constant 0 : i32
    %c0_i32_1 = arith.constant 0 : i32
    return %c0_i32, %c0_i32_0 : i32, i32
  }
  func.func @transform_3(%arg0: i32) -> (i32, i32) {
    %c0_i32 = arith.constant 0 : i32
    %c0_i32_0 = arith.constant 0 : i32
    %c0_i32_1 = arith.constant 0 : i32
    return %c0_i32, %c0_i32_0 : i32, i32
  }
  func.func @transform_4(%arg0: i32) -> (i32, i32) {
    %c0_i32 = arith.constant 0 : i32
    %c0_i32_0 = arith.constant 0 : i32
    %c0_i32_1 = arith.constant 0 : i32
    return %c0_i32, %c0_i32_0 : i32, i32
  }
  func.func @transform_5(%arg0: i32) -> (i32, i32, i32) {
    %c0_i32 = arith.constant 0 : i32
    %c0_i32_0 = arith.constant 0 : i32
    %c0_i32_1 = arith.constant 0 : i32
    return %arg0, %c0_i32, %c0_i32_0 : i32, i32, i32
  }
  func.func @transform_6(%arg0: i32) -> (i32, i32, i32) {
    %c0_i32 = arith.constant 0 : i32
    %c0_i32_0 = arith.constant 0 : i32
    %c0_i32_1 = arith.constant 0 : i32
    return %arg0, %c0_i32, %c0_i32_0 : i32, i32, i32
  }
}

</mosaic_0001>

<llo_original>
// kernel: forward.4
$region0: #{forward.4}
  #allocation0 [shape = 'u32[]', space=smem, size = 0x4, offset = 0x4, fixed_abs, tag = 'smem constant byte address 0x4 - core index']
  #allocation1 [shape = 'u32[144,128]{1,0:T(1,128)}', space=vmem, size = 0x12000, scoped, tag = 'internal scratch']
  %s0 = inlined_call_operand.vmem [shape: f32[2,17,192], index: 0, kind: input, shape index: {}]
  %s1 = inlined_call_operand.vmem [shape: bf16[192,128], index: 1, kind: input, shape index: {}]
  %s2 = inlined_call_operand.vmem [shape: f32[1,17,128], index: 2, kind: input, shape index: {}]
  %s3 = inlined_call_operand.vmem [shape: bf16[2,17,128], index: 3, kind: output, shape index: {}]
  %s4 = sld [smem:[#allocation0]]
  $region45: #{forward.4} parent=0
    _
  %s6 = ssub.s32 1, %s4
  %s7 = scalar_select 0, %s6, %s4
  loop: start=0, step=1, limit=4
  $region2: #{forward.4} parent=0 // loop_pre_header
    _
  $region3: #{forward.4} parent=0 // loop_header
    %s9 = sphi 0, %s13
    %p10 = scmp.ge.s32.totalorder %s9, 4
    %s19 = sphi 0, %s21
    %s22 = sphi 0, %s19
    %s23 = sphi 0, %s22
    %s39 = sphi 0, %s23
    %s43 = sphi 0, %s43
    %s45 = sphi 0, %s43
    %s46 = sphi 0, %s45
    %s60 = sphi 0, %s46
    %s64 = sphi 0, %s64
    %s66 = sphi 0, %s64
    %s67 = sphi 0, %s66
    %s81 = sphi 0, %s67
    %s87 = sphi 0, %s89
    %s90 = sphi 0, %s87
    %s91 = sphi 0, %s90
    %s107 = sphi 0, %s91
  $region4: #{forward.4} parent=0 // loop_header_branch
    %12 = sbr.rel (%p10) target = $region8
  $region5: #{forward.4} parent=0 // loop_body
    %s14 = ssub.s32 %s9, 1
    %s15 = ssub.s32 %s9, 2
    %s16 = sadd.s32 %s9, 1
    %s17 = ssub.s32 %s9, %s16
    %p18 = scmp.eq.s32.totalorder %s17, 0
    %s20 = sadd.s32 %s19, 1
    %s21 = scalar_select %p18, %s19, %s20
    %p24 = pneg %p18
    %p25 = scmp.eq.s32.totalorder %s9, 1
    %p26 = por %p24, %p25
    %p27 = scmp.ne.s32.totalorder %s19, %s22
    %p28 = scmp.eq.s32.totalorder %s9, 0
    %p29 = por %p27, %p28
    %p30 = scmp.ne.s32.totalorder %s19, %s22
    %p31 = scmp.eq.s32.totalorder %s14, 1
    %p32 = por %p30, %p31
    %p33 = scmp.ne.s32.totalorder %s22, %s23
    %p34 = scmp.eq.s32.totalorder %s14, 0
    %p35 = por %p33, %p34
    %p36 = scmp.ne.s32.totalorder %s22, %s23
    %p37 = scmp.eq.s32.totalorder %s15, 1
    %p38 = por %p36, %p37
    %p40 = scmp.ne.s32.totalorder %s23, %s39
    %p41 = scmp.eq.s32.totalorder %s15, 0
    %p42 = por %p40, %p41
    %s44 = sadd.s32 %s43, 1
    %p47 = scmp.eq.s32.totalorder %s9, 1
    %p48 = scmp.ne.s32.totalorder %s43, %s45
    %p49 = scmp.eq.s32.totalorder %s9, 0
    %p50 = por %p48, %p49
    %p51 = scmp.ne.s32.totalorder %s43, %s45
    %p52 = scmp.eq.s32.totalorder %s14, 1
    %p53 = por %p51, %p52
    %p54 = scmp.ne.s32.totalorder %s45, %s46
    %p55 = scmp.eq.s32.totalorder %s14, 0
    %p56 = por %p54, %p55
    %p57 = scmp.ne.s32.totalorder %s45, %s46
    %p58 = scmp.eq.s32.totalorder %s15, 1
    %p59 = por %p57, %p58
    %p61 = scmp.ne.s32.totalorder %s46, %s60
    %p62 = scmp.eq.s32.totalorder %s15, 0
    %p63 = por %p61, %p62
    %s65 = sadd.s32 %s64, 1
    %p68 = scmp.eq.s32.totalorder %s9, 1
    %p69 = scmp.ne.s32.totalorder %s64, %s66
    %p70 = scmp.eq.s32.totalorder %s9, 0
    %p71 = por %p69, %p70
    %p72 = scmp.ne.s32.totalorder %s64, %s66
    %p73 = scmp.eq.s32.totalorder %s14, 1
    %p74 = por %p72, %p73
    %p75 = scmp.ne.s32.totalorder %s66, %s67
    %p76 = scmp.eq.s32.totalorder %s14, 0
    %p77 = por %p75, %p76
    %p78 = scmp.ne.s32.totalorder %s66, %s67
    %p79 = scmp.eq.s32.totalorder %s15, 1
    %p80 = por %p78, %p79
    %p82 = scmp.ne.s32.totalorder %s67, %s81
    %p83 = scmp.eq.s32.totalorder %s15, 0
    %p84 = por %p82, %p83
    %s85 = ssub.s32 %s9, %s16
    %p86 = scmp.eq.s32.totalorder %s85, 0
    %s88 = sadd.s32 %s87, 1
    %s89 = scalar_select %p86, %s87, %s88
    %p92 = pneg %p86
    %p93 = scmp.eq.s32.totalorder %s9, 1
    %p94 = por %p92, %p93
    %p95 = scmp.ne.s32.totalorder %s87, %s90
    %p96 = scmp.eq.s32.totalorder %s9, 0
    %p97 = por %p95, %p96
    %p98 = scmp.ne.s32.totalorder %s87, %s90
    %p99 = scmp.eq.s32.totalorder %s14, 1
    %p100 = por %p98, %p99
    %p101 = scmp.ne.s32.totalorder %s90, %s91
    %p102 = scmp.eq.s32.totalorder %s14, 0
    %p103 = por %p101, %p102
    %p104 = scmp.ne.s32.totalorder %s90, %s91
    %p105 = scmp.eq.s32.totalorder %s15, 1
    %p106 = por %p104, %p105
    %p108 = scmp.ne.s32.totalorder %s91, %s107
    %p109 = scmp.eq.s32.totalorder %s15, 0
    %p110 = por %p108, %p109
    %p111 = scmp.le.s32.totalorder 1, %s9
    %p112 = scmp.lt.s32.totalorder %s9, 3
    %p113 = pnand %p111, %p112
    %p114 = pneg %p113
    // Predicated region
    $region9: #{forward.4} parent=5 // pred_check
      _
    $region10: #{forward.4} parent=5 // pred_check_branch
      %116 = sbr.rel (%p113) target = $region12
    $region11: #{forward.4} parent=5 // pred_region
      %s117 = ssub.s32 %s9, 1
      // Predicated region
      $region13: #{forward.4} parent=11 // pred_check
        %p118 = pneg %p56
      $region14: #{forward.4} parent=11 // pred_check_branch
        %120 = sbr.rel (%p118) target = $region16
      $region15: #{forward.4} parent=11 // pred_region
        _
      $region16: #{forward.4} parent=11 // pred_fallthru
        _
      // Predicated region
      $region17: #{forward.4} parent=11 // pred_check
        %p121 = pneg %p77
      $region18: #{forward.4} parent=11 // pred_check_branch
        %123 = sbr.rel (%p121) target = $region20
      $region19: #{forward.4} parent=11 // pred_region
        _
      $region20: #{forward.4} parent=11 // pred_fallthru
        _
    $region12: #{forward.4} parent=5 // pred_fallthru
      _
    %p124 = scmp.lt.s32.totalorder %s9, 2
    // Predicated region
    $region21: #{forward.4} parent=5 // pred_check
      %p125 = pneg %p124
    $region22: #{forward.4} parent=5 // pred_check_branch
      %127 = sbr.rel (%p125) target = $region24
    $region23: #{forward.4} parent=5 // pred_region
      // Predicated region
      $region25: #{forward.4} parent=23 // pred_check
        %p128 = pneg %p29
      $region26: #{forward.4} parent=23 // pred_check_branch
        %130 = sbr.rel (%p128) target = $region28
      $region27: #{forward.4} parent=23 // pred_region
        %p131 = scmp.lt.s32.totalorder %s9, 1
        %s132 = scalar_select %p131, %s9, 1
        %s133 = smul.addr %s132, 6
        %s134 = smul.addr %s133, 8
        %s135 = scalar_lea.vmem %s0, %s134
      $region28: #{forward.4} parent=23 // pred_fallthru
        _
    $region24: #{forward.4} parent=5 // pred_fallthru
      _
    %p136 = scmp.le.s32.totalorder 1, %s9
    %p137 = scmp.lt.s32.totalorder %s9, 3
    %p138 = pnand %p136, %p137
    %p139 = pneg %p138
    // Predicated region
    $region29: #{forward.4} parent=5 // pred_check
      _
    $region30: #{forward.4} parent=5 // pred_check_branch
      %141 = sbr.rel (%p138) target = $region32
    $region31: #{forward.4} parent=5 // pred_region
      %s142 = ssub.s32 %s9, 1
      %p143 = scmp.lt.s32.totalorder %s14, 1
      %s144 = scalar_select %p143, %s14, 1
      %s145 = smul.addr %s144, 6
      %s146 = smul.addr %s145, 8
      %s147 = scalar_lea.vmem %s0, %s146
      %p148 = pneg %p35
      %p149 = pneg %p32
      %p150 = pneg %p56
      %p151 = pneg %p53
      %p152 = pneg %p77
      %p153 = pneg %p74
      %p154 = pneg %p103
      %p155 = pneg %p100
      %p156 = scmp.lt.s32.totalorder %s14, 1
      %s157 = scalar_select %p156, %s14, 1
      %s158 = smul.addr %s157, 3
      %s159 = smul.addr %s158, 4
      %s160 = scalar_lea.vmem %s3, %s159
      %p161 = scmp.lt.s32.totalorder %s14, 1
      %s162 = scalar_select %p161, %s14, 1
      %s163 = smul.addr %s162, 6
      %s164 = smul.addr %s163, 8
      %s165 = scalar_lea.vmem %s0, %s164
      %p166 = scmp.lt.s32.totalorder %s14, 1
      %s167 = scalar_select %p166, %s14, 1
      %s168 = smul.addr %s167, 3
      %s169 = smul.addr %s168, 4
      %s170 = scalar_lea.vmem %s3, %s169
      %v172 = vld [vmem:[%s165] sm:$0xff]
      %v173 = vld [vmem:[%s165 + $0x8] sm:$0xff]
      %v174 = vld [vmem:[%s165 + $0x10] sm:$0xff]
      %v175 = vld [vmem:[%s165 + $0x18] sm:$0xff]
      %v176 = vld [vmem:[%s165 + $0x20] sm:$0x1]
      %v177 = vld [vmem:[%s165 + $0x28] sm:$0x1]
      %v178 = vpack.c.bf16 %v174, %v172
      %v179 = vpack.c.bf16 %v175, %v173
      %v180 = vpack.c.bf16 %v176, %v176
      %v181 = vpack.c.bf16 %v177, %v177
      %v182 = vld [vmem:[%s1] sm:$0xf]
      %v183 = vld [vmem:[%s1 + $0x4] sm:$0xf]
      %v184 = vld [vmem:[%s1 + $0x8] sm:$0xf]
      %v185 = vld [vmem:[%s1 + $0xc] sm:$0xf]
      %v186 = vld [vmem:[%s1 + $0x10] sm:$0xf]
      %v187 = vld [vmem:[%s1 + $0x14] sm:$0xf]
      %v188 = vld [vmem:[%s1 + $0x18] sm:$0xf]
      %v189 = vld [vmem:[%s1 + $0x1c] sm:$0xf]
      %v190 = vld [vmem:[%s1 + $0x20] sm:$0xf]
      %v191 = vld [vmem:[%s1 + $0x24] sm:$0xf]
      %v192 = vld [vmem:[%s1 + $0x28] sm:$0xf]
      %v193 = vld [vmem:[%s1 + $0x2c] sm:$0xf]
      %v194 = vld [vmem:[%s1 + $0x30] sm:$0xf]
      %v195 = vld [vmem:[%s1 + $0x34] sm:$0xf]
      %v196 = vld [vmem:[%s1 + $0x38] sm:$0xf]
      %v197 = vld [vmem:[%s1 + $0x3c] sm:$0xf]
      %v198 = vld [vmem:[%s1 + $0x40] sm:$0xf]
      %v199 = vld [vmem:[%s1 + $0x44] sm:$0xf]
      %v200 = vld [vmem:[%s1 + $0x48] sm:$0xf]
      %v201 = vld [vmem:[%s1 + $0x4c] sm:$0xf]
      %v202 = vld [vmem:[%s1 + $0x50] sm:$0xf]
      %v203 = vld [vmem:[%s1 + $0x54] sm:$0xf]
      %v204 = vld [vmem:[%s1 + $0x58] sm:$0xf]
      %v205 = vld [vmem:[%s1 + $0x5c] sm:$0xf]
      %v206 = vld [vmem:[%s2] sm:$0xff]
      %v207 = vld [vmem:[%s2 + $0x8] sm:$0xff]
      %v208 = vld [vmem:[%s2 + $0x10] sm:$0x1]
      %v233 = vunpack.c.l.b16 %v182
      %v234 = vunpack.c.l.b16 %v183
      %v235 = vunpack.c.l.b16 %v184
      %v236 = vunpack.c.l.b16 %v185
      %v237 = vunpack.c.l.b16 %v186
      %v238 = vunpack.c.l.b16 %v187
      %v239 = vunpack.c.l.b16 %v188
      %v240 = vunpack.c.l.b16 %v189
      %v241 = vunpack.c.l.b16 %v190
      %v242 = vunpack.c.l.b16 %v191
      %v243 = vunpack.c.l.b16 %v192
      %v244 = vunpack.c.l.b16 %v193
      %v245 = vunpack.c.l.b16 %v194
      %v246 = vunpack.c.l.b16 %v195
      %v247 = vunpack.c.l.b16 %v196
      %v248 = vunpack.c.l.b16 %v197
      %v249 = vunpack.c.l.b16 %v198
      %v250 = vunpack.c.l.b16 %v199
      %v251 = vunpack.c.l.b16 %v200
      %v252 = vunpack.c.l.b16 %v201
      %v253 = vunpack.c.l.b16 %v202
      %v254 = vunpack.c.l.b16 %v203
      %v255 = vunpack.c.l.b16 %v204
      %v256 = vunpack.c.l.b16 %v205
      %v257 = vpack.c.b16 %v234, %v233
      %v258 = vpack.c.b16 %v236, %v235
      %v259 = vpack.c.b16 %v238, %v237
      %v260 = vpack.c.b16 %v240, %v239
      %v261 = vpack.c.b16 %v242, %v241
      %v262 = vpack.c.b16 %v244, %v243
      %v263 = vpack.c.b16 %v246, %v245
      %v264 = vpack.c.b16 %v248, %v247
      %v265 = vpack.c.b16 %v250, %v249
      %v266 = vpack.c.b16 %v252, %v251
      %v267 = vpack.c.b16 %v254, %v253
      %v268 = vpack.c.b16 %v256, %v255
      %vm281 = vcmask 523264
      %v283 = vsel %vm281, %v179, 0
      %v286 = vsel %vm281, %v181, 0
      %288 = vmatprep.subr.bf16.mxu0 0
      %289 = vmatpush1.bf16.msra.mxu0 %v257
      %290 = vmatprep.subr.bf16.mxu0 0
      %291 = vmatpush1.bf16.msra.mxu0 %v258
      %292 = vmatprep.subr.bf16.mxu0 0
      %293 = vmatpush1.bf16.msra.mxu0 %v259
      %294 = vmatprep.subr.bf16.mxu0 0
      %295 = vmatpush1.bf16.msra.mxu0 %v260
      %296 = vmatprep.subr.bf16.mxu0 0
      %297 = vmatpush1.bf16.msra.mxu0 %v261
      %298 = vmatprep.subr.bf16.mxu0 0
      %299 = vmatpush1.bf16.msra.mxu0 %v262
      %300 = vmatprep.subr.bf16.mxu0 0
      %301 = vmatpush1.bf16.msra.mxu0 %v263
      %302 = vmatprep.subr.bf16.mxu0 0
      %303 = vmatpush1.bf16.msra.mxu0 %v264
      %304 = vmatprep.subr.bf16.mxu0 0
      %305 = vmatpush1.bf16.msra.mxu0 %v265
      %306 = vmatprep.subr.bf16.mxu0 0
      %307 = vmatpush1.bf16.msra.mxu0 %v266
      %308 = vmatprep.subr.bf16.mxu0 0
      %309 = vmatpush1.bf16.msra.mxu0 %v267
      %310 = vmatprep.subr.bf16.mxu0 0
      %311 = vmatpush1.bf16.msra.mxu0 %v268
      %312 = vmatprep.subr.bf16.mxu0 0
      %313 = vmatpush1.bf16.msra.mxu0 0
      %314 = vmatprep.subr.bf16.mxu0 0
      %315 = vmatpush1.bf16.msra.mxu0 0
      %316 = vmatprep.subr.bf16.mxu0 0
      %317 = vmatpush1.bf16.msra.mxu0 0
      %318 = vmatprep.subr.bf16.mxu0 0
      %319 = vmatpush1.bf16.msra.mxu0 0
      %320 = vmatprep.mubr.bf16.mxu0 %v283
      %321 = vmatmul.mubr.bf16.gmra.mrb[0].mxu0 %v178
      %v322 = vpop.f32.mrb[0].mxu0
      %v323 = vadd.f32 %v206, %v322
      %v324 = vpop.f32.mrb[0].mxu0
      %v325 = vpop.f32.mrb[0].mxu0
      %v326 = vadd.f32 %v207, %v325
      %v327 = vpop.f32.mrb[0].mxu0
      %328 = vmatprep.mubr.bf16.mxu0 %v286
      %329 = vmatmul.mubr.bf16.gmra.mrb[0].mxu0 %v180
      %v330 = vpop.f32.mrb[0].mxu0
      %v331 = vadd.f32 %v208, %v330
      %v332 = vpop.f32.mrb[0].mxu0
      %v333 = vpop.f32.mrb[0].mxu0
      %v334 = vpop.f32.mrb[0].mxu0
      %335 = vdwg.mxu0
      %v336 = vpack.c.bf16 %v326, %v323
      %v337 = vpack.c.bf16 %v331, %v331
      %v340 = vunpack.c.l.b16 %v336
      %v341 = vunpack.c.h.b16 %v336
      %v342 = vunpack.c.l.b16 %v337
      %v343 = vpack.c.b16 %v340, %v340
      %v344 = vpack.c.b16 %v341, %v341
      %v345 = vpack.c.b16 %v342, %v342
      %349 = vst [vmem:[%s170] sm:$0xf] %v343
      %350 = vst [vmem:[%s170 + $0x4] sm:$0xf] %v344
      %vm351 = vcmask 1040384
      %vm352 = vsmask.f32 256
      %vm353 = vmand %vm351, %vm352
      %v354 = vld [vmem:[%s170 + $0x8] sm:$0x1]
      %v355 = vsel %vm353, %v345, %v354
      %356 = vst [vmem:[%s170 + $0x8] sm:$0x1] %v355
      %p357 = scmp.lt.s32.totalorder %s14, 1
      %s358 = scalar_select %p357, %s14, 1
      %s359 = smul.addr %s358, 3
      %s360 = smul.addr %s359, 4
      %s361 = scalar_lea.vmem %s3, %s360
      // Predicated region
      $region33: #{forward.4} parent=31 // pred_check
        %p362 = pneg %p100
      $region34: #{forward.4} parent=31 // pred_check_branch
        %364 = sbr.rel (%p362) target = $region36
      $region35: #{forward.4} parent=31 // pred_region
        _
      $region36: #{forward.4} parent=31 // pred_fallthru
        _
    $region32: #{forward.4} parent=5 // pred_fallthru
      _
    %p365 = scmp.le.s32.totalorder 2, %s9
    // Predicated region
    $region37: #{forward.4} parent=5 // pred_check
      %p366 = pneg %p365
    $region38: #{forward.4} parent=5 // pred_check_branch
      %368 = sbr.rel (%p366) target = $region40
    $region39: #{forward.4} parent=5 // pred_region
      %s369 = ssub.s32 %s9, 2
      // Predicated region
      $region41: #{forward.4} parent=39 // pred_check
        %p370 = pneg %p106
      $region42: #{forward.4} parent=39 // pred_check_branch
        %372 = sbr.rel (%p370) target = $region44
      $region43: #{forward.4} parent=39 // pred_region
        %p373 = scmp.lt.s32.totalorder %s15, 1
        %s374 = scalar_select %p373, %s15, 1
        %s375 = smul.addr %s374, 3
        %s376 = smul.addr %s375, 4
        %s377 = scalar_lea.vmem %s3, %s376
      $region44: #{forward.4} parent=39 // pred_fallthru
        _
    $region40: #{forward.4} parent=5 // pred_fallthru
      _
  $region6: #{forward.4} parent=0 // loop_footer
    %s13 = sadd.s32 1, %s9
  $region7: #{forward.4} parent=0 // loop_footer_branch
    %8 = sbr.rel target = $region3
  $region8: #{forward.4} parent=0 // loop_exit
    _

// kernel: forward.7
$region0: #{forward.7}
  #allocation0 [shape = 'u32[]', space=smem, size = 0x4, offset = 0x4, fixed_abs, tag = 'smem constant byte address 0x4 - core index']
  #allocation1 [shape = 'u32[144,128]{1,0:T(1,128)}', space=vmem, size = 0x12000, scoped, tag = 'internal scratch']
  %s0 = inlined_call_operand.vmem [shape: bf16[2,17,128], index: 0, kind: input, shape index: {}]
  %s1 = inlined_call_operand.vmem [shape: bf16[128,32], index: 1, kind: input, shape index: {}]
  %s2 = inlined_call_operand.vmem [shape: f32[1,32], index: 2, kind: input, shape index: {}]
  %s3 = inlined_call_operand.vmem [shape: bf16[32,16], index: 3, kind: input, shape index: {}]
  %s4 = inlined_call_operand.vmem [shape: f32[1,16], index: 4, kind: input, shape index: {}]
  %s5 = inlined_call_operand.hbm [shape: f32[2,1,32], index: 5, kind: output, shape index: {0}]
  %s6 = inlined_call_operand.hbm [shape: f32[2,1,16], index: 6, kind: output, shape index: {1}]
  %7 = xla_tuple %s5, %s6
  %s8 = sld [smem:[#allocation0]]
  $region61: #{forward.7} parent=0
    _
  %s10 = ssub.s32 1, %s8
  %s11 = scalar_select 0, %s10, %s8
  $region1: #{forward.7} parent=0
    #allocation2 [shape = 'u8[1024]{0}', space=vmem, size = 0x400, scoped, tag = 'output window, operand 0']
    #allocation3 [shape = 's32[2]{0}', space=sflag, size = 0x8, scoped, tag = 'scoped memory for forward.7']
    #allocation4 [shape = 'u8[1024]{0}', space=vmem, size = 0x400, scoped, tag = 'output window, operand 1']
    #allocation5 [shape = 's32[2]{0}', space=sflag, size = 0x8, scoped, tag = 'scoped memory for forward.7']
    %12 = vsyncpa [#allocation3], 0
    %s13 = scalar_lea.sflag [#allocation3], 1
    %14 = vsyncpa %s13, 0
    %15 = vsyncpa [#allocation5], 0
    %s16 = scalar_lea.sflag [#allocation5], 1
    %17 = vsyncpa %s16, 0
    loop: start=0, step=1, limit=4
    $region2: #{forward.7} parent=1 // loop_pre_header
      _
    $region3: #{forward.7} parent=1 // loop_header
      %s19 = sphi 0, %s23
      %p20 = scmp.ge.s32.totalorder %s19, 4
      %s29 = sphi 0, %s31
      %s32 = sphi 0, %s29
      %s33 = sphi 0, %s32
      %s49 = sphi 0, %s33
      %s53 = sphi 0, %s53
      %s55 = sphi 0, %s53
      %s56 = sphi 0, %s55
      %s70 = sphi 0, %s56
      %s74 = sphi 0, %s74
      %s76 = sphi 0, %s74
      %s77 = sphi 0, %s76
      %s91 = sphi 0, %s77
      %s95 = sphi 0, %s95
      %s97 = sphi 0, %s95
      %s98 = sphi 0, %s97
      %s112 = sphi 0, %s98
      %s116 = sphi 0, %s116
      %s118 = sphi 0, %s116
      %s119 = sphi 0, %s118
      %s133 = sphi 0, %s119
      %s139 = sphi 0, %s141
      %s142 = sphi 0, %s139
      %s143 = sphi 0, %s142
      %s159 = sphi 0, %s143
      %s165 = sphi 0, %s167
      %s168 = sphi 0, %s165
      %s169 = sphi 0, %s168
      %s185 = sphi 0, %s169
    $region4: #{forward.7} parent=1 // loop_header_branch
      %22 = sbr.rel (%p20) target = $region8
    $region5: #{forward.7} parent=1 // loop_body
      %s24 = ssub.s32 %s19, 1
      %s25 = ssub.s32 %s19, 2
      %s26 = sadd.s32 %s19, 1
      %s27 = ssub.s32 %s19, %s26
      %p28 = scmp.eq.s32.totalorder %s27, 0
      %s30 = sadd.s32 %s29, 1
      %s31 = scalar_select %p28, %s29, %s30
      %p34 = pneg %p28
      %p35 = scmp.eq.s32.totalorder %s19, 1
      %p36 = por %p34, %p35
      %p37 = scmp.ne.s32.totalorder %s29, %s32
      %p38 = scmp.eq.s32.totalorder %s19, 0
      %p39 = por %p37, %p38
      %p40 = scmp.ne.s32.totalorder %s29, %s32
      %p41 = scmp.eq.s32.totalorder %s24, 1
      %p42 = por %p40, %p41
      %p43 = scmp.ne.s32.totalorder %s32, %s33
      %p44 = scmp.eq.s32.totalorder %s24, 0
      %p45 = por %p43, %p44
      %p46 = scmp.ne.s32.totalorder %s32, %s33
      %p47 = scmp.eq.s32.totalorder %s25, 1
      %p48 = por %p46, %p47
      %p50 = scmp.ne.s32.totalorder %s33, %s49
      %p51 = scmp.eq.s32.totalorder %s25, 0
      %p52 = por %p50, %p51
      %s54 = sadd.s32 %s53, 1
      %p57 = scmp.eq.s32.totalorder %s19, 1
      %p58 = scmp.ne.s32.totalorder %s53, %s55
      %p59 = scmp.eq.s32.totalorder %s19, 0
      %p60 = por %p58, %p59
      %p61 = scmp.ne.s32.totalorder %s53, %s55
      %p62 = scmp.eq.s32.totalorder %s24, 1
      %p63 = por %p61, %p62
      %p64 = scmp.ne.s32.totalorder %s55, %s56
      %p65 = scmp.eq.s32.totalorder %s24, 0
      %p66 = por %p64, %p65
      %p67 = scmp.ne.s32.totalorder %s55, %s56
      %p68 = scmp.eq.s32.totalorder %s25, 1
      %p69 = por %p67, %p68
      %p71 = scmp.ne.s32.totalorder %s56, %s70
      %p72 = scmp.eq.s32.totalorder %s25, 0
      %p73 = por %p71, %p72
      %s75 = sadd.s32 %s74, 1
      %p78 = scmp.eq.s32.totalorder %s19, 1
      %p79 = scmp.ne.s32.totalorder %s74, %s76
      %p80 = scmp.eq.s32.totalorder %s19, 0
      %p81 = por %p79, %p80
      %p82 = scmp.ne.s32.totalorder %s74, %s76
      %p83 = scmp.eq.s32.totalorder %s24, 1
      %p84 = por %p82, %p83
      %p85 = scmp.ne.s32.totalorder %s76, %s77
      %p86 = scmp.eq.s32.totalorder %s24, 0
      %p87 = por %p85, %p86
      %p88 = scmp.ne.s32.totalorder %s76, %s77
      %p89 = scmp.eq.s32.totalorder %s25, 1
      %p90 = por %p88, %p89
      %p92 = scmp.ne.s32.totalorder %s77, %s91
      %p93 = scmp.eq.s32.totalorder %s25, 0
      %p94 = por %p92, %p93
      %s96 = sadd.s32 %s95, 1
      %p99 = scmp.eq.s32.totalorder %s19, 1
      %p100 = scmp.ne.s32.totalorder %s95, %s97
      %p101 = scmp.eq.s32.totalorder %s19, 0
      %p102 = por %p100, %p101
      %p103 = scmp.ne.s32.totalorder %s95, %s97
      %p104 = scmp.eq.s32.totalorder %s24, 1
      %p105 = por %p103, %p104
      %p106 = scmp.ne.s32.totalorder %s97, %s98
      %p107 = scmp.eq.s32.totalorder %s24, 0
      %p108 = por %p106, %p107
      %p109 = scmp.ne.s32.totalorder %s97, %s98
      %p110 = scmp.eq.s32.totalorder %s25, 1
      %p111 = por %p109, %p110
      %p113 = scmp.ne.s32.totalorder %s98, %s112
      %p114 = scmp.eq.s32.totalorder %s25, 0
      %p115 = por %p113, %p114
      %s117 = sadd.s32 %s116, 1
      %p120 = scmp.eq.s32.totalorder %s19, 1
      %p121 = scmp.ne.s32.totalorder %s116, %s118
      %p122 = scmp.eq.s32.totalorder %s19, 0
      %p123 = por %p121, %p122
      %p124 = scmp.ne.s32.totalorder %s116, %s118
      %p125 = scmp.eq.s32.totalorder %s24, 1
      %p126 = por %p124, %p125
      %p127 = scmp.ne.s32.totalorder %s118, %s119
      %p128 = scmp.eq.s32.totalorder %s24, 0
      %p129 = por %p127, %p128
      %p130 = scmp.ne.s32.totalorder %s118, %s119
      %p131 = scmp.eq.s32.totalorder %s25, 1
      %p132 = por %p130, %p131
      %p134 = scmp.ne.s32.totalorder %s119, %s133
      %p135 = scmp.eq.s32.totalorder %s25, 0
      %p136 = por %p134, %p135
      %s137 = ssub.s32 %s19, %s26
      %p138 = scmp.eq.s32.totalorder %s137, 0
      %s140 = sadd.s32 %s139, 1
      %s141 = scalar_select %p138, %s139, %s140
      %p144 = pneg %p138
      %p145 = scmp.eq.s32.totalorder %s19, 1
      %p146 = por %p144, %p145
      %p147 = scmp.ne.s32.totalorder %s139, %s142
      %p148 = scmp.eq.s32.totalorder %s19, 0
      %p149 = por %p147, %p148
      %p150 = scmp.ne.s32.totalorder %s139, %s142
      %p151 = scmp.eq.s32.totalorder %s24, 1
      %p152 = por %p150, %p151
      %p153 = scmp.ne.s32.totalorder %s142, %s143
      %p154 = scmp.eq.s32.totalorder %s24, 0
      %p155 = por %p153, %p154
      %p156 = scmp.ne.s32.totalorder %s142, %s143
      %p157 = scmp.eq.s32.totalorder %s25, 1
      %p158 = por %p156, %p157
      %p160 = scmp.ne.s32.totalorder %s143, %s159
      %p161 = scmp.eq.s32.totalorder %s25, 0
      %p162 = por %p160, %p161
      %s163 = ssub.s32 %s19, %s26
      %p164 = scmp.eq.s32.totalorder %s163, 0
      %s166 = sadd.s32 %s165, 1
      %s167 = scalar_select %p164, %s165, %s166
      %p170 = pneg %p164
      %p171 = scmp.eq.s32.totalorder %s19, 1
      %p172 = por %p170, %p171
      %p173 = scmp.ne.s32.totalorder %s165, %s168
      %p174 = scmp.eq.s32.totalorder %s19, 0
      %p175 = por %p173, %p174
      %p176 = scmp.ne.s32.totalorder %s165, %s168
      %p177 = scmp.eq.s32.totalorder %s24, 1
      %p178 = por %p176, %p177
      %p179 = scmp.ne.s32.totalorder %s168, %s169
      %p180 = scmp.eq.s32.totalorder %s24, 0
      %p181 = por %p179, %p180
      %p182 = scmp.ne.s32.totalorder %s168, %s169
      %p183 = scmp.eq.s32.totalorder %s25, 1
      %p184 = por %p182, %p183
      %p186 = scmp.ne.s32.totalorder %s169, %s185
      %p187 = scmp.eq.s32.totalorder %s25, 0
      %p188 = por %p186, %p187
      %p189 = scmp.le.s32.totalorder 1, %s19
      %p190 = scmp.lt.s32.totalorder %s19, 3
      %p191 = pnand %p189, %p190
      %p192 = pneg %p191
      // Predicated region
      $region9: #{forward.7} parent=5 // pred_check
        _
      $region10: #{forward.7} parent=5 // pred_check_branch
        %194 = sbr.rel (%p191) target = $region12
      $region11: #{forward.7} parent=5 // pred_region
        %s195 = ssub.s32 %s19, 1
        // Predicated region
        $region13: #{forward.7} parent=11 // pred_check
          %p196 = pneg %p66
        $region14: #{forward.7} parent=11 // pred_check_branch
          %198 = sbr.rel (%p196) target = $region16
        $region15: #{forward.7} parent=11 // pred_region
          _
        $region16: #{forward.7} parent=11 // pred_fallthru
          _
        // Predicated region
        $region17: #{forward.7} parent=11 // pred_check
          %p199 = pneg %p87
        $region18: #{forward.7} parent=11 // pred_check_branch
          %201 = sbr.rel (%p199) target = $region20
        $region19: #{forward.7} parent=11 // pred_region
          _
        $region20: #{forward.7} parent=11 // pred_fallthru
          _
        // Predicated region
        $region21: #{forward.7} parent=11 // pred_check
          %p202 = pneg %p108
        $region22: #{forward.7} parent=11 // pred_check_branch
          %204 = sbr.rel (%p202) target = $region24
        $region23: #{forward.7} parent=11 // pred_region
          _
        $region24: #{forward.7} parent=11 // pred_fallthru
          _
        // Predicated region
        $region25: #{forward.7} parent=11 // pred_check
          %p205 = pneg %p129
        $region26: #{forward.7} parent=11 // pred_check_branch
          %207 = sbr.rel (%p205) target = $region28
        $region27: #{forward.7} parent=11 // pred_region
          _
        $region28: #{forward.7} parent=11 // pred_fallthru
          _
      $region12: #{forward.7} parent=5 // pred_fallthru
        _
      %p208 = scmp.lt.s32.totalorder %s19, 2
      // Predicated region
      $region29: #{forward.7} parent=5 // pred_check
        %p209 = pneg %p208
      $region30: #{forward.7} parent=5 // pred_check_branch
        %211 = sbr.rel (%p209) target = $region32
      $region31: #{forward.7} parent=5 // pred_region
        // Predicated region
        $region33: #{forward.7} parent=31 // pred_check
          %p212 = pneg %p39
        $region34: #{forward.7} parent=31 // pred_check_branch
          %214 = sbr.rel (%p212) target = $region36
        $region35: #{forward.7} parent=31 // pred_region
          %p215 = scmp.lt.s32.totalorder %s19, 1
          %s216 = scalar_select %p215, %s19, 1
          %s217 = smul.addr %s216, 3
          %s218 = smul.addr %s217, 4
          %s219 = scalar_lea.vmem %s0, %s218
        $region36: #{forward.7} parent=31 // pred_fallthru
          _
      $region32: #{forward.7} parent=5 // pred_fallthru
        _
      %p220 = scmp.le.s32.totalorder 1, %s19
      %p221 = scmp.lt.s32.totalorder %s19, 3
      %p222 = pnand %p220, %p221
      %p223 = pneg %p222
      // Predicated region
      $region37: #{forward.7} parent=5 // pred_check
        _
      $region38: #{forward.7} parent=5 // pred_check_branch
        %225 = sbr.rel (%p222) target = $region40
      $region39: #{forward.7} parent=5 // pred_region
        %s226 = ssub.s32 %s19, 1
        %p227 = scmp.lt.s32.totalorder %s24, 1
        %s228 = scalar_select %p227, %s24, 1
        %s229 = smul.addr %s228, 3
        %s230 = smul.addr %s229, 4
        %s231 = scalar_lea.vmem %s0, %s230
        %p232 = pneg %p45
        %p233 = pneg %p42
        %p234 = pneg %p66
        %p235 = pneg %p63
        %p236 = pneg %p87
        %p237 = pneg %p84
        %p238 = pneg %p108
        %p239 = pneg %p105
        %p240 = pneg %p129
        %p241 = pneg %p126
        %p242 = pneg %p155
        %p243 = pneg %p152
        %s244 = sand.u32 %s142, 1
        %s245 = scalar_lea.sflag [#allocation3], %s244
        %s246 = sand.u32 %s142, 1
        %s247 = scalar_lea.vmem [#allocation2], %s246
        %p248 = pneg %p181
        %p249 = pneg %p178
        %s250 = sand.u32 %s168, 1
        %s251 = scalar_lea.sflag [#allocation5], %s250
        %s252 = sand.u32 %s168, 1
        %s253 = scalar_lea.vmem [#allocation4], %s252
        %p254 = scmp.lt.s32.totalorder %s24, 1
        %s255 = scalar_select %p254, %s24, 1
        %s256 = smul.addr %s255, 3
        %s257 = smul.addr %s256, 4
        %s258 = scalar_lea.vmem %s0, %s257
        %v260 = vld [vmem:[%s258] sm:$0xf]
        %v261 = vunpack.c.l.bf16 %v260
        %vm262 = vcmask 1040384
        %v263 = vsel %vm262, %v261, 0.0
        %264 = vadd.xlane.f32.xlu0 %v263
        %v265 = vpop.xlane.xlu0 %264
        %v266 = vrcp.pop 128.0
        %v267 = vmul.f32 %v265, %v266
        %v268 = vsub.f32 %v261, %v267
        %v269 = vmul.f32 %v268, %v268
        %v270 = vsel %vm262, %v269, 0.0
        %271 = vadd.xlane.f32.xlu0 %v270
        %v272 = vpop.xlane.xlu0 %271
        %v273 = vmul.f32 %v272, %v266
        %v274 = vadd.f32 %v273, 1e-06
        %v275 = vrsqrt.pop %v274
        %v276 = vmul.f32 %v268, %v275
        %v277 = vpack.c.bf16 %v276, %v276
        %v278 = vld [vmem:[%s1] sm:$0xf]
        %v279 = vld [vmem:[%s1 + $0x4] sm:$0xf]
        %v280 = vld [vmem:[%s1 + $0x8] sm:$0xf]
        %v281 = vld [vmem:[%s1 + $0xc] sm:$0xf]
        %v282 = vld [vmem:[%s1 + $0x10] sm:$0xf]
        %v283 = vld [vmem:[%s1 + $0x14] sm:$0xf]
        %v284 = vld [vmem:[%s1 + $0x18] sm:$0xf]
        %v285 = vld [vmem:[%s1 + $0x1c] sm:$0xf]
        %v286 = vld [vmem:[%s1 + $0x20] sm:$0xf]
        %v287 = vld [vmem:[%s1 + $0x24] sm:$0xf]
        %v288 = vld [vmem:[%s1 + $0x28] sm:$0xf]
        %v289 = vld [vmem:[%s1 + $0x2c] sm:$0xf]
        %v290 = vld [vmem:[%s1 + $0x30] sm:$0xf]
        %v291 = vld [vmem:[%s1 + $0x34] sm:$0xf]
        %v292 = vld [vmem:[%s1 + $0x38] sm:$0xf]
        %v293 = vld [vmem:[%s1 + $0x3c] sm:$0xf]
        %v294 = vld [vmem:[%s2] sm:$0x1]
        %v311 = vunpack.c.l.b16 %v278
        %v312 = vunpack.c.l.b16 %v279
        %v313 = vunpack.c.l.b16 %v280
        %v314 = vunpack.c.l.b16 %v281
        %v315 = vunpack.c.l.b16 %v282
        %v316 = vunpack.c.l.b16 %v283
        %v317 = vunpack.c.l.b16 %v284
        %v318 = vunpack.c.l.b16 %v285
        %v319 = vunpack.c.l.b16 %v286
        %v320 = vunpack.c.l.b16 %v287
        %v321 = vunpack.c.l.b16 %v288
        %v322 = vunpack.c.l.b16 %v289
        %v323 = vunpack.c.l.b16 %v290
        %v324 = vunpack.c.l.b16 %v291
        %v325 = vunpack.c.l.b16 %v292
        %v326 = vunpack.c.l.b16 %v293
        %v327 = vpack.c.b16 %v312, %v311
        %v328 = vpack.c.b16 %v314, %v313
        %v329 = vpack.c.b16 %v316, %v315
        %v330 = vpack.c.b16 %v318, %v317
        %v331 = vpack.c.b16 %v320, %v319
        %v332 = vpack.c.b16 %v322, %v321
        %v333 = vpack.c.b16 %v324, %v323
        %v334 = vpack.c.b16 %v326, %v325
        %343 = vmatprep.subr.bf16.mxu0 0
        %344 = vmatpush1.bf16.msra.mxu0 %v327
        %345 = vmatprep.subr.bf16.mxu0 0
        %346 = vmatpush1.bf16.msra.mxu0 %v328
        %347 = vmatprep.subr.bf16.mxu0 0
        %348 = vmatpush1.bf16.msra.mxu0 %v329
        %349 = vmatprep.subr.bf16.mxu0 0
        %350 = vmatpush1.bf16.msra.mxu0 %v330
        %351 = vmatprep.subr.bf16.mxu0 0
        %352 = vmatpush1.bf16.msra.mxu0 %v331
        %353 = vmatprep.subr.bf16.mxu0 0
        %354 = vmatpush1.bf16.msra.mxu0 %v332
        %355 = vmatprep.subr.bf16.mxu0 0
        %356 = vmatpush1.bf16.msra.mxu0 %v333
        %357 = vmatprep.subr.bf16.mxu0 0
        %358 = vmatpush1.bf16.msra.mxu0 %v334
        %359 = vmatprep.subr.bf16.mxu0 0
        %360 = vmatpush1.bf16.msra.mxu0 0
        %361 = vmatprep.subr.bf16.mxu0 0
        %362 = vmatpush1.bf16.msra.mxu0 0
        %363 = vmatprep.subr.bf16.mxu0 0
        %364 = vmatpush1.bf16.msra.mxu0 0
        %365 = vmatprep.subr.bf16.mxu0 0
        %366 = vmatpush1.bf16.msra.mxu0 0
        %367 = vmatprep.subr.bf16.mxu0 0
        %368 = vmatpush1.bf16.msra.mxu0 0
        %369 = vmatprep.subr.bf16.mxu0 0
        %370 = vmatpush1.bf16.msra.mxu0 0
        %371 = vmatprep.subr.bf16.mxu0 0
        %372 = vmatpush1.bf16.msra.mxu0 0
        %373 = vmatprep.subr.bf16.mxu0 0
        %374 = vmatpush1.bf16.msra.mxu0 0
        %375 = vmatprep.mubr.bf16.mxu0 0
        %376 = vmatmul.mubr.bf16.gmra.mrb[0].mxu0 %v277
        %v377 = vpop.f32.mrb[0].mxu0
        %v378 = vadd.f32 %v294, %v377
        %v379 = vpop.f32.mrb[0].mxu0
        %v380 = vpop.f32.mrb[0].mxu0
        %v381 = vpop.f32.mrb[0].mxu0
        %382 = vdwg.mxu0
        %vm383 = vcmask 253952
        %384 = vst.msk [vmem:[%s247] sm:$0x1] %vm383, %v378
        %v385 = vmul.f32 %v378, %v378
        %v386 = vsel %vm383, %v385, 0.0
        %387 = vadd.xlane.f32.xlu0 %v386
        %v388 = vpop.xlane.xlu0 %387
        %v389 = vrsqrt.pop %v388
        %v390 = vmul.f32 %v388, %v389
        %vm391 = vcmp.eq.f32.partialorder %v388, inf
        %v392 = vsel %vm391, %v388, %v390
        %vm393 = vcmp.eq.f32.partialorder %v388, 0.0
        %v394 = vand.u32 %v388, 2147483648
        %v395 = vsel %vm393, %v394, %v392
        %v396 = vmax.f32 %v395, 1e-12
        %v397 = vrcp.pop %v396
        %v398 = vmul.f32 %v378, %v397
        %v399 = vpack.c.bf16 %v398, %v398
        %v400 = vld [vmem:[%s3] sm:$0xf]
        %v401 = vld [vmem:[%s3 + $0x4] sm:$0xf]
        %v402 = vld [vmem:[%s3 + $0x8] sm:$0xf]
        %v403 = vld [vmem:[%s3 + $0xc] sm:$0xf]
        %v404 = vld [vmem:[%s4] sm:$0x1]
        %v409 = vunpack.c.l.b16 %v400
        %v410 = vunpack.c.l.b16 %v401
        %v411 = vunpack.c.l.b16 %v402
        %v412 = vunpack.c.l.b16 %v403
        %v413 = vpack.c.b16 %v410, %v409
        %v414 = vpack.c.b16 %v412, %v411
        %vm417 = vcmask 261120
        %v419 = vsel %vm417, %v399, 0
        %421 = vmatprep.subr.bf16.mxu0 0
        %422 = vmatpush1.bf16.msra.mxu0 %v413
        %423 = vmatprep.subr.bf16.mxu0 0
        %424 = vmatpush1.bf16.msra.mxu0 %v414
        %425 = vmatprep.subr.bf16.mxu0 0
        %426 = vmatpush1.bf16.msra.mxu0 0
        %427 = vmatprep.subr.bf16.mxu0 0
        %428 = vmatpush1.bf16.msra.mxu0 0
        %429 = vmatprep.subr.bf16.mxu0 0
        %430 = vmatpush1.bf16.msra.mxu0 0
        %431 = vmatprep.subr.bf16.mxu0 0
        %432 = vmatpush1.bf16.msra.mxu0 0
        %433 = vmatprep.subr.bf16.mxu0 0
        %434 = vmatpush1.bf16.msra.mxu0 0
        %435 = vmatprep.subr.bf16.mxu0 0
        %436 = vmatpush1.bf16.msra.mxu0 0
        %437 = vmatprep.subr.bf16.mxu0 0
        %438 = vmatpush1.bf16.msra.mxu0 0
        %439 = vmatprep.subr.bf16.mxu0 0
        %440 = vmatpush1.bf16.msra.mxu0 0
        %441 = vmatprep.subr.bf16.mxu0 0
        %442 = vmatpush1.bf16.msra.mxu0 0
        %443 = vmatprep.subr.bf16.mxu0 0
        %444 = vmatpush1.bf16.msra.mxu0 0
        %445 = vmatprep.subr.bf16.mxu0 0
        %446 = vmatpush1.bf16.msra.mxu0 0
        %447 = vmatprep.subr.bf16.mxu0 0
        %448 = vmatpush1.bf16.msra.mxu0 0
        %449 = vmatprep.subr.bf16.mxu0 0
        %450 = vmatpush1.bf16.msra.mxu0 0
        %451 = vmatprep.subr.bf16.mxu0 0
        %452 = vmatpush1.bf16.msra.mxu0 0
        %453 = vmatprep.mubr.bf16.mxu0 0
        %454 = vmatmul.mubr.bf16.gmra.mrb[0].mxu0 %v419
        %v455 = vpop.f32.mrb[0].mxu0
        %v456 = vadd.f32 %v404, %v455
        %v457 = vpop.f32.mrb[0].mxu0
        %v458 = vpop.f32.mrb[0].mxu0
        %v459 = vpop.f32.mrb[0].mxu0
        %460 = vdwg.mxu0
        %vm461 = vcmask 122880
        %462 = vst.msk [vmem:[%s253] sm:$0x1] %vm461, %v456
        %s463 = sand.u32 %s142, 1
        %s464 = scalar_lea.sflag [#allocation3], %s463
        %s465 = sand.u32 %s142, 1
        %s466 = scalar_lea.vmem [#allocation2], %s465
        %s467 = sand.u32 %s168, 1
        %s468 = scalar_lea.sflag [#allocation5], %s467
        %s469 = sand.u32 %s168, 1
        %s470 = scalar_lea.vmem [#allocation4], %s469
        // Predicated region
        $region41: #{forward.7} parent=39 // pred_check
          %p471 = pneg %p152
        $region42: #{forward.7} parent=39 // pred_check_branch
          %473 = sbr.rel (%p471) target = $region44
        $region43: #{forward.7} parent=39 // pred_region
          %s475 = ssub.s32 16, 16
          %476 = vsyncadd %s464, %s475
          %s477 = smul.addr %s24, 16
          %s478 = scalar_lea.hbm %s5, %s477
          %s480 = sshll.u32 %s466, 4
          %s481 = int_to_ptr.vmem [resolvable:$true] %s480
          %483 = dma.vmem_to_hbm [thread:$0]  %s481, 16, %s478, %s464
        $region44: #{forward.7} parent=39 // pred_fallthru
          _
        // Predicated region
        $region45: #{forward.7} parent=39 // pred_check
          %p484 = pneg %p178
        $region46: #{forward.7} parent=39 // pred_check_branch
          %486 = sbr.rel (%p484) target = $region48
        $region47: #{forward.7} parent=39 // pred_region
          %s488 = ssub.s32 16, 16
          %489 = vsyncadd %s468, %s488
          %s490 = smul.addr %s24, 16
          %s491 = scalar_lea.hbm %s6, %s490
          %s493 = sshll.u32 %s470, 4
          %s494 = int_to_ptr.vmem [resolvable:$true] %s493
          %496 = dma.vmem_to_hbm [thread:$0]  %s494, 16, %s491, %s468
        $region48: #{forward.7} parent=39 // pred_fallthru
          _
      $region40: #{forward.7} parent=5 // pred_fallthru
        _
      %p497 = scmp.le.s32.totalorder 2, %s19
      // Predicated region
      $region49: #{forward.7} parent=5 // pred_check
        %p498 = pneg %p497
      $region50: #{forward.7} parent=5 // pred_check_branch
        %500 = sbr.rel (%p498) target = $region52
      $region51: #{forward.7} parent=5 // pred_region
        %s501 = ssub.s32 %s19, 2
        // Predicated region
        $region53: #{forward.7} parent=51 // pred_check
          %p502 = pneg %p158
        $region54: #{forward.7} parent=51 // pred_check_branch
          %504 = sbr.rel (%p502) target = $region56
        $region55: #{forward.7} parent=51 // pred_region
          %s505 = sand.u32 %s143, 1
          %s506 = scalar_lea.sflag [#allocation3], %s505
          %s507 = sand.u32 %s143, 1
          %s508 = scalar_lea.vmem [#allocation2], %s507
          %509 = dma.done %s506, 16
        $region56: #{forward.7} parent=51 // pred_fallthru
          _
        // Predicated region
        $region57: #{forward.7} parent=51 // pred_check
          %p510 = pneg %p184
        $region58: #{forward.7} parent=51 // pred_check_branch
          %512 = sbr.rel (%p510) target = $region60
        $region59: #{forward.7} parent=51 // pred_region
          %s513 = sand.u32 %s169, 1
          %s514 = scalar_lea.sflag [#allocation5], %s513
          %s515 = sand.u32 %s169, 1
          %s516 = scalar_lea.vmem [#allocation4], %s515
          %517 = dma.done %s514, 16
        $region60: #{forward.7} parent=51 // pred_fallthru
          _
      $region52: #{forward.7} parent=5 // pred_fallthru
        _
    $region6: #{forward.7} parent=1 // loop_footer
      %s23 = sadd.s32 1, %s19
    $region7: #{forward.7} parent=1 // loop_footer_branch
      %18 = sbr.rel target = $region3
    $region8: #{forward.7} parent=1 // loop_exit
      _
    %518 = vsyncpa [#allocation3], 1
    %s519 = scalar_lea.sflag [#allocation3], 1
    %520 = vsyncpa %s519, 1
    %521 = vsyncpa [#allocation5], 1
    %s522 = scalar_lea.sflag [#allocation5], 1
    %523 = vsyncpa %s522, 1

// kernel: forward.5
$region0: #{forward.5}
  #allocation0 [shape = 'u32[]', space=smem, size = 0x4, offset = 0x4, fixed_abs, tag = 'smem constant byte address 0x4 - core index']
  #allocation1 [shape = 'u32[144,128]{1,0:T(1,128)}', space=vmem, size = 0x12000, scoped, tag = 'internal scratch']
  %s0 = inlined_call_operand.vmem [shape: bf16[2,17,128], index: 0, kind: input, shape index: {}]
  %s1 = inlined_call_operand.vmem [shape: bf16[128,384], index: 1, kind: input, shape index: {}]
  %s2 = inlined_call_operand.vmem [shape: f32[1,384], index: 2, kind: input, shape index: {}]
  %s3 = inlined_call_operand.vmem [shape: bf16[128,128], index: 3, kind: input, shape index: {}]
  %s4 = inlined_call_operand.vmem [shape: f32[1,128], index: 4, kind: input, shape index: {}]
  %s5 = inlined_call_operand.vmem [shape: bf16[128,512], index: 5, kind: input, shape index: {}]
  %s6 = inlined_call_operand.vmem [shape: f32[1,512], index: 6, kind: input, shape index: {}]
  %s7 = inlined_call_operand.vmem [shape: bf16[512,128], index: 7, kind: input, shape index: {}]
  %s8 = inlined_call_operand.vmem [shape: f32[1,128], index: 8, kind: input, shape index: {}]
  %s9 = inlined_call_operand.vmem [shape: bf16[2,17,128], index: 9, kind: output, shape index: {}]
  %s10 = sld [smem:[#allocation0]]
  $region69: #{forward.5} parent=0
    _
  %s12 = ssub.s32 1, %s10
  %s13 = scalar_select 0, %s12, %s10
  loop: start=0, step=1, limit=4
  $region2: #{forward.5} parent=0 // loop_pre_header
    _
  $region3: #{forward.5} parent=0 // loop_header
    %s15 = sphi 0, %s19
    %p16 = scmp.ge.s32.totalorder %s15, 4
    %s25 = sphi 0, %s27
    %s28 = sphi 0, %s25
    %s29 = sphi 0, %s28
    %s45 = sphi 0, %s29
    %s49 = sphi 0, %s49
    %s51 = sphi 0, %s49
    %s52 = sphi 0, %s51
    %s66 = sphi 0, %s52
    %s70 = sphi 0, %s70
    %s72 = sphi 0, %s70
    %s73 = sphi 0, %s72
    %s87 = sphi 0, %s73
    %s91 = sphi 0, %s91
    %s93 = sphi 0, %s91
    %s94 = sphi 0, %s93
    %s108 = sphi 0, %s94
    %s112 = sphi 0, %s112
    %s114 = sphi 0, %s112
    %s115 = sphi 0, %s114
    %s129 = sphi 0, %s115
    %s133 = sphi 0, %s133
    %s135 = sphi 0, %s133
    %s136 = sphi 0, %s135
    %s150 = sphi 0, %s136
    %s154 = sphi 0, %s154
    %s156 = sphi 0, %s154
    %s157 = sphi 0, %s156
    %s171 = sphi 0, %s157
    %s175 = sphi 0, %s175
    %s177 = sphi 0, %s175
    %s178 = sphi 0, %s177
    %s192 = sphi 0, %s178
    %s196 = sphi 0, %s196
    %s198 = sphi 0, %s196
    %s199 = sphi 0, %s198
    %s213 = sphi 0, %s199
    %s219 = sphi 0, %s221
    %s222 = sphi 0, %s219
    %s223 = sphi 0, %s222
    %s239 = sphi 0, %s223
  $region4: #{forward.5} parent=0 // loop_header_branch
    %18 = sbr.rel (%p16) target = $region8
  $region5: #{forward.5} parent=0 // loop_body
    %s20 = ssub.s32 %s15, 1
    %s21 = ssub.s32 %s15, 2
    %s22 = sadd.s32 %s15, 1
    %s23 = ssub.s32 %s15, %s22
    %p24 = scmp.eq.s32.totalorder %s23, 0
    %s26 = sadd.s32 %s25, 1
    %s27 = scalar_select %p24, %s25, %s26
    %p30 = pneg %p24
    %p31 = scmp.eq.s32.totalorder %s15, 1
    %p32 = por %p30, %p31
    %p33 = scmp.ne.s32.totalorder %s25, %s28
    %p34 = scmp.eq.s32.totalorder %s15, 0
    %p35 = por %p33, %p34
    %p36 = scmp.ne.s32.totalorder %s25, %s28
    %p37 = scmp.eq.s32.totalorder %s20, 1
    %p38 = por %p36, %p37
    %p39 = scmp.ne.s32.totalorder %s28, %s29
    %p40 = scmp.eq.s32.totalorder %s20, 0
    %p41 = por %p39, %p40
    %p42 = scmp.ne.s32.totalorder %s28, %s29
    %p43 = scmp.eq.s32.totalorder %s21, 1
    %p44 = por %p42, %p43
    %p46 = scmp.ne.s32.totalorder %s29, %s45
    %p47 = scmp.eq.s32.totalorder %s21, 0
    %p48 = por %p46, %p47
    %s50 = sadd.s32 %s49, 1
    %p53 = scmp.eq.s32.totalorder %s15, 1
    %p54 = scmp.ne.s32.totalorder %s49, %s51
    %p55 = scmp.eq.s32.totalorder %s15, 0
    %p56 = por %p54, %p55
    %p57 = scmp.ne.s32.totalorder %s49, %s51
    %p58 = scmp.eq.s32.totalorder %s20, 1
    %p59 = por %p57, %p58
    %p60 = scmp.ne.s32.totalorder %s51, %s52
    %p61 = scmp.eq.s32.totalorder %s20, 0
    %p62 = por %p60, %p61
    %p63 = scmp.ne.s32.totalorder %s51, %s52
    %p64 = scmp.eq.s32.totalorder %s21, 1
    %p65 = por %p63, %p64
    %p67 = scmp.ne.s32.totalorder %s52, %s66
    %p68 = scmp.eq.s32.totalorder %s21, 0
    %p69 = por %p67, %p68
    %s71 = sadd.s32 %s70, 1
    %p74 = scmp.eq.s32.totalorder %s15, 1
    %p75 = scmp.ne.s32.totalorder %s70, %s72
    %p76 = scmp.eq.s32.totalorder %s15, 0
    %p77 = por %p75, %p76
    %p78 = scmp.ne.s32.totalorder %s70, %s72
    %p79 = scmp.eq.s32.totalorder %s20, 1
    %p80 = por %p78, %p79
    %p81 = scmp.ne.s32.totalorder %s72, %s73
    %p82 = scmp.eq.s32.totalorder %s20, 0
    %p83 = por %p81, %p82
    %p84 = scmp.ne.s32.totalorder %s72, %s73
    %p85 = scmp.eq.s32.totalorder %s21, 1
    %p86 = por %p84, %p85
    %p88 = scmp.ne.s32.totalorder %s73, %s87
    %p89 = scmp.eq.s32.totalorder %s21, 0
    %p90 = por %p88, %p89
    %s92 = sadd.s32 %s91, 1
    %p95 = scmp.eq.s32.totalorder %s15, 1
    %p96 = scmp.ne.s32.totalorder %s91, %s93
    %p97 = scmp.eq.s32.totalorder %s15, 0
    %p98 = por %p96, %p97
    %p99 = scmp.ne.s32.totalorder %s91, %s93
    %p100 = scmp.eq.s32.totalorder %s20, 1
    %p101 = por %p99, %p100
    %p102 = scmp.ne.s32.totalorder %s93, %s94
    %p103 = scmp.eq.s32.totalorder %s20, 0
    %p104 = por %p102, %p103
    %p105 = scmp.ne.s32.totalorder %s93, %s94
    %p106 = scmp.eq.s32.totalorder %s21, 1
    %p107 = por %p105, %p106
    %p109 = scmp.ne.s32.totalorder %s94, %s108
    %p110 = scmp.eq.s32.totalorder %s21, 0
    %p111 = por %p109, %p110
    %s113 = sadd.s32 %s112, 1
    %p116 = scmp.eq.s32.totalorder %s15, 1
    %p117 = scmp.ne.s32.totalorder %s112, %s114
    %p118 = scmp.eq.s32.totalorder %s15, 0
    %p119 = por %p117, %p118
    %p120 = scmp.ne.s32.totalorder %s112, %s114
    %p121 = scmp.eq.s32.totalorder %s20, 1
    %p122 = por %p120, %p121
    %p123 = scmp.ne.s32.totalorder %s114, %s115
    %p124 = scmp.eq.s32.totalorder %s20, 0
    %p125 = por %p123, %p124
    %p126 = scmp.ne.s32.totalorder %s114, %s115
    %p127 = scmp.eq.s32.totalorder %s21, 1
    %p128 = por %p126, %p127
    %p130 = scmp.ne.s32.totalorder %s115, %s129
    %p131 = scmp.eq.s32.totalorder %s21, 0
    %p132 = por %p130, %p131
    %s134 = sadd.s32 %s133, 1
    %p137 = scmp.eq.s32.totalorder %s15, 1
    %p138 = scmp.ne.s32.totalorder %s133, %s135
    %p139 = scmp.eq.s32.totalorder %s15, 0
    %p140 = por %p138, %p139
    %p141 = scmp.ne.s32.totalorder %s133, %s135
    %p142 = scmp.eq.s32.totalorder %s20, 1
    %p143 = por %p141, %p142
    %p144 = scmp.ne.s32.totalorder %s135, %s136
    %p145 = scmp.eq.s32.totalorder %s20, 0
    %p146 = por %p144, %p145
    %p147 = scmp.ne.s32.totalorder %s135, %s136
    %p148 = scmp.eq.s32.totalorder %s21, 1
    %p149 = por %p147, %p148
    %p151 = scmp.ne.s32.totalorder %s136, %s150
    %p152 = scmp.eq.s32.totalorder %s21, 0
    %p153 = por %p151, %p152
    %s155 = sadd.s32 %s154, 1
    %p158 = scmp.eq.s32.totalorder %s15, 1
    %p159 = scmp.ne.s32.totalorder %s154, %s156
    %p160 = scmp.eq.s32.totalorder %s15, 0
    %p161 = por %p159, %p160
    %p162 = scmp.ne.s32.totalorder %s154, %s156
    %p163 = scmp.eq.s32.totalorder %s20, 1
    %p164 = por %p162, %p163
    %p165 = scmp.ne.s32.totalorder %s156, %s157
    %p166 = scmp.eq.s32.totalorder %s20, 0
    %p167 = por %p165, %p166
    %p168 = scmp.ne.s32.totalorder %s156, %s157
    %p169 = scmp.eq.s32.totalorder %s21, 1
    %p170 = por %p168, %p169
    %p172 = scmp.ne.s32.totalorder %s157, %s171
    %p173 = scmp.eq.s32.totalorder %s21, 0
    %p174 = por %p172, %p173
    %s176 = sadd.s32 %s175, 1
    %p179 = scmp.eq.s32.totalorder %s15, 1
    %p180 = scmp.ne.s32.totalorder %s175, %s177
    %p181 = scmp.eq.s32.totalorder %s15, 0
    %p182 = por %p180, %p181
    %p183 = scmp.ne.s32.totalorder %s175, %s177
    %p184 = scmp.eq.s32.totalorder %s20, 1
    %p185 = por %p183, %p184
    %p186 = scmp.ne.s32.totalorder %s177, %s178
    %p187 = scmp.eq.s32.totalorder %s20, 0
    %p188 = por %p186, %p187
    %p189 = scmp.ne.s32.totalorder %s177, %s178
    %p190 = scmp.eq.s32.totalorder %s21, 1
    %p191 = por %p189, %p190
    %p193 = scmp.ne.s32.totalorder %s178, %s192
    %p194 = scmp.eq.s32.totalorder %s21, 0
    %p195 = por %p193, %p194
    %s197 = sadd.s32 %s196, 1
    %p200 = scmp.eq.s32.totalorder %s15, 1
    %p201 = scmp.ne.s32.totalorder %s196, %s198
    %p202 = scmp.eq.s32.totalorder %s15, 0
    %p203 = por %p201, %p202
    %p204 = scmp.ne.s32.totalorder %s196, %s198
    %p205 = scmp.eq.s32.totalorder %s20, 1
    %p206 = por %p204, %p205
    %p207 = scmp.ne.s32.totalorder %s198, %s199
    %p208 = scmp.eq.s32.totalorder %s20, 0
    %p209 = por %p207, %p208
    %p210 = scmp.ne.s32.totalorder %s198, %s199
    %p211 = scmp.eq.s32.totalorder %s21, 1
    %p212 = por %p210, %p211
    %p214 = scmp.ne.s32.totalorder %s199, %s213
    %p215 = scmp.eq.s32.totalorder %s21, 0
    %p216 = por %p214, %p215
    %s217 = ssub.s32 %s15, %s22
    %p218 = scmp.eq.s32.totalorder %s217, 0
    %s220 = sadd.s32 %s219, 1
    %s221 = scalar_select %p218, %s219, %s220
    %p224 = pneg %p218
    %p225 = scmp.eq.s32.totalorder %s15, 1
    %p226 = por %p224, %p225
    %p227 = scmp.ne.s32.totalorder %s219, %s222
    %p228 = scmp.eq.s32.totalorder %s15, 0
    %p229 = por %p227, %p228
    %p230 = scmp.ne.s32.totalorder %s219, %s222
    %p231 = scmp.eq.s32.totalorder %s20, 1
    %p232 = por %p230, %p231
    %p233 = scmp.ne.s32.totalorder %s222, %s223
    %p234 = scmp.eq.s32.totalorder %s20, 0
    %p235 = por %p233, %p234
    %p236 = scmp.ne.s32.totalorder %s222, %s223
    %p237 = scmp.eq.s32.totalorder %s21, 1
    %p238 = por %p236, %p237
    %p240 = scmp.ne.s32.totalorder %s223, %s239
    %p241 = scmp.eq.s32.totalorder %s21, 0
    %p242 = por %p240, %p241
    %p243 = scmp.le.s32.totalorder 1, %s15
    %p244 = scmp.lt.s32.totalorder %s15, 3
    %p245 = pnand %p243, %p244
    %p246 = pneg %p245
    // Predicated region
    $region9: #{forward.5} parent=5 // pred_check
      _
    $region10: #{forward.5} parent=5 // pred_check_branch
      %248 = sbr.rel (%p245) target = $region12
    $region11: #{forward.5} parent=5 // pred_region
      %s249 = ssub.s32 %s15, 1
      // Predicated region
      $region13: #{forward.5} parent=11 // pred_check
        %p250 = pneg %p62
      $region14: #{forward.5} parent=11 // pred_check_branch
        %252 = sbr.rel (%p250) target = $region16
      $region15: #{forward.5} parent=11 // pred_region
        _
      $region16: #{forward.5} parent=11 // pred_fallthru
        _
      // Predicated region
      $region17: #{forward.5} parent=11 // pred_check
        %p253 = pneg %p83
      $region18: #{forward.5} parent=11 // pred_check_branch
        %255 = sbr.rel (%p253) target = $region20
      $region19: #{forward.5} parent=11 // pred_region
        _
      $region20: #{forward.5} parent=11 // pred_fallthru
        _
      // Predicated region
      $region21: #{forward.5} parent=11 // pred_check
        %p256 = pneg %p104
      $region22: #{forward.5} parent=11 // pred_check_branch
        %258 = sbr.rel (%p256) target = $region24
      $region23: #{forward.5} parent=11 // pred_region
        _
      $region24: #{forward.5} parent=11 // pred_fallthru
        _
      // Predicated region
      $region25: #{forward.5} parent=11 // pred_check
        %p259 = pneg %p125
      $region26: #{forward.5} parent=11 // pred_check_branch
        %261 = sbr.rel (%p259) target = $region28
      $region27: #{forward.5} parent=11 // pred_region
        _
      $region28: #{forward.5} parent=11 // pred_fallthru
        _
      // Predicated region
      $region29: #{forward.5} parent=11 // pred_check
        %p262 = pneg %p146
      $region30: #{forward.5} parent=11 // pred_check_branch
        %264 = sbr.rel (%p262) target = $region32
      $region31: #{forward.5} parent=11 // pred_region
        _
      $region32: #{forward.5} parent=11 // pred_fallthru
        _
      // Predicated region
      $region33: #{forward.5} parent=11 // pred_check
        %p265 = pneg %p167
      $region34: #{forward.5} parent=11 // pred_check_branch
        %267 = sbr.rel (%p265) target = $region36
      $region35: #{forward.5} parent=11 // pred_region
        _
      $region36: #{forward.5} parent=11 // pred_fallthru
        _
      // Predicated region
      $region37: #{forward.5} parent=11 // pred_check
        %p268 = pneg %p188
      $region38: #{forward.5} parent=11 // pred_check_branch
        %270 = sbr.rel (%p268) target = $region40
      $region39: #{forward.5} parent=11 // pred_region
        _
      $region40: #{forward.5} parent=11 // pred_fallthru
        _
      // Predicated region
      $region41: #{forward.5} parent=11 // pred_check
        %p271 = pneg %p209
      $region42: #{forward.5} parent=11 // pred_check_branch
        %273 = sbr.rel (%p271) target = $region44
      $region43: #{forward.5} parent=11 // pred_region
        _
      $region44: #{forward.5} parent=11 // pred_fallthru
        _
    $region12: #{forward.5} parent=5 // pred_fallthru
      _
    %p274 = scmp.lt.s32.totalorder %s15, 2
    // Predicated region
    $region45: #{forward.5} parent=5 // pred_check
      %p275 = pneg %p274
    $region46: #{forward.5} parent=5 // pred_check_branch
      %277 = sbr.rel (%p275) target = $region48
    $region47: #{forward.5} parent=5 // pred_region
      // Predicated region
      $region49: #{forward.5} parent=47 // pred_check
        %p278 = pneg %p35
      $region50: #{forward.5} parent=47 // pred_check_branch
        %280 = sbr.rel (%p278) target = $region52
      $region51: #{forward.5} parent=47 // pred_region
        %p281 = scmp.lt.s32.totalorder %s15, 1
        %s282 = scalar_select %p281, %s15, 1
        %s283 = smul.addr %s282, 3
        %s284 = smul.addr %s283, 4
        %s285 = scalar_lea.vmem %s0, %s284
      $region52: #{forward.5} parent=47 // pred_fallthru
        _
    $region48: #{forward.5} parent=5 // pred_fallthru
      _
    %p286 = scmp.le.s32.totalorder 1, %s15
    %p287 = scmp.lt.s32.totalorder %s15, 3
    %p288 = pnand %p286, %p287
    %p289 = pneg %p288
    // Predicated region
    $region53: #{forward.5} parent=5 // pred_check
      _
    $region54: #{forward.5} parent=5 // pred_check_branch
      %291 = sbr.rel (%p288) target = $region56
    $region55: #{forward.5} parent=5 // pred_region
      %s292 = ssub.s32 %s15, 1
      %p293 = scmp.lt.s32.totalorder %s20, 1
      %s294 = scalar_select %p293, %s20, 1
      %s295 = smul.addr %s294, 3
      %s296 = smul.addr %s295, 4
      %s297 = scalar_lea.vmem %s0, %s296
      %p298 = pneg %p41
      %p299 = pneg %p38
      %p300 = pneg %p62
      %p301 = pneg %p59
      %p302 = pneg %p83
      %p303 = pneg %p80
      %p304 = pneg %p104
      %p305 = pneg %p101
      %p306 = pneg %p125
      %p307 = pneg %p122
      %p308 = pneg %p146
      %p309 = pneg %p143
      %p310 = pneg %p167
      %p311 = pneg %p164
      %p312 = pneg %p188
      %p313 = pneg %p185
      %p314 = pneg %p209
      %p315 = pneg %p206
      %p316 = pneg %p235
      %p317 = pneg %p232
      %p318 = scmp.lt.s32.totalorder %s20, 1
      %s319 = scalar_select %p318, %s20, 1
      %s320 = smul.addr %s319, 3
      %s321 = smul.addr %s320, 4
      %s322 = scalar_lea.vmem %s9, %s321
      %p323 = scmp.lt.s32.totalorder %s20, 1
      %s324 = scalar_select %p323, %s20, 1
      %s325 = smul.addr %s324, 3
      %s326 = smul.addr %s325, 4
      %s327 = scalar_lea.vmem %s0, %s326
      %p328 = scmp.lt.s32.totalorder %s20, 1
      %s329 = scalar_select %p328, %s20, 1
      %s330 = smul.addr %s329, 3
      %s331 = smul.addr %s330, 4
      %s332 = scalar_lea.vmem %s9, %s331
      %v334 = vld [vmem:[%s327] sm:$0xf]
      %v335 = vld [vmem:[%s327 + $0x4] sm:$0xf]
      %v336 = vld [vmem:[%s327 + $0x8] sm:$0x1]
      %v337 = vunpack.c.l.bf16 %v334
      %v338 = vunpack.c.l.bf16 %v335
      %v339 = vunpack.c.l.bf16 %v336
      %340 = vadd.xlane.f32.xlu0 %v337
      %v341 = vpop.xlane.xlu0 %340
      %342 = vadd.xlane.f32.xlu0 %v338
      %v343 = vpop.xlane.xlu0 %342
      %vm344 = vcmask 1040384
      %v345 = vsel %vm344, %v339, 0.0
      %346 = vadd.xlane.f32.xlu0 %v345
      %v347 = vpop.xlane.xlu0 %346
      %v348 = vrcp.pop 128.0
      %v349 = vmul.f32 %v341, %v348
      %v350 = vmul.f32 %v343, %v348
      %v351 = vmul.f32 %v347, %v348
      %v352 = vsub.f32 %v337, %v349
      %v353 = vsub.f32 %v338, %v350
      %v354 = vsub.f32 %v339, %v351
      %v355 = vmul.f32 %v352, %v352
      %v356 = vmul.f32 %v353, %v353
      %v357 = vmul.f32 %v354, %v354
      %358 = vadd.xlane.f32.xlu0 %v355
      %v359 = vpop.xlane.xlu0 %358
      %360 = vadd.xlane.f32.xlu0 %v356
      %v361 = vpop.xlane.xlu0 %360
      %v362 = vsel %vm344, %v357, 0.0
      %363 = vadd.xlane.f32.xlu0 %v362
      %v364 = vpop.xlane.xlu0 %363
      %v365 = vmul.f32 %v359, %v348
      %v366 = vmul.f32 %v361, %v348
      %v367 = vmul.f32 %v364, %v348
      %v368 = vadd.f32 %v365, 1e-06
      %v369 = vadd.f32 %v366, 1e-06
      %v370 = vadd.f32 %v367, 1e-06
      %v371 = vrsqrt.pop %v368
      %v372 = vrsqrt.pop %v369
      %v373 = vrsqrt.pop %v370
      %v374 = vmul.f32 %v352, %v371
      %v375 = vmul.f32 %v353, %v372
      %v376 = vmul.f32 %v354, %v373
      %v377 = vpack.c.bf16 %v375, %v374
      %v378 = vpack.c.bf16 %v376, %v376
      %v379 = vld [vmem:[%s1] sm:$0xff]
      %v380 = vld [vmem:[%s1 + $0x8] sm:$0xf]
      %v381 = vld [vmem:[%s1 + $0xc] sm:$0xff]
      %v382 = vld [vmem:[%s1 + $0x14] sm:$0xf]
      %v383 = vld [vmem:[%s1 + $0x18] sm:$0xff]
      %v384 = vld [vmem:[%s1 + $0x20] sm:$0xf]
      %v385 = vld [vmem:[%s1 + $0x24] sm:$0xff]
      %v386 = vld [vmem:[%s1 + $0x2c] sm:$0xf]
      %v387 = vld [vmem:[%s1 + $0x30] sm:$0xff]
      %v388 = vld [vmem:[%s1 + $0x38] sm:$0xf]
      %v389 = vld [vmem:[%s1 + $0x3c] sm:$0xff]
      %v390 = vld [vmem:[%s1 + $0x44] sm:$0xf]
      %v391 = vld [vmem:[%s1 + $0x48] sm:$0xff]
      %v392 = vld [vmem:[%s1 + $0x50] sm:$0xf]
      %v393 = vld [vmem:[%s1 + $0x54] sm:$0xff]
      %v394 = vld [vmem:[%s1 + $0x5c] sm:$0xf]
      %v395 = vld [vmem:[%s1 + $0x60] sm:$0xff]
      %v396 = vld [vmem:[%s1 + $0x68] sm:$0xf]
      %v397 = vld [vmem:[%s1 + $0x6c] sm:$0xff]
      %v398 = vld [vmem:[%s1 + $0x74] sm:$0xf]
      %v399 = vld [vmem:[%s1 + $0x78] sm:$0xff]
      %v400 = vld [vmem:[%s1 + $0x80] sm:$0xf]
      %v401 = vld [vmem:[%s1 + $0x84] sm:$0xff]
      %v402 = vld [vmem:[%s1 + $0x8c] sm:$0xf]
      %v403 = vld [vmem:[%s1 + $0x90] sm:$0xff]
      %v404 = vld [vmem:[%s1 + $0x98] sm:$0xf]
      %v405 = vld [vmem:[%s1 + $0x9c] sm:$0xff]
      %v406 = vld [vmem:[%s1 + $0xa4] sm:$0xf]
      %v407 = vld [vmem:[%s1 + $0xa8] sm:$0xff]
      %v408 = vld [vmem:[%s1 + $0xb0] sm:$0xf]
      %v409 = vld [vmem:[%s1 + $0xb4] sm:$0xff]
      %v410 = vld [vmem:[%s1 + $0xbc] sm:$0xf]
      %v411 = vld [vmem:[%s2] sm:$0x7]
      %v413 = vlaneseq
      %v414 = vshrl.u32 %v413, 7
      %v415 = vsub.s32 0, %v414
      %v416 = vrot.slane %v411, %v415
      %v417 = vlaneseq
      %v418 = vshrl.u32 %v417, 7
      %v419 = vsub.s32 1, %v418
      %v420 = vrot.slane %v411, %v419
      %v421 = vlaneseq
      %v422 = vshrl.u32 %v421, 7
      %v423 = vsub.s32 2, %v422
      %v424 = vrot.slane %v411, %v423
      %v460 = vunpack.c.l.b16 %v379
      %v461 = vunpack.c.h.b16 %v379
      %v462 = vunpack.c.l.b16 %v380
      %v463 = vunpack.c.l.b16 %v381
      %v464 = vunpack.c.h.b16 %v381
      %v465 = vunpack.c.l.b16 %v382
      %v466 = vunpack.c.l.b16 %v383
      %v467 = vunpack.c.h.b16 %v383
      %v468 = vunpack.c.l.b16 %v384
      %v469 = vunpack.c.l.b16 %v385
      %v470 = vunpack.c.h.b16 %v385
      %v471 = vunpack.c.l.b16 %v386
      %v472 = vunpack.c.l.b16 %v387
      %v473 = vunpack.c.h.b16 %v387
      %v474 = vunpack.c.l.b16 %v388
      %v475 = vunpack.c.l.b16 %v389
      %v476 = vunpack.c.h.b16 %v389
      %v477 = vunpack.c.l.b16 %v390
      %v478 = vunpack.c.l.b16 %v391
      %v479 = vunpack.c.h.b16 %v391
      %v480 = vunpack.c.l.b16 %v392
      %v481 = vunpack.c.l.b16 %v393
      %v482 = vunpack.c.h.b16 %v393
      %v483 = vunpack.c.l.b16 %v394
      %v484 = vunpack.c.l.b16 %v395
      %v485 = vunpack.c.h.b16 %v395
      %v486 = vunpack.c.l.b16 %v396
      %v487 = vunpack.c.l.b16 %v397
      %v488 = vunpack.c.h.b16 %v397
      %v489 = vunpack.c.l.b16 %v398
      %v490 = vunpack.c.l.b16 %v399
      %v491 = vunpack.c.h.b16 %v399
      %v492 = vunpack.c.l.b16 %v400
      %v493 = vunpack.c.l.b16 %v401
      %v494 = vunpack.c.h.b16 %v401
      %v495 = vunpack.c.l.b16 %v402
      %v496 = vunpack.c.l.b16 %v403
      %v497 = vunpack.c.h.b16 %v403
      %v498 = vunpack.c.l.b16 %v404
      %v499 = vunpack.c.l.b16 %v405
      %v500 = vunpack.c.h.b16 %v405
      %v501 = vunpack.c.l.b16 %v406
      %v502 = vunpack.c.l.b16 %v407
      %v503 = vunpack.c.h.b16 %v407
      %v504 = vunpack.c.l.b16 %v408
      %v505 = vunpack.c.l.b16 %v409
      %v506 = vunpack.c.h.b16 %v409
      %v507 = vunpack.c.l.b16 %v410
      %v508 = vpack.c.b16 %v463, %v460
      %v509 = vpack.c.b16 %v464, %v461
      %v510 = vpack.c.b16 %v465, %v462
      %v511 = vpack.c.b16 %v469, %v466
      %v512 = vpack.c.b16 %v470, %v467
      %v513 = vpack.c.b16 %v471, %v468
      %v514 = vpack.c.b16 %v475, %v472
      %v515 = vpack.c.b16 %v476, %v473
      %v516 = vpack.c.b16 %v477, %v474
      %v517 = vpack.c.b16 %v481, %v478
      %v518 = vpack.c.b16 %v482, %v479
      %v519 = vpack.c.b16 %v483, %v480
      %v520 = vpack.c.b16 %v487, %v484
      %v521 = vpack.c.b16 %v488, %v485
      %v522 = vpack.c.b16 %v489, %v486
      %v523 = vpack.c.b16 %v493, %v490
      %v524 = vpack.c.b16 %v494, %v491
      %v525 = vpack.c.b16 %v495, %v492
      %v526 = vpack.c.b16 %v499, %v496
      %v527 = vpack.c.b16 %v500, %v497
      %v528 = vpack.c.b16 %v501, %v498
      %v529 = vpack.c.b16 %v505, %v502
      %v530 = vpack.c.b16 %v506, %v503
      %v531 = vpack.c.b16 %v507, %v504
      %556 = vmatprep.subr.bf16.mxu0 %v509
      %557 = vmatpush1.bf16.msra.mxu0 %v508
      %558 = vmatprep.subr.bf16.mxu0 %v512
      %559 = vmatpush1.bf16.msra.mxu0 %v511
      %560 = vmatprep.subr.bf16.mxu0 %v515
      %561 = vmatpush1.bf16.msra.mxu0 %v514
      %562 = vmatprep.subr.bf16.mxu0 %v518
      %563 = vmatpush1.bf16.msra.mxu0 %v517
      %564 = vmatprep.subr.bf16.mxu0 %v521
      %565 = vmatpush1.bf16.msra.mxu0 %v520
      %566 = vmatprep.subr.bf16.mxu0 %v524
      %567 = vmatpush1.bf16.msra.mxu0 %v523
      %568 = vmatprep.subr.bf16.mxu0 %v527
      %569 = vmatpush1.bf16.msra.mxu0 %v526
      %570 = vmatprep.subr.bf16.mxu0 %v530
      %571 = vmatpush1.bf16.msra.mxu0 %v529
      %572 = vmatprep.subr.bf16.mxu0 0
      %573 = vmatpush1.bf16.msra.mxu0 0
      %574 = vmatprep.subr.bf16.mxu0 0
      %575 = vmatpush1.bf16.msra.mxu0 0
      %576 = vmatprep.subr.bf16.mxu0 0
      %577 = vmatpush1.bf16.msra.mxu0 0
      %578 = vmatprep.subr.bf16.mxu0 0
      %579 = vmatpush1.bf16.msra.mxu0 0
      %580 = vmatprep.subr.bf16.mxu0 0
      %581 = vmatpush1.bf16.msra.mxu0 0
      %582 = vmatprep.subr.bf16.mxu0 0
      %583 = vmatpush1.bf16.msra.mxu0 0
      %584 = vmatprep.subr.bf16.mxu0 0
      %585 = vmatpush1.bf16.msra.mxu0 0
      %586 = vmatprep.subr.bf16.mxu0 0
      %587 = vmatpush1.bf16.msra.mxu0 0
      %588 = vmatprep.mubr.bf16.mxu0 0
      %589 = vmatmul.mubr.bf16.gmra.mrb[0].mxu0 %v377
      %v590 = vpop.f32.mrb[0].mxu0
      %v591 = vadd.f32 %v416, %v590
      %v592 = vpop.f32.mrb[0].mxu0
      %v593 = vadd.f32 %v420, %v592
      %v594 = vpop.f32.mrb[0].mxu0
      %v595 = vadd.f32 %v416, %v594
      %v596 = vpop.f32.mrb[0].mxu0
      %v597 = vadd.f32 %v420, %v596
      %598 = vmatprep.mubr.bf16.mxu0 0
      %599 = vmatmul.mubr.bf16.gmra.mrb[0].mxu0 %v378
      %v600 = vpop.f32.mrb[0].mxu0
      %v601 = vadd.f32 %v416, %v600
      %v602 = vpop.f32.mrb[0].mxu0
      %v603 = vadd.f32 %v420, %v602
      %v604 = vpop.f32.mrb[0].mxu0
      %v605 = vpop.f32.mrb[0].mxu0
      %606 = vdwg.mxu0
      %607 = vmatprep.subr.bf16.mxu0 0
      %608 = vmatpush1.bf16.msra.mxu0 %v510
      %609 = vmatprep.subr.bf16.mxu0 0
      %610 = vmatpush1.bf16.msra.mxu0 %v513
      %611 = vmatprep.subr.bf16.mxu0 0
      %612 = vmatpush1.bf16.msra.mxu0 %v516
      %613 = vmatprep.subr.bf16.mxu0 0
      %614 = vmatpush1.bf16.msra.mxu0 %v519
      %615 = vmatprep.subr.bf16.mxu0 0
      %616 = vmatpush1.bf16.msra.mxu0 %v522
      %617 = vmatprep.subr.bf16.mxu0 0
      %618 = vmatpush1.bf16.msra.mxu0 %v525
      %619 = vmatprep.subr.bf16.mxu0 0
      %620 = vmatpush1.bf16.msra.mxu0 %v528
      %621 = vmatprep.subr.bf16.mxu0 0
      %622 = vmatpush1.bf16.msra.mxu0 %v531
      %623 = vmatprep.subr.bf16.mxu0 0
      %624 = vmatpush1.bf16.msra.mxu0 0
      %625 = vmatprep.subr.bf16.mxu0 0
      %626 = vmatpush1.bf16.msra.mxu0 0
      %627 = vmatprep.subr.bf16.mxu0 0
      %628 = vmatpush1.bf16.msra.mxu0 0
      %629 = vmatprep.subr.bf16.mxu0 0
      %630 = vmatpush1.bf16.msra.mxu0 0
      %631 = vmatprep.subr.bf16.mxu0 0
      %632 = vmatpush1.bf16.msra.mxu0 0
      %633 = vmatprep.subr.bf16.mxu0 0
      %634 = vmatpush1.bf16.msra.mxu0 0
      %635 = vmatprep.subr.bf16.mxu0 0
      %636 = vmatpush1.bf16.msra.mxu0 0
      %637 = vmatprep.subr.bf16.mxu0 0
      %638 = vmatpush1.bf16.msra.mxu0 0
      %639 = vmatprep.mubr.bf16.mxu0 0
      %640 = vmatmul.mubr.bf16.gmra.mrb[0].mxu0 %v377
      %v641 = vpop.f32.mrb[0].mxu0
      %v642 = vadd.f32 %v424, %v641
      %v643 = vpop.f32.mrb[0].mxu0
      %v644 = vpop.f32.mrb[0].mxu0
      %v645 = vadd.f32 %v424, %v644
      %v646 = vpop.f32.mrb[0].mxu0
      %647 = vmatprep.mubr.bf16.mxu0 0
      %648 = vmatmul.mubr.bf16.gmra.mrb[0].mxu0 %v378
      %v649 = vpop.f32.mrb[0].mxu0
      %v650 = vadd.f32 %v424, %v649
      %v651 = vpop.f32.mrb[0].mxu0
      %v652 = vpop.f32.mrb[0].mxu0
      %v653 = vpop.f32.mrb[0].mxu0
      %654 = vdwg.mxu0
      %v655 = vld [vmem:[%s4] sm:$0x1]
      %v657 = vlaneseq
      %v658 = vshrl.u32 %v657, 7
      %v659 = vsub.s32 0, %v658
      %v660 = vrot.slane %v655, %v659
      %v662 = vadd.f32 %v337, %v660
      %v663 = vadd.f32 %v338, %v660
      %v664 = vadd.f32 %v339, %v660
      %v665 = vpack.c.bf16 %v595, %v591
      %v666 = vpack.c.bf16 %v601, %v601
      %v667 = vpack.c.bf16 %v597, %v593
      %v668 = vpack.c.bf16 %v603, %v603
      %v669 = vpack.c.bf16 %v645, %v642
      %v670 = vpack.c.bf16 %v650, %v650
      %vm671 = vcmask 261120
      %v673 = vsel %vm671, %v665, 0
      %v676 = vsel %vm671, %v666, 0
      %v679 = vsel %vm671, %v667, 0
      %v682 = vsel %vm671, %v668, 0
      %684 = vmatprep.subr.bf16.mxu0 0
      %685 = vmatpush1.bf16.xpose.msra.mxu0 %v679
      %686 = vmatprep.subr.bf16.mxu0 0
      %687 = vmatpush1.bf16.xpose.msra.mxu0 %v682
      %688 = vmatprep.subr.bf16.mxu0 0
      %689 = vmatpush1.bf16.xpose.msra.mxu0 0
      %690 = vmatprep.subr.bf16.mxu0 0
      %691 = vmatpush1.bf16.xpose.msra.mxu0 0
      %692 = vmatprep.subr.bf16.mxu0 0
      %693 = vmatpush1.bf16.xpose.msra.mxu0 0
      %694 = vmatprep.subr.bf16.mxu0 0
      %695 = vmatpush1.bf16.xpose.msra.mxu0 0
      %696 = vmatprep.subr.bf16.mxu0 0
      %697 = vmatpush1.bf16.xpose.msra.mxu0 0
      %698 = vmatprep.subr.bf16.mxu0 0
      %699 = vmatpush1.bf16.xpose.msra.mxu0 0
      %700 = vmatprep.subr.bf16.mxu0 0
      %701 = vmatpush1.bf16.xpose.msra.mxu0 0
      %702 = vmatprep.subr.bf16.mxu0 0
      %703 = vmatpush1.bf16.xpose.msra.mxu0 0
      %704 = vmatprep.subr.bf16.mxu0 0
      %705 = vmatpush1.bf16.xpose.msra.mxu0 0
      %706 = vmatprep.subr.bf16.mxu0 0
      %707 = vmatpush1.bf16.xpose.msra.mxu0 0
      %708 = vmatprep.subr.bf16.mxu0 0
      %709 = vmatpush1.bf16.xpose.msra.mxu0 0
      %710 = vmatprep.subr.bf16.mxu0 0
      %711 = vmatpush1.bf16.xpose.msra.mxu0 0
      %712 = vmatprep.subr.bf16.mxu0 0
      %713 = vmatpush1.bf16.xpose.msra.mxu0 0
      %714 = vmatprep.subr.bf16.mxu0 0
      %715 = vmatpush1.bf16.xpose.msra.mxu0 0
      %716 = vmatprep.mubr.bf16.mxu0 0
      %717 = vmatmul.mubr.bf16.gmra.mrb[0].mxu0 %v673
      %v718 = vpop.f32.mrb[0].mxu0
      %v719 = vadd.f32 0.0, %v718
      %v720 = vpop.f32.mrb[0].mxu0
      %v721 = vpop.f32.mrb[0].mxu0
      %v722 = vadd.f32 0.0, %v721
      %v723 = vpop.f32.mrb[0].mxu0
      %724 = vmatprep.mubr.bf16.mxu0 0
      %725 = vmatmul.mubr.bf16.gmra.mrb[0].mxu0 %v676
      %v726 = vpop.f32.mrb[0].mxu0
      %v727 = vadd.f32 0.0, %v726
      %v728 = vpop.f32.mrb[0].mxu0
      %v729 = vpop.f32.mrb[0].mxu0
      %v730 = vpop.f32.mrb[0].mxu0
      %731 = vdwg.mxu0
      %v732 = vmul.f32 %v719, 0.17677669
      %v733 = vmul.f32 %v722, 0.17677669
      %v734 = vmul.f32 %v727, 0.17677669
      %vm735 = vcmask 138240
      %v736 = vsel %vm735, %v732, -inf
      %737 = vmax.xlane.f32.xlu0 %v736
      %v738 = vpop.xlane.xlu0 %737
      %v739 = vsel %vm735, %v733, -inf
      %740 = vmax.xlane.f32.xlu0 %v739
      %v741 = vpop.xlane.xlu0 %740
      %vm742 = vcmask 131072
      %v743 = vsel %vm742, %v734, -inf
      %744 = vmax.xlane.f32.xlu0 %v743
      %v745 = vpop.xlane.xlu0 %744
      %v746 = vsub.f32 %v732, %v738
      %v747 = vsub.f32 %v733, %v741
      %v748 = vsub.f32 %v734, %v745
      %v749 = vmul.f32 %v746, 1.442695
      %v750 = vpow.pop %v749
      %v751 = vmul.f32 %v747, 1.442695
      %v752 = vpow.pop %v751
      %v753 = vmul.f32 %v748, 1.442695
      %v754 = vpow.pop %v753
      %v755 = vsel %vm735, %v750, 0.0
      %756 = vadd.xlane.f32.xlu0 %v755
      %v757 = vpop.xlane.xlu0 %756
      %v758 = vsel %vm735, %v752, 0.0
      %759 = vadd.xlane.f32.xlu0 %v758
      %v760 = vpop.xlane.xlu0 %759
      %v761 = vsel %vm742, %v754, 0.0
      %762 = vadd.xlane.f32.xlu0 %v761
      %v763 = vpop.xlane.xlu0 %762
      %v764 = vrcp.pop %v757
      %v765 = vrcp.pop %v760
      %v766 = vrcp.pop %v763
      %v767 = vmul.f32 %v750, %v764
      %v768 = vmul.f32 %v752, %v765
      %v769 = vmul.f32 %v754, %v766
      %v770 = vpack.c.bf16 %v768, %v767
      %v771 = vpack.c.bf16 %v769, %v769
      %v773 = vsel %vm735, %v770, 0
      %v776 = vsel %vm735, %v771, 0
      %v778 = vsel 0, 4294967295, 65535
      %v779 = vsel %vm344, %v778, 0
      %v781 = vand.u32 %v670, %v779
      %783 = vmatprep.subr.bf16.mxu0 0
      %784 = vmatpush1.bf16.msra.mxu0 %v669
      %785 = vmatprep.subr.bf16.mxu0 0
      %786 = vmatpush1.bf16.msra.mxu0 %v781
      %787 = vmatprep.subr.bf16.mxu0 0
      %788 = vmatpush1.bf16.msra.mxu0 0
      %789 = vmatprep.subr.bf16.mxu0 0
      %790 = vmatpush1.bf16.msra.mxu0 0
      %791 = vmatprep.subr.bf16.mxu0 0
      %792 = vmatpush1.bf16.msra.mxu0 0
      %793 = vmatprep.subr.bf16.mxu0 0
      %794 = vmatpush1.bf16.msra.mxu0 0
      %795 = vmatprep.subr.bf16.mxu0 0
      %796 = vmatpush1.bf16.msra.mxu0 0
      %797 = vmatprep.subr.bf16.mxu0 0
      %798 = vmatpush1.bf16.msra.mxu0 0
      %799 = vmatprep.subr.bf16.mxu0 0
      %800 = vmatpush1.bf16.msra.mxu0 0
      %801 = vmatprep.subr.bf16.mxu0 0
      %802 = vmatpush1.bf16.msra.mxu0 0
      %803 = vmatprep.subr.bf16.mxu0 0
      %804 = vmatpush1.bf16.msra.mxu0 0
      %805 = vmatprep.subr.bf16.mxu0 0
      %806 = vmatpush1.bf16.msra.mxu0 0
      %807 = vmatprep.subr.bf16.mxu0 0
      %808 = vmatpush1.bf16.msra.mxu0 0
      %809 = vmatprep.subr.bf16.mxu0 0
      %810 = vmatpush1.bf16.msra.mxu0 0
      %811 = vmatprep.subr.bf16.mxu0 0
      %812 = vmatpush1.bf16.msra.mxu0 0
      %813 = vmatprep.subr.bf16.mxu0 0
      %814 = vmatpush1.bf16.msra.mxu0 0
      %815 = vmatprep.mubr.bf16.mxu0 0
      %816 = vmatmul.mubr.bf16.gmra.mrb[0].mxu0 %v773
      %v817 = vpop.f32.mrb[0].mxu0
      %v818 = vadd.f32 0.0, %v817
      %v819 = vpop.f32.mrb[0].mxu0
      %v820 = vpop.f32.mrb[0].mxu0
      %v821 = vadd.f32 0.0, %v820
      %v822 = vpop.f32.mrb[0].mxu0
      %823 = vmatprep.mubr.bf16.mxu0 0
      %824 = vmatmul.mubr.bf16.gmra.mrb[0].mxu0 %v776
      %v825 = vpop.f32.mrb[0].mxu0
      %v826 = vadd.f32 0.0, %v825
      %v827 = vpop.f32.mrb[0].mxu0
      %v828 = vpop.f32.mrb[0].mxu0
      %v829 = vpop.f32.mrb[0].mxu0
      %830 = vdwg.mxu0
      %v831 = vpack.c.bf16 %v821, %v818
      %v832 = vpack.c.bf16 %v826, %v826
      %v833 = vld [vmem:[%s3] sm:$0xf]
      %v834 = vld [vmem:[%s3 + $0x4] sm:$0xf]
      %v835 = vld [vmem:[%s3 + $0x8] sm:$0xf]
      %v836 = vld [vmem:[%s3 + $0xc] sm:$0xf]
      %v841 = vunpack.c.l.b16 %v833
      %v842 = vunpack.c.l.b16 %v834
      %v843 = vunpack.c.l.b16 %v835
      %v844 = vunpack.c.l.b16 %v836
      %v845 = vpack.c.b16 %v842, %v841
      %v846 = vpack.c.b16 %v844, %v843
      %v850 = vsel %vm671, %v831, 0
      %v853 = vsel %vm671, %v832, 0
      %855 = vmatprep.subr.bf16.mxu0 0
      %856 = vmatpush1.bf16.msra.mxu0 %v845
      %857 = vmatprep.subr.bf16.mxu0 0
      %858 = vmatpush1.bf16.msra.mxu0 %v846
      %859 = vmatprep.subr.bf16.mxu0 0
      %860 = vmatpush1.bf16.msra.mxu0 0
      %861 = vmatprep.subr.bf16.mxu0 0
      %862 = vmatpush1.bf16.msra.mxu0 0
      %863 = vmatprep.subr.bf16.mxu0 0
      %864 = vmatpush1.bf16.msra.mxu0 0
      %865 = vmatprep.subr.bf16.mxu0 0
      %866 = vmatpush1.bf16.msra.mxu0 0
      %867 = vmatprep.subr.bf16.mxu0 0
      %868 = vmatpush1.bf16.msra.mxu0 0
      %869 = vmatprep.subr.bf16.mxu0 0
      %870 = vmatpush1.bf16.msra.mxu0 0
      %871 = vmatprep.subr.bf16.mxu0 0
      %872 = vmatpush1.bf16.msra.mxu0 0
      %873 = vmatprep.subr.bf16.mxu0 0
      %874 = vmatpush1.bf16.msra.mxu0 0
      %875 = vmatprep.subr.bf16.mxu0 0
      %876 = vmatpush1.bf16.msra.mxu0 0
      %877 = vmatprep.subr.bf16.mxu0 0
      %878 = vmatpush1.bf16.msra.mxu0 0
      %879 = vmatprep.subr.bf16.mxu0 0
      %880 = vmatpush1.bf16.msra.mxu0 0
      %881 = vmatprep.subr.bf16.mxu0 0
      %882 = vmatpush1.bf16.msra.mxu0 0
      %883 = vmatprep.subr.bf16.mxu0 0
      %884 = vmatpush1.bf16.msra.mxu0 0
      %885 = vmatprep.subr.bf16.mxu0 0
      %886 = vmatpush1.bf16.msra.mxu0 0
      %887 = vmatprep.mubr.bf16.mxu0 0
      %888 = vmatmul.mubr.bf16.gmra.mrb[0].mxu0 %v850
      %v889 = vpop.f32.mrb[0].mxu0
      %v890 = vadd.f32 0.0, %v889
      %v891 = vpop.f32.mrb[0].mxu0
      %v892 = vpop.f32.mrb[0].mxu0
      %v893 = vadd.f32 0.0, %v892
      %v894 = vpop.f32.mrb[0].mxu0
      %895 = vmatprep.mubr.bf16.mxu0 0
      %896 = vmatmul.mubr.bf16.gmra.mrb[0].mxu0 %v853
      %v897 = vpop.f32.mrb[0].mxu0
      %v898 = vadd.f32 0.0, %v897
      %v899 = vpop.f32.mrb[0].mxu0
      %v900 = vpop.f32.mrb[0].mxu0
      %v901 = vpop.f32.mrb[0].mxu0
      %902 = vdwg.mxu0
      %v903 = vadd.f32 %v662, %v890
      %v904 = vadd.f32 %v663, %v893
      %v905 = vadd.f32 %v664, %v898
      %908 = vrot.lane.b32.xlu0 %v665, 96
      %v909 = vpop.permute.xlu0 %908
      %910 = vrot.lane.b32.xlu0 %v666, 96
      %v911 = vpop.permute.xlu0 %910
      %914 = vrot.lane.b32.xlu0 %v667, 96
      %v915 = vpop.permute.xlu0 %914
      %916 = vrot.lane.b32.xlu0 %v668, 96
      %v917 = vpop.permute.xlu0 %916
      %v919 = vsel %vm671, %v909, 0
      %v922 = vsel %vm671, %v911, 0
      %v925 = vsel %vm671, %v915, 0
      %v928 = vsel %vm671, %v917, 0
      %930 = vmatprep.subr.bf16.mxu0 0
      %931 = vmatpush1.bf16.xpose.msra.mxu0 %v925
      %932 = vmatprep.subr.bf16.mxu0 0
      %933 = vmatpush1.bf16.xpose.msra.mxu0 %v928
      %934 = vmatprep.subr.bf16.mxu0 0
      %935 = vmatpush1.bf16.xpose.msra.mxu0 0
      %936 = vmatprep.subr.bf16.mxu0 0
      %937 = vmatpush1.bf16.xpose.msra.mxu0 0
      %938 = vmatprep.subr.bf16.mxu0 0
      %939 = vmatpush1.bf16.xpose.msra.mxu0 0
      %940 = vmatprep.subr.bf16.mxu0 0
      %941 = vmatpush1.bf16.xpose.msra.mxu0 0
      %942 = vmatprep.subr.bf16.mxu0 0
      %943 = vmatpush1.bf16.xpose.msra.mxu0 0
      %944 = vmatprep.subr.bf16.mxu0 0
      %945 = vmatpush1.bf16.xpose.msra.mxu0 0
      %946 = vmatprep.subr.bf16.mxu0 0
      %947 = vmatpush1.bf16.xpose.msra.mxu0 0
      %948 = vmatprep.subr.bf16.mxu0 0
      %949 = vmatpush1.bf16.xpose.msra.mxu0 0
      %950 = vmatprep.subr.bf16.mxu0 0
      %951 = vmatpush1.bf16.xpose.msra.mxu0 0
      %952 = vmatprep.subr.bf16.mxu0 0
      %953 = vmatpush1.bf16.xpose.msra.mxu0 0
      %954 = vmatprep.subr.bf16.mxu0 0
      %955 = vmatpush1.bf16.xpose.msra.mxu0 0
      %956 = vmatprep.subr.bf16.mxu0 0
      %957 = vmatpush1.bf16.xpose.msra.mxu0 0
      %958 = vmatprep.subr.bf16.mxu0 0
      %959 = vmatpush1.bf16.xpose.msra.mxu0 0
      %960 = vmatprep.subr.bf16.mxu0 0
      %961 = vmatpush1.bf16.xpose.msra.mxu0 0
      %962 = vmatprep.mubr.bf16.mxu0 0
      %963 = vmatmul.mubr.bf16.gmra.mrb[0].mxu0 %v919
      %v964 = vpop.f32.mrb[0].mxu0
      %v965 = vadd.f32 0.0, %v964
      %v966 = vpop.f32.mrb[0].mxu0
      %v967 = vpop.f32.mrb[0].mxu0
      %v968 = vadd.f32 0.0, %v967
      %v969 = vpop.f32.mrb[0].mxu0
      %970 = vmatprep.mubr.bf16.mxu0 0
      %971 = vmatmul.mubr.bf16.gmra.mrb[0].mxu0 %v922
      %v972 = vpop.f32.mrb[0].mxu0
      %v973 = vadd.f32 0.0, %v972
      %v974 = vpop.f32.mrb[0].mxu0
      %v975 = vpop.f32.mrb[0].mxu0
      %v976 = vpop.f32.mrb[0].mxu0
      %977 = vdwg.mxu0
      %v978 = vmul.f32 %v965, 0.17677669
      %v979 = vmul.f32 %v968, 0.17677669
      %v980 = vmul.f32 %v973, 0.17677669
      %v981 = vsel %vm735, %v978, -inf
      %982 = vmax.xlane.f32.xlu0 %v981
      %v983 = vpop.xlane.xlu0 %982
      %v984 = vsel %vm735, %v979, -inf
      %985 = vmax.xlane.f32.xlu0 %v984
      %v986 = vpop.xlane.xlu0 %985
      %v987 = vsel %vm742, %v980, -inf
      %988 = vmax.xlane.f32.xlu0 %v987
      %v989 = vpop.xlane.xlu0 %988
      %v990 = vsub.f32 %v978, %v983
      %v991 = vsub.f32 %v979, %v986
      %v992 = vsub.f32 %v980, %v989
      %v993 = vmul.f32 %v990, 1.442695
      %v994 = vpow.pop %v993
      %v995 = vmul.f32 %v991, 1.442695
      %v996 = vpow.pop %v995
      %v997 = vmul.f32 %v992, 1.442695
      %v998 = vpow.pop %v997
      %v999 = vsel %vm735, %v994, 0.0
      %1000 = vadd.xlane.f32.xlu0 %v999
      %v1001 = vpop.xlane.xlu0 %1000
      %v1002 = vsel %vm735, %v996, 0.0
      %1003 = vadd.xlane.f32.xlu0 %v1002
      %v1004 = vpop.xlane.xlu0 %1003
      %v1005 = vsel %vm742, %v998, 0.0
      %1006 = vadd.xlane.f32.xlu0 %v1005
      %v1007 = vpop.xlane.xlu0 %1006
      %v1008 = vrcp.pop %v1001
      %v1009 = vrcp.pop %v1004
      %v1010 = vrcp.pop %v1007
      %v1011 = vmul.f32 %v994, %v1008
      %v1012 = vmul.f32 %v996, %v1009
      %v1013 = vmul.f32 %v998, %v1010
      %v1014 = vpack.c.bf16 %v1012, %v1011
      %v1015 = vpack.c.bf16 %v1013, %v1013
      %1018 = vrot.lane.b32.xlu0 %v669, 96
      %v1019 = vpop.permute.xlu0 %1018
      %1020 = vrot.lane.b32.xlu0 %v670, 96
      %v1021 = vpop.permute.xlu0 %1020
      %v1024 = vsel %vm735, %v1014, 0
      %v1027 = vsel %vm735, %v1015, 0
      %v1030 = vand.u32 %v1021, %v779
      %1032 = vmatprep.subr.bf16.mxu0 0
      %1033 = vmatpush1.bf16.msra.mxu0 %v1019
      %1034 = vmatprep.subr.bf16.mxu0 0
      %1035 = vmatpush1.bf16.msra.mxu0 %v1030
      %1036 = vmatprep.subr.bf16.mxu0 0
      %1037 = vmatpush1.bf16.msra.mxu0 0
      %1038 = vmatprep.subr.bf16.mxu0 0
      %1039 = vmatpush1.bf16.msra.mxu0 0
      %1040 = vmatprep.subr.bf16.mxu0 0
      %1041 = vmatpush1.bf16.msra.mxu0 0
      %1042 = vmatprep.subr.bf16.mxu0 0
      %1043 = vmatpush1.bf16.msra.mxu0 0
      %1044 = vmatprep.subr.bf16.mxu0 0
      %1045 = vmatpush1.bf16.msra.mxu0 0
      %1046 = vmatprep.subr.bf16.mxu0 0
      %1047 = vmatpush1.bf16.msra.mxu0 0
      %1048 = vmatprep.subr.bf16.mxu0 0
      %1049 = vmatpush1.bf16.msra.mxu0 0
      %1050 = vmatprep.subr.bf16.mxu0 0
      %1051 = vmatpush1.bf16.msra.mxu0 0
      %1052 = vmatprep.subr.bf16.mxu0 0
      %1053 = vmatpush1.bf16.msra.mxu0 0
      %1054 = vmatprep.subr.bf16.mxu0 0
      %1055 = vmatpush1.bf16.msra.mxu0 0
      %1056 = vmatprep.subr.bf16.mxu0 0
      %1057 = vmatpush1.bf16.msra.mxu0 0
      %1058 = vmatprep.subr.bf16.mxu0 0
      %1059 = vmatpush1.bf16.msra.mxu0 0
      %1060 = vmatprep.subr.bf16.mxu0 0
      %1061 = vmatpush1.bf16.msra.mxu0 0
      %1062 = vmatprep.subr.bf16.mxu0 0
      %1063 = vmatpush1.bf16.msra.mxu0 0
      %1064 = vmatprep.mubr.bf16.mxu0 0
      %1065 = vmatmul.mubr.bf16.gmra.mrb[0].mxu0 %v1024
      %v1066 = vpop.f32.mrb[0].mxu0
      %v1067 = vadd.f32 0.0, %v1066
      %v1068 = vpop.f32.mrb[0].mxu0
      %v1069 = vpop.f32.mrb[0].mxu0
      %v1070 = vadd.f32 0.0, %v1069
      %v1071 = vpop.f32.mrb[0].mxu0
      %1072 = vmatprep.mubr.bf16.mxu0 0
      %1073 = vmatmul.mubr.bf16.gmra.mrb[0].mxu0 %v1027
      %v1074 = vpop.f32.mrb[0].mxu0
      %v1075 = vadd.f32 0.0, %v1074
      %v1076 = vpop.f32.mrb[0].mxu0
      %v1077 = vpop.f32.mrb[0].mxu0
      %v1078 = vpop.f32.mrb[0].mxu0
      %1079 = vdwg.mxu0
      %v1080 = vpack.c.bf16 %v1070, %v1067
      %v1081 = vpack.c.bf16 %v1075, %v1075
      %v1082 = vld [vmem:[%s3 + $0x10] sm:$0xf]
      %v1083 = vld [vmem:[%s3 + $0x14] sm:$0xf]
      %v1084 = vld [vmem:[%s3 + $0x18] sm:$0xf]
      %v1085 = vld [vmem:[%s3 + $0x1c] sm:$0xf]
      %v1090 = vunpack.c.l.b16 %v1082
      %v1091 = vunpack.c.l.b16 %v1083
      %v1092 = vunpack.c.l.b16 %v1084
      %v1093 = vunpack.c.l.b16 %v1085
      %v1094 = vpack.c.b16 %v1091, %v1090
      %v1095 = vpack.c.b16 %v1093, %v1092
      %v1099 = vsel %vm671, %v1080, 0
      %v1102 = vsel %vm671, %v1081, 0
      %1104 = vmatprep.subr.bf16.mxu0 0
      %1105 = vmatpush1.bf16.msra.mxu0 %v1094
      %1106 = vmatprep.subr.bf16.mxu0 0
      %1107 = vmatpush1.bf16.msra.mxu0 %v1095
      %1108 = vmatprep.subr.bf16.mxu0 0
      %1109 = vmatpush1.bf16.msra.mxu0 0
      %1110 = vmatprep.subr.bf16.mxu0 0
      %1111 = vmatpush1.bf16.msra.mxu0 0
      %1112 = vmatprep.subr.bf16.mxu0 0
      %1113 = vmatpush1.bf16.msra.mxu0 0
      %1114 = vmatprep.subr.bf16.mxu0 0
      %1115 = vmatpush1.bf16.msra.mxu0 0
      %1116 = vmatprep.subr.bf16.mxu0 0
      %1117 = vmatpush1.bf16.msra.mxu0 0
      %1118 = vmatprep.subr.bf16.mxu0 0
      %1119 = vmatpush1.bf16.msra.mxu0 0
      %1120 = vmatprep.subr.bf16.mxu0 0
      %1121 = vmatpush1.bf16.msra.mxu0 0
      %1122 = vmatprep.subr.bf16.mxu0 0
      %1123 = vmatpush1.bf16.msra.mxu0 0
      %1124 = vmatprep.subr.bf16.mxu0 0
      %1125 = vmatpush1.bf16.msra.mxu0 0
      %1126 = vmatprep.subr.bf16.mxu0 0
      %1127 = vmatpush1.bf16.msra.mxu0 0
      %1128 = vmatprep.subr.bf16.mxu0 0
      %1129 = vmatpush1.bf16.msra.mxu0 0
      %1130 = vmatprep.subr.bf16.mxu0 0
      %1131 = vmatpush1.bf16.msra.mxu0 0
      %1132 = vmatprep.subr.bf16.mxu0 0
      %1133 = vmatpush1.bf16.msra.mxu0 0
      %1134 = vmatprep.subr.bf16.mxu0 0
      %1135 = vmatpush1.bf16.msra.mxu0 0
      %1136 = vmatprep.mubr.bf16.mxu0 0
      %1137 = vmatmul.mubr.bf16.gmra.mrb[0].mxu0 %v1099
      %v1138 = vpop.f32.mrb[0].mxu0
      %v1139 = vadd.f32 0.0, %v1138
      %v1140 = vpop.f32.mrb[0].mxu0
      %v1141 = vpop.f32.mrb[0].mxu0
      %v1142 = vadd.f32 0.0, %v1141
      %v1143 = vpop.f32.mrb[0].mxu0
      %1144 = vmatprep.mubr.bf16.mxu0 0
      %1145 = vmatmul.mubr.bf16.gmra.mrb[0].mxu0 %v1102
      %v1146 = vpop.f32.mrb[0].mxu0
      %v1147 = vadd.f32 0.0, %v1146
      %v1148 = vpop.f32.mrb[0].mxu0
      %v1149 = vpop.f32.mrb[0].mxu0
      %v1150 = vpop.f32.mrb[0].mxu0
      %1151 = vdwg.mxu0
      %v1152 = vadd.f32 %v903, %v1139
      %v1153 = vadd.f32 %v904, %v1142
      %v1154 = vadd.f32 %v905, %v1147
      %1155 = vrot.lane.b32.xlu0 %v665, 64
      %v1156 = vpop.permute.xlu0 %1155
      %1157 = vrot.lane.b32.xlu0 %v666, 64
      %v1158 = vpop.permute.xlu0 %1157
      %1159 = vrot.lane.b32.xlu0 %v667, 64
      %v1160 = vpop.permute.xlu0 %1159
      %1161 = vrot.lane.b32.xlu0 %v668, 64
      %v1162 = vpop.permute.xlu0 %1161
      %v1164 = vsel %vm671, %v1156, 0
      %v1167 = vsel %vm671, %v1158, 0
      %v1170 = vsel %vm671, %v1160, 0
      %v1173 = vsel %vm671, %v1162, 0
      %1175 = vmatprep.subr.bf16.mxu0 0
      %1176 = vmatpush1.bf16.xpose.msra.mxu0 %v1170
      %1177 = vmatprep.subr.bf16.mxu0 0
      %1178 = vmatpush1.bf16.xpose.msra.mxu0 %v1173
      %1179 = vmatprep.subr.bf16.mxu0 0
      %1180 = vmatpush1.bf16.xpose.msra.mxu0 0
      %1181 = vmatprep.subr.bf16.mxu0 0
      %1182 = vmatpush1.bf16.xpose.msra.mxu0 0
      %1183 = vmatprep.subr.bf16.mxu0 0
      %1184 = vmatpush1.bf16.xpose.msra.mxu0 0
      %1185 = vmatprep.subr.bf16.mxu0 0
      %1186 = vmatpush1.bf16.xpose.msra.mxu0 0
      %1187 = vmatprep.subr.bf16.mxu0 0
      %1188 = vmatpush1.bf16.xpose.msra.mxu0 0
      %1189 = vmatprep.subr.bf16.mxu0 0
      %1190 = vmatpush1.bf16.xpose.msra.mxu0 0
      %1191 = vmatprep.subr.bf16.mxu0 0
      %1192 = vmatpush1.bf16.xpose.msra.mxu0 0
      %1193 = vmatprep.subr.bf16.mxu0 0
      %1194 = vmatpush1.bf16.xpose.msra.mxu0 0
      %1195 = vmatprep.subr.bf16.mxu0 0
      %1196 = vmatpush1.bf16.xpose.msra.mxu0 0
      %1197 = vmatprep.subr.bf16.mxu0 0
      %1198 = vmatpush1.bf16.xpose.msra.mxu0 0
      %1199 = vmatprep.subr.bf16.mxu0 0
      %1200 = vmatpush1.bf16.xpose.msra.mxu0 0
      %1201 = vmatprep.subr.bf16.mxu0 0
      %1202 = vmatpush1.bf16.xpose.msra.mxu0 0
      %1203 = vmatprep.subr.bf16.mxu0 0
      %1204 = vmatpush1.bf16.xpose.msra.mxu0 0
      %1205 = vmatprep.subr.bf16.mxu0 0
      %1206 = vmatpush1.bf16.xpose.msra.mxu0 0
      %1207 = vmatprep.mubr.bf16.mxu0 0
      %1208 = vmatmul.mubr.bf16.gmra.mrb[0].mxu0 %v1164
      %v1209 = vpop.f32.mrb[0].mxu0
      %v1210 = vadd.f32 0.0, %v1209
      %v1211 = vpop.f32.mrb[0].mxu0
      %v1212 = vpop.f32.mrb[0].mxu0
      %v1213 = vadd.f32 0.0, %v1212
      %v1214 = vpop.f32.mrb[0].mxu0
      %1215 = vmatprep.mubr.bf16.mxu0 0
      %1216 = vmatmul.mubr.bf16.gmra.mrb[0].mxu0 %v1167
      %v1217 = vpop.f32.mrb[0].mxu0
      %v1218 = vadd.f32 0.0, %v1217
      %v1219 = vpop.f32.mrb[0].mxu0
      %v1220 = vpop.f32.mrb[0].mxu0
      %v1221 = vpop.f32.mrb[0].mxu0
      %1222 = vdwg.mxu0
      %v1223 = vmul.f32 %v1210, 0.17677669
      %v1224 = vmul.f32 %v1213, 0.17677669
      %v1225 = vmul.f32 %v1218, 0.17677669
      %v1226 = vsel %vm735, %v1223, -inf
      %1227 = vmax.xlane.f32.xlu0 %v1226
      %v1228 = vpop.xlane.xlu0 %1227
      %v1229 = vsel %vm735, %v1224, -inf
      %1230 = vmax.xlane.f32.xlu0 %v1229
      %v1231 = vpop.xlane.xlu0 %1230
      %v1232 = vsel %vm742, %v1225, -inf
      %1233 = vmax.xlane.f32.xlu0 %v1232
      %v1234 = vpop.xlane.xlu0 %1233
      %v1235 = vsub.f32 %v1223, %v1228
      %v1236 = vsub.f32 %v1224, %v1231
      %v1237 = vsub.f32 %v1225, %v1234
      %v1238 = vmul.f32 %v1235, 1.442695
      %v1239 = vpow.pop %v1238
      %v1240 = vmul.f32 %v1236, 1.442695
      %v1241 = vpow.pop %v1240
      %v1242 = vmul.f32 %v1237, 1.442695
      %v1243 = vpow.pop %v1242
      %v1244 = vsel %vm735, %v1239, 0.0
      %1245 = vadd.xlane.f32.xlu0 %v1244
      %v1246 = vpop.xlane.xlu0 %1245
      %v1247 = vsel %vm735, %v1241, 0.0
      %1248 = vadd.xlane.f32.xlu0 %v1247
      %v1249 = vpop.xlane.xlu0 %1248
      %v1250 = vsel %vm742, %v1243, 0.0
      %1251 = vadd.xlane.f32.xlu0 %v1250
      %v1252 = vpop.xlane.xlu0 %1251
      %v1253 = vrcp.pop %v1246
      %v1254 = vrcp.pop %v1249
      %v1255 = vrcp.pop %v1252
      %v1256 = vmul.f32 %v1239, %v1253
      %v1257 = vmul.f32 %v1241, %v1254
      %v1258 = vmul.f32 %v1243, %v1255
      %v1259 = vpack.c.bf16 %v1257, %v1256
      %v1260 = vpack.c.bf16 %v1258, %v1258
      %1261 = vrot.lane.b32.xlu0 %v669, 64
      %v1262 = vpop.permute.xlu0 %1261
      %1263 = vrot.lane.b32.xlu0 %v670, 64
      %v1264 = vpop.permute.xlu0 %1263
      %v1267 = vsel %vm735, %v1259, 0
      %v1270 = vsel %vm735, %v1260, 0
      %v1273 = vand.u32 %v1264, %v779
      %1275 = vmatprep.subr.bf16.mxu0 0
      %1276 = vmatpush1.bf16.msra.mxu0 %v1262
      %1277 = vmatprep.subr.bf16.mxu0 0
      %1278 = vmatpush1.bf16.msra.mxu0 %v1273
      %1279 = vmatprep.subr.bf16.mxu0 0
      %1280 = vmatpush1.bf16.msra.mxu0 0
      %1281 = vmatprep.subr.bf16.mxu0 0
      %1282 = vmatpush1.bf16.msra.mxu0 0
      %1283 = vmatprep.subr.bf16.mxu0 0
      %1284 = vmatpush1.bf16.msra.mxu0 0
      %1285 = vmatprep.subr.bf16.mxu0 0
      %1286 = vmatpush1.bf16.msra.mxu0 0
      %1287 = vmatprep.subr.bf16.mxu0 0
      %1288 = vmatpush1.bf16.msra.mxu0 0
      %1289 = vmatprep.subr.bf16.mxu0 0
      %1290 = vmatpush1.bf16.msra.mxu0 0
      %1291 = vmatprep.subr.bf16.mxu0 0
      %1292 = vmatpush1.bf16.msra.mxu0 0
      %1293 = vmatprep.subr.bf16.mxu0 0
      %1294 = vmatpush1.bf16.msra.mxu0 0
      %1295 = vmatprep.subr.bf16.mxu0 0
      %1296 = vmatpush1.bf16.msra.mxu0 0
      %1297 = vmatprep.subr.bf16.mxu0 0
      %1298 = vmatpush1.bf16.msra.mxu0 0
      %1299 = vmatprep.subr.bf16.mxu0 0
      %1300 = vmatpush1.bf16.msra.mxu0 0
      %1301 = vmatprep.subr.bf16.mxu0 0
      %1302 = vmatpush1.bf16.msra.mxu0 0
      %1303 = vmatprep.subr.bf16.mxu0 0
      %1304 = vmatpush1.bf16.msra.mxu0 0
      %1305 = vmatprep.subr.bf16.mxu0 0
      %1306 = vmatpush1.bf16.msra.mxu0 0
      %1307 = vmatprep.mubr.bf16.mxu0 0
      %1308 = vmatmul.mubr.bf16.gmra.mrb[0].mxu0 %v1267
      %v1309 = vpop.f32.mrb[0].mxu0
      %v1310 = vadd.f32 0.0, %v1309
      %v1311 = vpop.f32.mrb[0].mxu0
      %v1312 = vpop.f32.mrb[0].mxu0
      %v1313 = vadd.f32 0.0, %v1312
      %v1314 = vpop.f32.mrb[0].mxu0
      %1315 = vmatprep.mubr.bf16.mxu0 0
      %1316 = vmatmul.mubr.bf16.gmra.mrb[0].mxu0 %v1270
      %v1317 = vpop.f32.mrb[0].mxu0
      %v1318 = vadd.f32 0.0, %v1317
      %v1319 = vpop.f32.mrb[0].mxu0
      %v1320 = vpop.f32.mrb[0].mxu0
      %v1321 = vpop.f32.mrb[0].mxu0
      %1322 = vdwg.mxu0
      %v1323 = vpack.c.bf16 %v1313, %v1310
      %v1324 = vpack.c.bf16 %v1318, %v1318
      %v1325 = vld [vmem:[%s3 + $0x20] sm:$0xf]
      %v1326 = vld [vmem:[%s3 + $0x24] sm:$0xf]
      %v1327 = vld [vmem:[%s3 + $0x28] sm:$0xf]
      %v1328 = vld [vmem:[%s3 + $0x2c] sm:$0xf]
      %v1333 = vunpack.c.l.b16 %v1325
      %v1334 = vunpack.c.l.b16 %v1326
      %v1335 = vunpack.c.l.b16 %v1327
      %v1336 = vunpack.c.l.b16 %v1328
      %v1337 = vpack.c.b16 %v1334, %v1333
      %v1338 = vpack.c.b16 %v1336, %v1335
      %v1342 = vsel %vm671, %v1323, 0
      %v1345 = vsel %vm671, %v1324, 0
      %1347 = vmatprep.subr.bf16.mxu0 0
      %1348 = vmatpush1.bf16.msra.mxu0 %v1337
      %1349 = vmatprep.subr.bf16.mxu0 0
      %1350 = vmatpush1.bf16.msra.mxu0 %v1338
      %1351 = vmatprep.subr.bf16.mxu0 0
      %1352 = vmatpush1.bf16.msra.mxu0 0
      %1353 = vmatprep.subr.bf16.mxu0 0
      %1354 = vmatpush1.bf16.msra.mxu0 0
      %1355 = vmatprep.subr.bf16.mxu0 0
      %1356 = vmatpush1.bf16.msra.mxu0 0
      %1357 = vmatprep.subr.bf16.mxu0 0
      %1358 = vmatpush1.bf16.msra.mxu0 0
      %1359 = vmatprep.subr.bf16.mxu0 0
      %1360 = vmatpush1.bf16.msra.mxu0 0
      %1361 = vmatprep.subr.bf16.mxu0 0
      %1362 = vmatpush1.bf16.msra.mxu0 0
      %1363 = vmatprep.subr.bf16.mxu0 0
      %1364 = vmatpush1.bf16.msra.mxu0 0
      %1365 = vmatprep.subr.bf16.mxu0 0
      %1366 = vmatpush1.bf16.msra.mxu0 0
      %1367 = vmatprep.subr.bf16.mxu0 0
      %1368 = vmatpush1.bf16.msra.mxu0 0
      %1369 = vmatprep.subr.bf16.mxu0 0
      %1370 = vmatpush1.bf16.msra.mxu0 0
      %1371 = vmatprep.subr.bf16.mxu0 0
      %1372 = vmatpush1.bf16.msra.mxu0 0
      %1373 = vmatprep.subr.bf16.mxu0 0
      %1374 = vmatpush1.bf16.msra.mxu0 0
      %1375 = vmatprep.subr.bf16.mxu0 0
      %1376 = vmatpush1.bf16.msra.mxu0 0
      %1377 = vmatprep.subr.bf16.mxu0 0
      %1378 = vmatpush1.bf16.msra.mxu0 0
      %1379 = vmatprep.mubr.bf16.mxu0 0
      %1380 = vmatmul.mubr.bf16.gmra.mrb[0].mxu0 %v1342
      %v1381 = vpop.f32.mrb[0].mxu0
      %v1382 = vadd.f32 0.0, %v1381
      %v1383 = vpop.f32.mrb[0].mxu0
      %v1384 = vpop.f32.mrb[0].mxu0
      %v1385 = vadd.f32 0.0, %v1384
      %v1386 = vpop.f32.mrb[0].mxu0
      %1387 = vmatprep.mubr.bf16.mxu0 0
      %1388 = vmatmul.mubr.bf16.gmra.mrb[0].mxu0 %v1345
      %v1389 = vpop.f32.mrb[0].mxu0
      %v1390 = vadd.f32 0.0, %v1389
      %v1391 = vpop.f32.mrb[0].mxu0
      %v1392 = vpop.f32.mrb[0].mxu0
      %v1393 = vpop.f32.mrb[0].mxu0
      %1394 = vdwg.mxu0
      %v1395 = vadd.f32 %v1152, %v1382
      %v1396 = vadd.f32 %v1153, %v1385
      %v1397 = vadd.f32 %v1154, %v1390
      %1398 = vrot.lane.b32.xlu0 %v665, 32
      %v1399 = vpop.permute.xlu0 %1398
      %1400 = vrot.lane.b32.xlu0 %v666, 32
      %v1401 = vpop.permute.xlu0 %1400
      %1402 = vrot.lane.b32.xlu0 %v667, 32
      %v1403 = vpop.permute.xlu0 %1402
      %1404 = vrot.lane.b32.xlu0 %v668, 32
      %v1405 = vpop.permute.xlu0 %1404
      %v1407 = vsel %vm671, %v1399, 0
      %v1410 = vsel %vm671, %v1401, 0
      %v1413 = vsel %vm671, %v1403, 0
      %v1416 = vsel %vm671, %v1405, 0
      %1418 = vmatprep.subr.bf16.mxu0 0
      %1419 = vmatpush1.bf16.xpose.msra.mxu0 %v1413
      %1420 = vmatprep.subr.bf16.mxu0 0
      %1421 = vmatpush1.bf16.xpose.msra.mxu0 %v1416
      %1422 = vmatprep.subr.bf16.mxu0 0
      %1423 = vmatpush1.bf16.xpose.msra.mxu0 0
      %1424 = vmatprep.subr.bf16.mxu0 0
      %1425 = vmatpush1.bf16.xpose.msra.mxu0 0
      %1426 = vmatprep.subr.bf16.mxu0 0
      %1427 = vmatpush1.bf16.xpose.msra.mxu0 0
      %1428 = vmatprep.subr.bf16.mxu0 0
      %1429 = vmatpush1.bf16.xpose.msra.mxu0 0
      %1430 = vmatprep.subr.bf16.mxu0 0
      %1431 = vmatpush1.bf16.xpose.msra.mxu0 0
      %1432 = vmatprep.subr.bf16.mxu0 0
      %1433 = vmatpush1.bf16.xpose.msra.mxu0 0
      %1434 = vmatprep.subr.bf16.mxu0 0
      %1435 = vmatpush1.bf16.xpose.msra.mxu0 0
      %1436 = vmatprep.subr.bf16.mxu0 0
      %1437 = vmatpush1.bf16.xpose.msra.mxu0 0
      %1438 = vmatprep.subr.bf16.mxu0 0
      %1439 = vmatpush1.bf16.xpose.msra.mxu0 0
      %1440 = vmatprep.subr.bf16.mxu0 0
      %1441 = vmatpush1.bf16.xpose.msra.mxu0 0
      %1442 = vmatprep.subr.bf16.mxu0 0
      %1443 = vmatpush1.bf16.xpose.msra.mxu0 0
      %1444 = vmatprep.subr.bf16.mxu0 0
      %1445 = vmatpush1.bf16.xpose.msra.mxu0 0
      %1446 = vmatprep.subr.bf16.mxu0 0
      %1447 = vmatpush1.bf16.xpose.msra.mxu0 0
      %1448 = vmatprep.subr.bf16.mxu0 0
      %1449 = vmatpush1.bf16.xpose.msra.mxu0 0
      %1450 = vmatprep.mubr.bf16.mxu0 0
      %1451 = vmatmul.mubr.bf16.gmra.mrb[0].mxu0 %v1407
      %v1452 = vpop.f32.mrb[0].mxu0
      %v1453 = vadd.f32 0.0, %v1452
      %v1454 = vpop.f32.mrb[0].mxu0
      %v1455 = vpop.f32.mrb[0].mxu0
      %v1456 = vadd.f32 0.0, %v1455
      %v1457 = vpop.f32.mrb[0].mxu0
      %1458 = vmatprep.mubr.bf16.mxu0 0
      %1459 = vmatmul.mubr.bf16.gmra.mrb[0].mxu0 %v1410
      %v1460 = vpop.f32.mrb[0].mxu0
      %v1461 = vadd.f32 0.0, %v1460
      %v1462 = vpop.f32.mrb[0].mxu0
      %v1463 = vpop.f32.mrb[0].mxu0
      %v1464 = vpop.f32.mrb[0].mxu0
      %1465 = vdwg.mxu0
      %v1466 = vmul.f32 %v1453, 0.17677669
      %v1467 = vmul.f32 %v1456, 0.17677669
      %v1468 = vmul.f32 %v1461, 0.17677669
      %v1469 = vsel %vm735, %v1466, -inf
      %1470 = vmax.xlane.f32.xlu0 %v1469
      %v1471 = vpop.xlane.xlu0 %1470
      %v1472 = vsel %vm735, %v1467, -inf
      %1473 = vmax.xlane.f32.xlu0 %v1472
      %v1474 = vpop.xlane.xlu0 %1473
      %v1475 = vsel %vm742, %v1468, -inf
      %1476 = vmax.xlane.f32.xlu0 %v1475
      %v1477 = vpop.xlane.xlu0 %1476
      %v1478 = vsub.f32 %v1466, %v1471
      %v1479 = vsub.f32 %v1467, %v1474
      %v1480 = vsub.f32 %v1468, %v1477
      %v1481 = vmul.f32 %v1478, 1.442695
      %v1482 = vpow.pop %v1481
      %v1483 = vmul.f32 %v1479, 1.442695
      %v1484 = vpow.pop %v1483
      %v1485 = vmul.f32 %v1480, 1.442695
      %v1486 = vpow.pop %v1485
      %v1487 = vsel %vm735, %v1482, 0.0
      %1488 = vadd.xlane.f32.xlu0 %v1487
      %v1489 = vpop.xlane.xlu0 %1488
      %v1490 = vsel %vm735, %v1484, 0.0
      %1491 = vadd.xlane.f32.xlu0 %v1490
      %v1492 = vpop.xlane.xlu0 %1491
      %v1493 = vsel %vm742, %v1486, 0.0
      %1494 = vadd.xlane.f32.xlu0 %v1493
      %v1495 = vpop.xlane.xlu0 %1494
      %v1496 = vrcp.pop %v1489
      %v1497 = vrcp.pop %v1492
      %v1498 = vrcp.pop %v1495
      %v1499 = vmul.f32 %v1482, %v1496
      %v1500 = vmul.f32 %v1484, %v1497
      %v1501 = vmul.f32 %v1486, %v1498
      %v1502 = vpack.c.bf16 %v1500, %v1499
      %v1503 = vpack.c.bf16 %v1501, %v1501
      %1504 = vrot.lane.b32.xlu0 %v669, 32
      %v1505 = vpop.permute.xlu0 %1504
      %1506 = vrot.lane.b32.xlu0 %v670, 32
      %v1507 = vpop.permute.xlu0 %1506
      %v1510 = vsel %vm735, %v1502, 0
      %v1513 = vsel %vm735, %v1503, 0
      %v1516 = vand.u32 %v1507, %v779
      %1518 = vmatprep.subr.bf16.mxu0 0
      %1519 = vmatpush1.bf16.msra.mxu0 %v1505
      %1520 = vmatprep.subr.bf16.mxu0 0
      %1521 = vmatpush1.bf16.msra.mxu0 %v1516
      %1522 = vmatprep.subr.bf16.mxu0 0
      %1523 = vmatpush1.bf16.msra.mxu0 0
      %1524 = vmatprep.subr.bf16.mxu0 0
      %1525 = vmatpush1.bf16.msra.mxu0 0
      %1526 = vmatprep.subr.bf16.mxu0 0
      %1527 = vmatpush1.bf16.msra.mxu0 0
      %1528 = vmatprep.subr.bf16.mxu0 0
      %1529 = vmatpush1.bf16.msra.mxu0 0
      %1530 = vmatprep.subr.bf16.mxu0 0
      %1531 = vmatpush1.bf16.msra.mxu0 0
      %1532 = vmatprep.subr.bf16.mxu0 0
      %1533 = vmatpush1.bf16.msra.mxu0 0
      %1534 = vmatprep.subr.bf16.mxu0 0
      %1535 = vmatpush1.bf16.msra.mxu0 0
      %1536 = vmatprep.subr.bf16.mxu0 0
      %1537 = vmatpush1.bf16.msra.mxu0 0
      %1538 = vmatprep.subr.bf16.mxu0 0
      %1539 = vmatpush1.bf16.msra.mxu0 0
      %1540 = vmatprep.subr.bf16.mxu0 0
      %1541 = vmatpush1.bf16.msra.mxu0 0
      %1542 = vmatprep.subr.bf16.mxu0 0
      %1543 = vmatpush1.bf16.msra.mxu0 0
      %1544 = vmatprep.subr.bf16.mxu0 0
      %1545 = vmatpush1.bf16.msra.mxu0 0
      %1546 = vmatprep.subr.bf16.mxu0 0
      %1547 = vmatpush1.bf16.msra.mxu0 0
      %1548 = vmatprep.subr.bf16.mxu0 0
      %1549 = vmatpush1.bf16.msra.mxu0 0
      %1550 = vmatprep.mubr.bf16.mxu0 0
      %1551 = vmatmul.mubr.bf16.gmra.mrb[0].mxu0 %v1510
      %v1552 = vpop.f32.mrb[0].mxu0
      %v1553 = vadd.f32 0.0, %v1552
      %v1554 = vpop.f32.mrb[0].mxu0
      %v1555 = vpop.f32.mrb[0].mxu0
      %v1556 = vadd.f32 0.0, %v1555
      %v1557 = vpop.f32.mrb[0].mxu0
      %1558 = vmatprep.mubr.bf16.mxu0 0
      %1559 = vmatmul.mubr.bf16.gmra.mrb[0].mxu0 %v1513
      %v1560 = vpop.f32.mrb[0].mxu0
      %v1561 = vadd.f32 0.0, %v1560
      %v1562 = vpop.f32.mrb[0].mxu0
      %v1563 = vpop.f32.mrb[0].mxu0
      %v1564 = vpop.f32.mrb[0].mxu0
      %1565 = vdwg.mxu0
      %v1566 = vpack.c.bf16 %v1556, %v1553
      %v1567 = vpack.c.bf16 %v1561, %v1561
      %v1568 = vld [vmem:[%s3 + $0x30] sm:$0xf]
      %v1569 = vld [vmem:[%s3 + $0x34] sm:$0xf]
      %v1570 = vld [vmem:[%s3 + $0x38] sm:$0xf]
      %v1571 = vld [vmem:[%s3 + $0x3c] sm:$0xf]
      %v1576 = vunpack.c.l.b16 %v1568
      %v1577 = vunpack.c.l.b16 %v1569
      %v1578 = vunpack.c.l.b16 %v1570
      %v1579 = vunpack.c.l.b16 %v1571
      %v1580 = vpack.c.b16 %v1577, %v1576
      %v1581 = vpack.c.b16 %v1579, %v1578
      %v1585 = vsel %vm671, %v1566, 0
      %v1588 = vsel %vm671, %v1567, 0
      %1590 = vmatprep.subr.bf16.mxu0 0
      %1591 = vmatpush1.bf16.msra.mxu0 %v1580
      %1592 = vmatprep.subr.bf16.mxu0 0
      %1593 = vmatpush1.bf16.msra.mxu0 %v1581
      %1594 = vmatprep.subr.bf16.mxu0 0
      %1595 = vmatpush1.bf16.msra.mxu0 0
      %1596 = vmatprep.subr.bf16.mxu0 0
      %1597 = vmatpush1.bf16.msra.mxu0 0
      %1598 = vmatprep.subr.bf16.mxu0 0
      %1599 = vmatpush1.bf16.msra.mxu0 0
      %1600 = vmatprep.subr.bf16.mxu0 0
      %1601 = vmatpush1.bf16.msra.mxu0 0
      %1602 = vmatprep.subr.bf16.mxu0 0
      %1603 = vmatpush1.bf16.msra.mxu0 0
      %1604 = vmatprep.subr.bf16.mxu0 0
      %1605 = vmatpush1.bf16.msra.mxu0 0
      %1606 = vmatprep.subr.bf16.mxu0 0
      %1607 = vmatpush1.bf16.msra.mxu0 0
      %1608 = vmatprep.subr.bf16.mxu0 0
      %1609 = vmatpush1.bf16.msra.mxu0 0
      %1610 = vmatprep.subr.bf16.mxu0 0
      %1611 = vmatpush1.bf16.msra.mxu0 0
      %1612 = vmatprep.subr.bf16.mxu0 0
      %1613 = vmatpush1.bf16.msra.mxu0 0
      %1614 = vmatprep.subr.bf16.mxu0 0
      %1615 = vmatpush1.bf16.msra.mxu0 0
      %1616 = vmatprep.subr.bf16.mxu0 0
      %1617 = vmatpush1.bf16.msra.mxu0 0
      %1618 = vmatprep.subr.bf16.mxu0 0
      %1619 = vmatpush1.bf16.msra.mxu0 0
      %1620 = vmatprep.subr.bf16.mxu0 0
      %1621 = vmatpush1.bf16.msra.mxu0 0
      %1622 = vmatprep.mubr.bf16.mxu0 0
      %1623 = vmatmul.mubr.bf16.gmra.mrb[0].mxu0 %v1585
      %v1624 = vpop.f32.mrb[0].mxu0
      %v1625 = vadd.f32 0.0, %v1624
      %v1626 = vpop.f32.mrb[0].mxu0
      %v1627 = vpop.f32.mrb[0].mxu0
      %v1628 = vadd.f32 0.0, %v1627
      %v1629 = vpop.f32.mrb[0].mxu0
      %1630 = vmatprep.mubr.bf16.mxu0 0
      %1631 = vmatmul.mubr.bf16.gmra.mrb[0].mxu0 %v1588
      %v1632 = vpop.f32.mrb[0].mxu0
      %v1633 = vadd.f32 0.0, %v1632
      %v1634 = vpop.f32.mrb[0].mxu0
      %v1635 = vpop.f32.mrb[0].mxu0
      %v1636 = vpop.f32.mrb[0].mxu0
      %1637 = vdwg.mxu0
      %v1638 = vadd.f32 %v1395, %v1625
      %v1639 = vadd.f32 %v1396, %v1628
      %v1640 = vadd.f32 %v1397, %v1633
      %1641 = vadd.xlane.f32.xlu0 %v1638
      %v1642 = vpop.xlane.xlu0 %1641
      %1643 = vadd.xlane.f32.xlu0 %v1639
      %v1644 = vpop.xlane.xlu0 %1643
      %v1645 = vsel %vm344, %v1640, 0.0
      %1646 = vadd.xlane.f32.xlu0 %v1645
      %v1647 = vpop.xlane.xlu0 %1646
      %v1648 = vmul.f32 %v1642, %v348
      %v1649 = vmul.f32 %v1644, %v348
      %v1650 = vmul.f32 %v1647, %v348
      %v1651 = vsub.f32 %v1638, %v1648
      %v1652 = vsub.f32 %v1639, %v1649
      %v1653 = vsub.f32 %v1640, %v1650
      %v1654 = vmul.f32 %v1651, %v1651
      %v1655 = vmul.f32 %v1652, %v1652
      %v1656 = vmul.f32 %v1653, %v1653
      %1657 = vadd.xlane.f32.xlu0 %v1654
      %v1658 = vpop.xlane.xlu0 %1657
      %1659 = vadd.xlane.f32.xlu0 %v1655
      %v1660 = vpop.xlane.xlu0 %1659
      %v1661 = vsel %vm344, %v1656, 0.0
      %1662 = vadd.xlane.f32.xlu0 %v1661
      %v1663 = vpop.xlane.xlu0 %1662
      %v1664 = vmul.f32 %v1658, %v348
      %v1665 = vmul.f32 %v1660, %v348
      %v1666 = vmul.f32 %v1663, %v348
      %v1667 = vadd.f32 %v1664, 1e-06
      %v1668 = vadd.f32 %v1665, 1e-06
      %v1669 = vadd.f32 %v1666, 1e-06
      %v1670 = vrsqrt.pop %v1667
      %v1671 = vrsqrt.pop %v1668
      %v1672 = vrsqrt.pop %v1669
      %v1673 = vmul.f32 %v1651, %v1670
      %v1674 = vmul.f32 %v1652, %v1671
      %v1675 = vmul.f32 %v1653, %v1672
      %v1676 = vpack.c.bf16 %v1674, %v1673
      %v1677 = vpack.c.bf16 %v1675, %v1675
      %v1678 = vld [vmem:[%s5] sm:$0xff]
      %v1679 = vld [vmem:[%s5 + $0x8] sm:$0xff]
      %v1680 = vld [vmem:[%s5 + $0x10] sm:$0xff]
      %v1681 = vld [vmem:[%s5 + $0x18] sm:$0xff]
      %v1682 = vld [vmem:[%s5 + $0x20] sm:$0xff]
      %v1683 = vld [vmem:[%s5 + $0x28] sm:$0xff]
      %v1684 = vld [vmem:[%s5 + $0x30] sm:$0xff]
      %v1685 = vld [vmem:[%s5 + $0x38] sm:$0xff]
      %v1686 = vld [vmem:[%s5 + $0x40] sm:$0xff]
      %v1687 = vld [vmem:[%s5 + $0x48] sm:$0xff]
      %v1688 = vld [vmem:[%s5 + $0x50] sm:$0xff]
      %v1689 = vld [vmem:[%s5 + $0x58] sm:$0xff]
      %v1690 = vld [vmem:[%s5 + $0x60] sm:$0xff]
      %v1691 = vld [vmem:[%s5 + $0x68] sm:$0xff]
      %v1692 = vld [vmem:[%s5 + $0x70] sm:$0xff]
      %v1693 = vld [vmem:[%s5 + $0x78] sm:$0xff]
      %v1694 = vld [vmem:[%s5 + $0x80] sm:$0xff]
      %v1695 = vld [vmem:[%s5 + $0x88] sm:$0xff]
      %v1696 = vld [vmem:[%s5 + $0x90] sm:$0xff]
      %v1697 = vld [vmem:[%s5 + $0x98] sm:$0xff]
      %v1698 = vld [vmem:[%s5 + $0xa0] sm:$0xff]
      %v1699 = vld [vmem:[%s5 + $0xa8] sm:$0xff]
      %v1700 = vld [vmem:[%s5 + $0xb0] sm:$0xff]
      %v1701 = vld [vmem:[%s5 + $0xb8] sm:$0xff]
      %v1702 = vld [vmem:[%s5 + $0xc0] sm:$0xff]
      %v1703 = vld [vmem:[%s5 + $0xc8] sm:$0xff]
      %v1704 = vld [vmem:[%s5 + $0xd0] sm:$0xff]
      %v1705 = vld [vmem:[%s5 + $0xd8] sm:$0xff]
      %v1706 = vld [vmem:[%s5 + $0xe0] sm:$0xff]
      %v1707 = vld [vmem:[%s5 + $0xe8] sm:$0xff]
      %v1708 = vld [vmem:[%s5 + $0xf0] sm:$0xff]
      %v1709 = vld [vmem:[%s5 + $0xf8] sm:$0xff]
      %v1710 = vld [vmem:[%s6] sm:$0xf]
      %v1712 = vlaneseq
      %v1713 = vshrl.u32 %v1712, 7
      %v1714 = vsub.s32 0, %v1713
      %v1715 = vrot.slane %v1710, %v1714
      %v1716 = vlaneseq
      %v1717 = vshrl.u32 %v1716, 7
      %v1718 = vsub.s32 1, %v1717
      %v1719 = vrot.slane %v1710, %v1718
      %v1720 = vlaneseq
      %v1721 = vshrl.u32 %v1720, 7
      %v1722 = vsub.s32 2, %v1721
      %v1723 = vrot.slane %v1710, %v1722
      %v1724 = vlaneseq
      %v1725 = vshrl.u32 %v1724, 7
      %v1726 = vsub.s32 3, %v1725
      %v1727 = vrot.slane %v1710, %v1726
      %v1764 = vunpack.c.l.b16 %v1678
      %v1765 = vunpack.c.h.b16 %v1678
      %v1766 = vunpack.c.l.b16 %v1679
      %v1767 = vunpack.c.h.b16 %v1679
      %v1768 = vunpack.c.l.b16 %v1680
      %v1769 = vunpack.c.h.b16 %v1680
      %v1770 = vunpack.c.l.b16 %v1681
      %v1771 = vunpack.c.h.b16 %v1681
      %v1772 = vunpack.c.l.b16 %v1682
      %v1773 = vunpack.c.h.b16 %v1682
      %v1774 = vunpack.c.l.b16 %v1683
      %v1775 = vunpack.c.h.b16 %v1683
      %v1776 = vunpack.c.l.b16 %v1684
      %v1777 = vunpack.c.h.b16 %v1684
      %v1778 = vunpack.c.l.b16 %v1685
      %v1779 = vunpack.c.h.b16 %v1685
      %v1780 = vunpack.c.l.b16 %v1686
      %v1781 = vunpack.c.h.b16 %v1686
      %v1782 = vunpack.c.l.b16 %v1687
      %v1783 = vunpack.c.h.b16 %v1687
      %v1784 = vunpack.c.l.b16 %v1688
      %v1785 = vunpack.c.h.b16 %v1688
      %v1786 = vunpack.c.l.b16 %v1689
      %v1787 = vunpack.c.h.b16 %v1689
      %v1788 = vunpack.c.l.b16 %v1690
      %v1789 = vunpack.c.h.b16 %v1690
      %v1790 = vunpack.c.l.b16 %v1691
      %v1791 = vunpack.c.h.b16 %v1691
      %v1792 = vunpack.c.l.b16 %v1692
      %v1793 = vunpack.c.h.b16 %v1692
      %v1794 = vunpack.c.l.b16 %v1693
      %v1795 = vunpack.c.h.b16 %v1693
      %v1796 = vunpack.c.l.b16 %v1694
      %v1797 = vunpack.c.h.b16 %v1694
      %v1798 = vunpack.c.l.b16 %v1695
      %v1799 = vunpack.c.h.b16 %v1695
      %v1800 = vunpack.c.l.b16 %v1696
      %v1801 = vunpack.c.h.b16 %v1696
      %v1802 = vunpack.c.l.b16 %v1697
      %v1803 = vunpack.c.h.b16 %v1697
      %v1804 = vunpack.c.l.b16 %v1698
      %v1805 = vunpack.c.h.b16 %v1698
      %v1806 = vunpack.c.l.b16 %v1699
      %v1807 = vunpack.c.h.b16 %v1699
      %v1808 = vunpack.c.l.b16 %v1700
      %v1809 = vunpack.c.h.b16 %v1700
      %v1810 = vunpack.c.l.b16 %v1701
      %v1811 = vunpack.c.h.b16 %v1701
      %v1812 = vunpack.c.l.b16 %v1702
      %v1813 = vunpack.c.h.b16 %v1702
      %v1814 = vunpack.c.l.b16 %v1703
      %v1815 = vunpack.c.h.b16 %v1703
      %v1816 = vunpack.c.l.b16 %v1704
      %v1817 = vunpack.c.h.b16 %v1704
      %v1818 = vunpack.c.l.b16 %v1705
      %v1819 = vunpack.c.h.b16 %v1705
      %v1820 = vunpack.c.l.b16 %v1706
      %v1821 = vunpack.c.h.b16 %v1706
      %v1822 = vunpack.c.l.b16 %v1707
      %v1823 = vunpack.c.h.b16 %v1707
      %v1824 = vunpack.c.l.b16 %v1708
      %v1825 = vunpack.c.h.b16 %v1708
      %v1826 = vunpack.c.l.b16 %v1709
      %v1827 = vunpack.c.h.b16 %v1709
      %v1828 = vpack.c.b16 %v1768, %v1764
      %v1829 = vpack.c.b16 %v1769, %v1765
      %v1830 = vpack.c.b16 %v1770, %v1766
      %v1831 = vpack.c.b16 %v1771, %v1767
      %v1832 = vpack.c.b16 %v1776, %v1772
      %v1833 = vpack.c.b16 %v1777, %v1773
      %v1834 = vpack.c.b16 %v1778, %v1774
      %v1835 = vpack.c.b16 %v1779, %v1775
      %v1836 = vpack.c.b16 %v1784, %v1780
      %v1837 = vpack.c.b16 %v1785, %v1781
      %v1838 = vpack.c.b16 %v1786, %v1782
      %v1839 = vpack.c.b16 %v1787, %v1783
      %v1840 = vpack.c.b16 %v1792, %v1788
      %v1841 = vpack.c.b16 %v1793, %v1789
      %v1842 = vpack.c.b16 %v1794, %v1790
      %v1843 = vpack.c.b16 %v1795, %v1791
      %v1844 = vpack.c.b16 %v1800, %v1796
      %v1845 = vpack.c.b16 %v1801, %v1797
      %v1846 = vpack.c.b16 %v1802, %v1798
      %v1847 = vpack.c.b16 %v1803, %v1799
      %v1848 = vpack.c.b16 %v1808, %v1804
      %v1849 = vpack.c.b16 %v1809, %v1805
      %v1850 = vpack.c.b16 %v1810, %v1806
      %v1851 = vpack.c.b16 %v1811, %v1807
      %v1852 = vpack.c.b16 %v1816, %v1812
      %v1853 = vpack.c.b16 %v1817, %v1813
      %v1854 = vpack.c.b16 %v1818, %v1814
      %v1855 = vpack.c.b16 %v1819, %v1815
      %v1856 = vpack.c.b16 %v1824, %v1820
      %v1857 = vpack.c.b16 %v1825, %v1821
      %v1858 = vpack.c.b16 %v1826, %v1822
      %v1859 = vpack.c.b16 %v1827, %v1823
      %1892 = vmatprep.subr.bf16.mxu0 %v1829
      %1893 = vmatpush1.bf16.msra.mxu0 %v1828
      %1894 = vmatprep.subr.bf16.mxu0 %v1833
      %1895 = vmatpush1.bf16.msra.mxu0 %v1832
      %1896 = vmatprep.subr.bf16.mxu0 %v1837
      %1897 = vmatpush1.bf16.msra.mxu0 %v1836
      %1898 = vmatprep.subr.bf16.mxu0 %v1841
      %1899 = vmatpush1.bf16.msra.mxu0 %v1840
      %1900 = vmatprep.subr.bf16.mxu0 %v1845
      %1901 = vmatpush1.bf16.msra.mxu0 %v1844
      %1902 = vmatprep.subr.bf16.mxu0 %v1849
      %1903 = vmatpush1.bf16.msra.mxu0 %v1848
      %1904 = vmatprep.subr.bf16.mxu0 %v1853
      %1905 = vmatpush1.bf16.msra.mxu0 %v1852
      %1906 = vmatprep.subr.bf16.mxu0 %v1857
      %1907 = vmatpush1.bf16.msra.mxu0 %v1856
      %1908 = vmatprep.subr.bf16.mxu0 0
      %1909 = vmatpush1.bf16.msra.mxu0 0
      %1910 = vmatprep.subr.bf16.mxu0 0
      %1911 = vmatpush1.bf16.msra.mxu0 0
      %1912 = vmatprep.subr.bf16.mxu0 0
      %1913 = vmatpush1.bf16.msra.mxu0 0
      %1914 = vmatprep.subr.bf16.mxu0 0
      %1915 = vmatpush1.bf16.msra.mxu0 0
      %1916 = vmatprep.subr.bf16.mxu0 0
      %1917 = vmatpush1.bf16.msra.mxu0 0
      %1918 = vmatprep.subr.bf16.mxu0 0
      %1919 = vmatpush1.bf16.msra.mxu0 0
      %1920 = vmatprep.subr.bf16.mxu0 0
      %1921 = vmatpush1.bf16.msra.mxu0 0
      %1922 = vmatprep.subr.bf16.mxu0 0
      %1923 = vmatpush1.bf16.msra.mxu0 0
      %1924 = vmatprep.mubr.bf16.mxu0 0
      %1925 = vmatmul.mubr.bf16.gmra.mrb[0].mxu0 %v1676
      %v1926 = vpop.f32.mrb[0].mxu0
      %v1927 = vadd.f32 %v1715, %v1926
      %v1928 = vpop.f32.mrb[0].mxu0
      %v1929 = vadd.f32 %v1719, %v1928
      %v1930 = vpop.f32.mrb[0].mxu0
      %v1931 = vadd.f32 %v1715, %v1930
      %v1932 = vpop.f32.mrb[0].mxu0
      %v1933 = vadd.f32 %v1719, %v1932
      %1934 = vmatprep.mubr.bf16.mxu0 0
      %1935 = vmatmul.mubr.bf16.gmra.mrb[0].mxu0 %v1677
      %v1936 = vpop.f32.mrb[0].mxu0
      %v1937 = vadd.f32 %v1715, %v1936
      %v1938 = vpop.f32.mrb[0].mxu0
      %v1939 = vadd.f32 %v1719, %v1938
      %v1940 = vpop.f32.mrb[0].mxu0
      %v1941 = vpop.f32.mrb[0].mxu0
      %1942 = vdwg.mxu0
      %1943 = vmatprep.subr.bf16.mxu0 %v1831
      %1944 = vmatpush1.bf16.msra.mxu0 %v1830
      %1945 = vmatprep.subr.bf16.mxu0 %v1835
      %1946 = vmatpush1.bf16.msra.mxu0 %v1834
      %1947 = vmatprep.subr.bf16.mxu0 %v1839
      %1948 = vmatpush1.bf16.msra.mxu0 %v1838
      %1949 = vmatprep.subr.bf16.mxu0 %v1843
      %1950 = vmatpush1.bf16.msra.mxu0 %v1842
      %1951 = vmatprep.subr.bf16.mxu0 %v1847
      %1952 = vmatpush1.bf16.msra.mxu0 %v1846
      %1953 = vmatprep.subr.bf16.mxu0 %v1851
      %1954 = vmatpush1.bf16.msra.mxu0 %v1850
      %1955 = vmatprep.subr.bf16.mxu0 %v1855
      %1956 = vmatpush1.bf16.msra.mxu0 %v1854
      %1957 = vmatprep.subr.bf16.mxu0 %v1859
      %1958 = vmatpush1.bf16.msra.mxu0 %v1858
      %1959 = vmatprep.subr.bf16.mxu0 0
      %1960 = vmatpush1.bf16.msra.mxu0 0
      %1961 = vmatprep.subr.bf16.mxu0 0
      %1962 = vmatpush1.bf16.msra.mxu0 0
      %1963 = vmatprep.subr.bf16.mxu0 0
      %1964 = vmatpush1.bf16.msra.mxu0 0
      %1965 = vmatprep.subr.bf16.mxu0 0
      %1966 = vmatpush1.bf16.msra.mxu0 0
      %1967 = vmatprep.subr.bf16.mxu0 0
      %1968 = vmatpush1.bf16.msra.mxu0 0
      %1969 = vmatprep.subr.bf16.mxu0 0
      %1970 = vmatpush1.bf16.msra.mxu0 0
      %1971 = vmatprep.subr.bf16.mxu0 0
      %1972 = vmatpush1.bf16.msra.mxu0 0
      %1973 = vmatprep.subr.bf16.mxu0 0
      %1974 = vmatpush1.bf16.msra.mxu0 0
      %1975 = vmatprep.mubr.bf16.mxu0 0
      %1976 = vmatmul.mubr.bf16.gmra.mrb[0].mxu0 %v1676
      %v1977 = vpop.f32.mrb[0].mxu0
      %v1978 = vadd.f32 %v1723, %v1977
      %v1979 = vpop.f32.mrb[0].mxu0
      %v1980 = vadd.f32 %v1727, %v1979
      %v1981 = vpop.f32.mrb[0].mxu0
      %v1982 = vadd.f32 %v1723, %v1981
      %v1983 = vpop.f32.mrb[0].mxu0
      %v1984 = vadd.f32 %v1727, %v1983
      %1985 = vmatprep.mubr.bf16.mxu0 0
      %1986 = vmatmul.mubr.bf16.gmra.mrb[0].mxu0 %v1677
      %v1987 = vpop.f32.mrb[0].mxu0
      %v1988 = vadd.f32 %v1723, %v1987
      %v1989 = vpop.f32.mrb[0].mxu0
      %v1990 = vadd.f32 %v1727, %v1989
      %v1991 = vpop.f32.mrb[0].mxu0
      %v1992 = vpop.f32.mrb[0].mxu0
      %1993 = vdwg.mxu0
      %v1994 = vmul.f32 %v1927, 0.5
      %v1995 = vmul.f32 %v1929, 0.5
      %v1996 = vmul.f32 %v1978, 0.5
      %v1997 = vmul.f32 %v1980, 0.5
      %v1998 = vmul.f32 %v1931, 0.5
      %v1999 = vmul.f32 %v1933, 0.5
      %v2000 = vmul.f32 %v1982, 0.5
      %v2001 = vmul.f32 %v1984, 0.5
      %v2002 = vmul.f32 %v1937, 0.5
      %v2003 = vmul.f32 %v1939, 0.5
      %v2004 = vmul.f32 %v1988, 0.5
      %v2005 = vmul.f32 %v1990, 0.5
      %v2006 = vmul.f32 %v1927, 0.70710677
      %v2007 = vmul.f32 %v1929, 0.70710677
      %v2008 = vmul.f32 %v1978, 0.70710677
      %v2009 = vmul.f32 %v1980, 0.70710677
      %v2010 = vmul.f32 %v1931, 0.70710677
      %v2011 = vmul.f32 %v1933, 0.70710677
      %v2012 = vmul.f32 %v1982, 0.70710677
      %v2013 = vmul.f32 %v1984, 0.70710677
      %v2014 = vmul.f32 %v1937, 0.70710677
      %v2015 = vmul.f32 %v1939, 0.70710677
      %v2016 = vmul.f32 %v1988, 0.70710677
      %v2017 = vmul.f32 %v1990, 0.70710677
      %v2018 = vand.u32 2147483647, %v2006
      %v2019 = vand.u32 2147483647, %v2007
      %v2020 = vand.u32 2147483647, %v2008
      %v2021 = vand.u32 2147483647, %v2009
      %v2022 = vand.u32 2147483647, %v2010
      %v2023 = vand.u32 2147483647, %v2011
      %v2024 = vand.u32 2147483647, %v2012
      %v2025 = vand.u32 2147483647, %v2013
      %v2026 = vand.u32 2147483647, %v2014
      %v2027 = vand.u32 2147483647, %v2015
      %v2028 = vand.u32 2147483647, %v2016
      %v2029 = vand.u32 2147483647, %v2017
      %v2030 = vmul.f32 %v2018, 0.3275911
      %v2031 = vmul.f32 %v2019, 0.3275911
      %v2032 = vmul.f32 %v2020, 0.3275911
      %v2033 = vmul.f32 %v2021, 0.3275911
      %v2034 = vmul.f32 %v2022, 0.3275911
      %v2035 = vmul.f32 %v2023, 0.3275911
      %v2036 = vmul.f32 %v2024, 0.3275911
      %v2037 = vmul.f32 %v2025, 0.3275911
      %v2038 = vmul.f32 %v2026, 0.3275911
      %v2039 = vmul.f32 %v2027, 0.3275911
      %v2040 = vmul.f32 %v2028, 0.3275911
      %v2041 = vmul.f32 %v2029, 0.3275911
      %v2042 = vadd.f32 %v2030, 1.0
      %v2043 = vadd.f32 %v2031, 1.0
      %v2044 = vadd.f32 %v2032, 1.0
      %v2045 = vadd.f32 %v2033, 1.0
      %v2046 = vadd.f32 %v2034, 1.0
      %v2047 = vadd.f32 %v2035, 1.0
      %v2048 = vadd.f32 %v2036, 1.0
      %v2049 = vadd.f32 %v2037, 1.0
      %v2050 = vadd.f32 %v2038, 1.0
      %v2051 = vadd.f32 %v2039, 1.0
      %v2052 = vadd.f32 %v2040, 1.0
      %v2053 = vadd.f32 %v2041, 1.0
      %v2054 = vrcp.pop %v2042
      %v2055 = vmul.f32 1.0, %v2054
      %v2056 = vrcp.pop %v2043
      %v2057 = vmul.f32 1.0, %v2056
      %v2058 = vrcp.pop %v2044
      %v2059 = vmul.f32 1.0, %v2058
      %v2060 = vrcp.pop %v2045
      %v2061 = vmul.f32 1.0, %v2060
      %v2062 = vrcp.pop %v2046
      %v2063 = vmul.f32 1.0, %v2062
      %v2064 = vrcp.pop %v2047
      %v2065 = vmul.f32 1.0, %v2064
      %v2066 = vrcp.pop %v2048
      %v2067 = vmul.f32 1.0, %v2066
      %v2068 = vrcp.pop %v2049
      %v2069 = vmul.f32 1.0, %v2068
      %v2070 = vrcp.pop %v2050
      %v2071 = vmul.f32 1.0, %v2070
      %v2072 = vrcp.pop %v2051
      %v2073 = vmul.f32 1.0, %v2072
      %v2074 = vrcp.pop %v2052
      %v2075 = vmul.f32 1.0, %v2074
      %v2076 = vrcp.pop %v2053
      %v2077 = vmul.f32 1.0, %v2076
      %v2078 = vmul.f32 %v2055, 1.0614054
      %v2079 = vmul.f32 %v2057, 1.0614054
      %v2080 = vmul.f32 %v2059, 1.0614054
      %v2081 = vmul.f32 %v2061, 1.0614054
      %v2082 = vmul.f32 %v2063, 1.0614054
      %v2083 = vmul.f32 %v2065, 1.0614054
      %v2084 = vmul.f32 %v2067, 1.0614054
      %v2085 = vmul.f32 %v2069, 1.0614054
      %v2086 = vmul.f32 %v2071, 1.0614054
      %v2087 = vmul.f32 %v2073, 1.0614054
      %v2088 = vmul.f32 %v2075, 1.0614054
      %v2089 = vmul.f32 %v2077, 1.0614054
      %v2090 = vadd.f32 %v2078, -1.4531521
      %v2091 = vadd.f32 %v2079, -1.4531521
      %v2092 = vadd.f32 %v2080, -1.4531521
      %v2093 = vadd.f32 %v2081, -1.4531521
      %v2094 = vadd.f32 %v2082, -1.4531521
      %v2095 = vadd.f32 %v2083, -1.4531521
      %v2096 = vadd.f32 %v2084, -1.4531521
      %v2097 = vadd.f32 %v2085, -1.4531521
      %v2098 = vadd.f32 %v2086, -1.4531521
      %v2099 = vadd.f32 %v2087, -1.4531521
      %v2100 = vadd.f32 %v2088, -1.4531521
      %v2101 = vadd.f32 %v2089, -1.4531521
      %v2102 = vmul.f32 %v2090, %v2055
      %v2103 = vmul.f32 %v2091, %v2057
      %v2104 = vmul.f32 %v2092, %v2059
      %v2105 = vmul.f32 %v2093, %v2061
      %v2106 = vmul.f32 %v2094, %v2063
      %v2107 = vmul.f32 %v2095, %v2065
      %v2108 = vmul.f32 %v2096, %v2067
      %v2109 = vmul.f32 %v2097, %v2069
      %v2110 = vmul.f32 %v2098, %v2071
      %v2111 = vmul.f32 %v2099, %v2073
      %v2112 = vmul.f32 %v2100, %v2075
      %v2113 = vmul.f32 %v2101, %v2077
      %v2114 = vadd.f32 %v2102, 1.4214138
      %v2115 = vadd.f32 %v2103, 1.4214138
      %v2116 = vadd.f32 %v2104, 1.4214138
      %v2117 = vadd.f32 %v2105, 1.4214138
      %v2118 = vadd.f32 %v2106, 1.4214138
      %v2119 = vadd.f32 %v2107, 1.4214138
      %v2120 = vadd.f32 %v2108, 1.4214138
      %v2121 = vadd.f32 %v2109, 1.4214138
      %v2122 = vadd.f32 %v2110, 1.4214138
      %v2123 = vadd.f32 %v2111, 1.4214138
      %v2124 = vadd.f32 %v2112, 1.4214138
      %v2125 = vadd.f32 %v2113, 1.4214138
      %v2126 = vmul.f32 %v2114, %v2055
      %v2127 = vmul.f32 %v2115, %v2057
      %v2128 = vmul.f32 %v2116, %v2059
      %v2129 = vmul.f32 %v2117, %v2061
      %v2130 = vmul.f32 %v2118, %v2063
      %v2131 = vmul.f32 %v2119, %v2065
      %v2132 = vmul.f32 %v2120, %v2067
      %v2133 = vmul.f32 %v2121, %v2069
      %v2134 = vmul.f32 %v2122, %v2071
      %v2135 = vmul.f32 %v2123, %v2073
      %v2136 = vmul.f32 %v2124, %v2075
      %v2137 = vmul.f32 %v2125, %v2077
      %v2138 = vadd.f32 %v2126, -0.28449672
      %v2139 = vadd.f32 %v2127, -0.28449672
      %v2140 = vadd.f32 %v2128, -0.28449672
      %v2141 = vadd.f32 %v2129, -0.28449672
      %v2142 = vadd.f32 %v2130, -0.28449672
      %v2143 = vadd.f32 %v2131, -0.28449672
      %v2144 = vadd.f32 %v2132, -0.28449672
      %v2145 = vadd.f32 %v2133, -0.28449672
      %v2146 = vadd.f32 %v2134, -0.28449672
      %v2147 = vadd.f32 %v2135, -0.28449672
      %v2148 = vadd.f32 %v2136, -0.28449672
      %v2149 = vadd.f32 %v2137, -0.28449672
      %v2150 = vmul.f32 %v2138, %v2055
      %v2151 = vmul.f32 %v2139, %v2057
      %v2152 = vmul.f32 %v2140, %v2059
      %v2153 = vmul.f32 %v2141, %v2061
      %v2154 = vmul.f32 %v2142, %v2063
      %v2155 = vmul.f32 %v2143, %v2065
      %v2156 = vmul.f32 %v2144, %v2067
      %v2157 = vmul.f32 %v2145, %v2069
      %v2158 = vmul.f32 %v2146, %v2071
      %v2159 = vmul.f32 %v2147, %v2073
      %v2160 = vmul.f32 %v2148, %v2075
      %v2161 = vmul.f32 %v2149, %v2077
      %v2162 = vadd.f32 %v2150, 0.2548296
      %v2163 = vadd.f32 %v2151, 0.2548296
      %v2164 = vadd.f32 %v2152, 0.2548296
      %v2165 = vadd.f32 %v2153, 0.2548296
      %v2166 = vadd.f32 %v2154, 0.2548296
      %v2167 = vadd.f32 %v2155, 0.2548296
      %v2168 = vadd.f32 %v2156, 0.2548296
      %v2169 = vadd.f32 %v2157, 0.2548296
      %v2170 = vadd.f32 %v2158, 0.2548296
      %v2171 = vadd.f32 %v2159, 0.2548296
      %v2172 = vadd.f32 %v2160, 0.2548296
      %v2173 = vadd.f32 %v2161, 0.2548296
      %v2174 = vmul.f32 %v2162, %v2055
      %v2175 = vmul.f32 %v2163, %v2057
      %v2176 = vmul.f32 %v2164, %v2059
      %v2177 = vmul.f32 %v2165, %v2061
      %v2178 = vmul.f32 %v2166, %v2063
      %v2179 = vmul.f32 %v2167, %v2065
      %v2180 = vmul.f32 %v2168, %v2067
      %v2181 = vmul.f32 %v2169, %v2069
      %v2182 = vmul.f32 %v2170, %v2071
      %v2183 = vmul.f32 %v2171, %v2073
      %v2184 = vmul.f32 %v2172, %v2075
      %v2185 = vmul.f32 %v2173, %v2077
      %v2186 = vsub.f32 0.0, %v2018
      %v2187 = vsub.f32 0.0, %v2019
      %v2188 = vsub.f32 0.0, %v2020
      %v2189 = vsub.f32 0.0, %v2021
      %v2190 = vsub.f32 0.0, %v2022
      %v2191 = vsub.f32 0.0, %v2023
      %v2192 = vsub.f32 0.0, %v2024
      %v2193 = vsub.f32 0.0, %v2025
      %v2194 = vsub.f32 0.0, %v2026
      %v2195 = vsub.f32 0.0, %v2027
      %v2196 = vsub.f32 0.0, %v2028
      %v2197 = vsub.f32 0.0, %v2029
      %v2198 = vmul.f32 %v2186, %v2018
      %v2199 = vmul.f32 %v2187, %v2019
      %v2200 = vmul.f32 %v2188, %v2020
      %v2201 = vmul.f32 %v2189, %v2021
      %v2202 = vmul.f32 %v2190, %v2022
      %v2203 = vmul.f32 %v2191, %v2023
      %v2204 = vmul.f32 %v2192, %v2024
      %v2205 = vmul.f32 %v2193, %v2025
      %v2206 = vmul.f32 %v2194, %v2026
      %v2207 = vmul.f32 %v2195, %v2027
      %v2208 = vmul.f32 %v2196, %v2028
      %v2209 = vmul.f32 %v2197, %v2029
      %v2210 = vmul.f32 %v2198, 1.442695
      %v2211 = vpow.pop %v2210
      %v2212 = vmul.f32 %v2199, 1.442695
      %v2213 = vpow.pop %v2212
      %v2214 = vmul.f32 %v2200, 1.442695
      %v2215 = vpow.pop %v2214
      %v2216 = vmul.f32 %v2201, 1.442695
      %v2217 = vpow.pop %v2216
      %v2218 = vmul.f32 %v2202, 1.442695
      %v2219 = vpow.pop %v2218
      %v2220 = vmul.f32 %v2203, 1.442695
      %v2221 = vpow.pop %v2220
      %v2222 = vmul.f32 %v2204, 1.442695
      %v2223 = vpow.pop %v2222
      %v2224 = vmul.f32 %v2205, 1.442695
      %v2225 = vpow.pop %v2224
      %v2226 = vmul.f32 %v2206, 1.442695
      %v2227 = vpow.pop %v2226
      %v2228 = vmul.f32 %v2207, 1.442695
      %v2229 = vpow.pop %v2228
      %v2230 = vmul.f32 %v2208, 1.442695
      %v2231 = vpow.pop %v2230
      %v2232 = vmul.f32 %v2209, 1.442695
      %v2233 = vpow.pop %v2232
      %v2234 = vmul.f32 %v2174, %v2211
      %v2235 = vmul.f32 %v2175, %v2213
      %v2236 = vmul.f32 %v2176, %v2215
      %v2237 = vmul.f32 %v2177, %v2217
      %v2238 = vmul.f32 %v2178, %v2219
      %v2239 = vmul.f32 %v2179, %v2221
      %v2240 = vmul.f32 %v2180, %v2223
      %v2241 = vmul.f32 %v2181, %v2225
      %v2242 = vmul.f32 %v2182, %v2227
      %v2243 = vmul.f32 %v2183, %v2229
      %v2244 = vmul.f32 %v2184, %v2231
      %v2245 = vmul.f32 %v2185, %v2233
      %v2246 = vsub.f32 1.0, %v2234
      %v2247 = vsub.f32 1.0, %v2235
      %v2248 = vsub.f32 1.0, %v2236
      %v2249 = vsub.f32 1.0, %v2237
      %v2250 = vsub.f32 1.0, %v2238
      %v2251 = vsub.f32 1.0, %v2239
      %v2252 = vsub.f32 1.0, %v2240
      %v2253 = vsub.f32 1.0, %v2241
      %v2254 = vsub.f32 1.0, %v2242
      %v2255 = vsub.f32 1.0, %v2243
      %v2256 = vsub.f32 1.0, %v2244
      %v2257 = vsub.f32 1.0, %v2245
      %vm2258 = vcmp.lt.f32.partialorder %v2006, 0.0
      %vm2259 = vcmp.lt.f32.partialorder %v2007, 0.0
      %vm2260 = vcmp.lt.f32.partialorder %v2008, 0.0
      %vm2261 = vcmp.lt.f32.partialorder %v2009, 0.0
      %vm2262 = vcmp.lt.f32.partialorder %v2010, 0.0
      %vm2263 = vcmp.lt.f32.partialorder %v2011, 0.0
      %vm2264 = vcmp.lt.f32.partialorder %v2012, 0.0
      %vm2265 = vcmp.lt.f32.partialorder %v2013, 0.0
      %vm2266 = vcmp.lt.f32.partialorder %v2014, 0.0
      %vm2267 = vcmp.lt.f32.partialorder %v2015, 0.0
      %vm2268 = vcmp.lt.f32.partialorder %v2016, 0.0
      %vm2269 = vcmp.lt.f32.partialorder %v2017, 0.0
      %v2270 = vsub.f32 0.0, %v2246
      %v2271 = vsub.f32 0.0, %v2247
      %v2272 = vsub.f32 0.0, %v2248
      %v2273 = vsub.f32 0.0, %v2249
      %v2274 = vsub.f32 0.0, %v2250
      %v2275 = vsub.f32 0.0, %v2251
      %v2276 = vsub.f32 0.0, %v2252
      %v2277 = vsub.f32 0.0, %v2253
      %v2278 = vsub.f32 0.0, %v2254
      %v2279 = vsub.f32 0.0, %v2255
      %v2280 = vsub.f32 0.0, %v2256
      %v2281 = vsub.f32 0.0, %v2257
      %v2282 = vsel %vm2258, %v2270, %v2246
      %v2283 = vsel %vm2259, %v2271, %v2247
      %v2284 = vsel %vm2260, %v2272, %v2248
      %v2285 = vsel %vm2261, %v2273, %v2249
      %v2286 = vsel %vm2262, %v2274, %v2250
      %v2287 = vsel %vm2263, %v2275, %v2251
      %v2288 = vsel %vm2264, %v2276, %v2252
      %v2289 = vsel %vm2265, %v2277, %v2253
      %v2290 = vsel %vm2266, %v2278, %v2254
      %v2291 = vsel %vm2267, %v2279, %v2255
      %v2292 = vsel %vm2268, %v2280, %v2256
      %v2293 = vsel %vm2269, %v2281, %v2257
      %v2294 = vadd.f32 %v2282, 1.0
      %v2295 = vadd.f32 %v2283, 1.0
      %v2296 = vadd.f32 %v2284, 1.0
      %v2297 = vadd.f32 %v2285, 1.0
      %v2298 = vadd.f32 %v2286, 1.0
      %v2299 = vadd.f32 %v2287, 1.0
      %v2300 = vadd.f32 %v2288, 1.0
      %v2301 = vadd.f32 %v2289, 1.0
      %v2302 = vadd.f32 %v2290, 1.0
      %v2303 = vadd.f32 %v2291, 1.0
      %v2304 = vadd.f32 %v2292, 1.0
      %v2305 = vadd.f32 %v2293, 1.0
      %v2306 = vmul.f32 %v1994, %v2294
      %v2307 = vmul.f32 %v1995, %v2295
      %v2308 = vmul.f32 %v1996, %v2296
      %v2309 = vmul.f32 %v1997, %v2297
      %v2310 = vmul.f32 %v1998, %v2298
      %v2311 = vmul.f32 %v1999, %v2299
      %v2312 = vmul.f32 %v2000, %v2300
      %v2313 = vmul.f32 %v2001, %v2301
      %v2314 = vmul.f32 %v2002, %v2302
      %v2315 = vmul.f32 %v2003, %v2303
      %v2316 = vmul.f32 %v2004, %v2304
      %v2317 = vmul.f32 %v2005, %v2305
      %v2318 = vpack.c.bf16 %v2310, %v2306
      %v2319 = vpack.c.bf16 %v2311, %v2307
      %v2320 = vpack.c.bf16 %v2312, %v2308
      %v2321 = vpack.c.bf16 %v2313, %v2309
      %v2322 = vpack.c.bf16 %v2314, %v2314
      %v2323 = vpack.c.bf16 %v2315, %v2315
      %v2324 = vpack.c.bf16 %v2316, %v2316
      %v2325 = vpack.c.bf16 %v2317, %v2317
      %v2326 = vld [vmem:[%s7] sm:$0xf]
      %v2327 = vld [vmem:[%s7 + $0x4] sm:$0xf]
      %v2328 = vld [vmem:[%s7 + $0x8] sm:$0xf]
      %v2329 = vld [vmem:[%s7 + $0xc] sm:$0xf]
      %v2330 = vld [vmem:[%s7 + $0x10] sm:$0xf]
      %v2331 = vld [vmem:[%s7 + $0x14] sm:$0xf]
      %v2332 = vld [vmem:[%s7 + $0x18] sm:$0xf]
      %v2333 = vld [vmem:[%s7 + $0x1c] sm:$0xf]
      %v2334 = vld [vmem:[%s7 + $0x20] sm:$0xf]
      %v2335 = vld [vmem:[%s7 + $0x24] sm:$0xf]
      %v2336 = vld [vmem:[%s7 + $0x28] sm:$0xf]
      %v2337 = vld [vmem:[%s7 + $0x2c] sm:$0xf]
      %v2338 = vld [vmem:[%s7 + $0x30] sm:$0xf]
      %v2339 = vld [vmem:[%s7 + $0x34] sm:$0xf]
      %v2340 = vld [vmem:[%s7 + $0x38] sm:$0xf]
      %v2341 = vld [vmem:[%s7 + $0x3c] sm:$0xf]
      %v2342 = vld [vmem:[%s7 + $0x40] sm:$0xf]
      %v2343 = vld [vmem:[%s7 + $0x44] sm:$0xf]
      %v2344 = vld [vmem:[%s7 + $0x48] sm:$0xf]
      %v2345 = vld [vmem:[%s7 + $0x4c] sm:$0xf]
      %v2346 = vld [vmem:[%s7 + $0x50] sm:$0xf]
      %v2347 = vld [vmem:[%s7 + $0x54] sm:$0xf]
      %v2348 = vld [vmem:[%s7 + $0x58] sm:$0xf]
      %v2349 = vld [vmem:[%s7 + $0x5c] sm:$0xf]
      %v2350 = vld [vmem:[%s7 + $0x60] sm:$0xf]
      %v2351 = vld [vmem:[%s7 + $0x64] sm:$0xf]
      %v2352 = vld [vmem:[%s7 + $0x68] sm:$0xf]
      %v2353 = vld [vmem:[%s7 + $0x6c] sm:$0xf]
      %v2354 = vld [vmem:[%s7 + $0x70] sm:$0xf]
      %v2355 = vld [vmem:[%s7 + $0x74] sm:$0xf]
      %v2356 = vld [vmem:[%s7 + $0x78] sm:$0xf]
      %v2357 = vld [vmem:[%s7 + $0x7c] sm:$0xf]
      %v2358 = vld [vmem:[%s7 + $0x80] sm:$0xf]
      %v2359 = vld [vmem:[%s7 + $0x84] sm:$0xf]
      %v2360 = vld [vmem:[%s7 + $0x88] sm:$0xf]
      %v2361 = vld [vmem:[%s7 + $0x8c] sm:$0xf]
      %v2362 = vld [vmem:[%s7 + $0x90] sm:$0xf]
      %v2363 = vld [vmem:[%s7 + $0x94] sm:$0xf]
      %v2364 = vld [vmem:[%s7 + $0x98] sm:$0xf]
      %v2365 = vld [vmem:[%s7 + $0x9c] sm:$0xf]
      %v2366 = vld [vmem:[%s7 + $0xa0] sm:$0xf]
      %v2367 = vld [vmem:[%s7 + $0xa4] sm:$0xf]
      %v2368 = vld [vmem:[%s7 + $0xa8] sm:$0xf]
      %v2369 = vld [vmem:[%s7 + $0xac] sm:$0xf]
      %v2370 = vld [vmem:[%s7 + $0xb0] sm:$0xf]
      %v2371 = vld [vmem:[%s7 + $0xb4] sm:$0xf]
      %v2372 = vld [vmem:[%s7 + $0xb8] sm:$0xf]
      %v2373 = vld [vmem:[%s7 + $0xbc] sm:$0xf]
      %v2374 = vld [vmem:[%s7 + $0xc0] sm:$0xf]
      %v2375 = vld [vmem:[%s7 + $0xc4] sm:$0xf]
      %v2376 = vld [vmem:[%s7 + $0xc8] sm:$0xf]
      %v2377 = vld [vmem:[%s7 + $0xcc] sm:$0xf]
      %v2378 = vld [vmem:[%s7 + $0xd0] sm:$0xf]
      %v2379 = vld [vmem:[%s7 + $0xd4] sm:$0xf]
      %v2380 = vld [vmem:[%s7 + $0xd8] sm:$0xf]
      %v2381 = vld [vmem:[%s7 + $0xdc] sm:$0xf]
      %v2382 = vld [vmem:[%s7 + $0xe0] sm:$0xf]
      %v2383 = vld [vmem:[%s7 + $0xe4] sm:$0xf]
      %v2384 = vld [vmem:[%s7 + $0xe8] sm:$0xf]
      %v2385 = vld [vmem:[%s7 + $0xec] sm:$0xf]
      %v2386 = vld [vmem:[%s7 + $0xf0] sm:$0xf]
      %v2387 = vld [vmem:[%s7 + $0xf4] sm:$0xf]
      %v2388 = vld [vmem:[%s7 + $0xf8] sm:$0xf]
      %v2389 = vld [vmem:[%s7 + $0xfc] sm:$0xf]
      %v2390 = vld [vmem:[%s8] sm:$0x1]
      %v2392 = vlaneseq
      %v2393 = vshrl.u32 %v2392, 7
      %v2394 = vsub.s32 0, %v2393
      %v2395 = vrot.slane %v2390, %v2394
      %v2461 = vunpack.c.l.b16 %v2326
      %v2462 = vunpack.c.l.b16 %v2327
      %v2463 = vunpack.c.l.b16 %v2328
      %v2464 = vunpack.c.l.b16 %v2329
      %v2465 = vunpack.c.l.b16 %v2330
      %v2466 = vunpack.c.l.b16 %v2331
      %v2467 = vunpack.c.l.b16 %v2332
      %v2468 = vunpack.c.l.b16 %v2333
      %v2469 = vunpack.c.l.b16 %v2334
      %v2470 = vunpack.c.l.b16 %v2335
      %v2471 = vunpack.c.l.b16 %v2336
      %v2472 = vunpack.c.l.b16 %v2337
      %v2473 = vunpack.c.l.b16 %v2338
      %v2474 = vunpack.c.l.b16 %v2339
      %v2475 = vunpack.c.l.b16 %v2340
      %v2476 = vunpack.c.l.b16 %v2341
      %v2477 = vunpack.c.l.b16 %v2342
      %v2478 = vunpack.c.l.b16 %v2343
      %v2479 = vunpack.c.l.b16 %v2344
      %v2480 = vunpack.c.l.b16 %v2345
      %v2481 = vunpack.c.l.b16 %v2346
      %v2482 = vunpack.c.l.b16 %v2347
      %v2483 = vunpack.c.l.b16 %v2348
      %v2484 = vunpack.c.l.b16 %v2349
      %v2485 = vunpack.c.l.b16 %v2350
      %v2486 = vunpack.c.l.b16 %v2351
      %v2487 = vunpack.c.l.b16 %v2352
      %v2488 = vunpack.c.l.b16 %v2353
      %v2489 = vunpack.c.l.b16 %v2354
      %v2490 = vunpack.c.l.b16 %v2355
      %v2491 = vunpack.c.l.b16 %v2356
      %v2492 = vunpack.c.l.b16 %v2357
      %v2493 = vunpack.c.l.b16 %v2358
      %v2494 = vunpack.c.l.b16 %v2359
      %v2495 = vunpack.c.l.b16 %v2360
      %v2496 = vunpack.c.l.b16 %v2361
      %v2497 = vunpack.c.l.b16 %v2362
      %v2498 = vunpack.c.l.b16 %v2363
      %v2499 = vunpack.c.l.b16 %v2364
      %v2500 = vunpack.c.l.b16 %v2365
      %v2501 = vunpack.c.l.b16 %v2366
      %v2502 = vunpack.c.l.b16 %v2367
      %v2503 = vunpack.c.l.b16 %v2368
      %v2504 = vunpack.c.l.b16 %v2369
      %v2505 = vunpack.c.l.b16 %v2370
      %v2506 = vunpack.c.l.b16 %v2371
      %v2507 = vunpack.c.l.b16 %v2372
      %v2508 = vunpack.c.l.b16 %v2373
      %v2509 = vunpack.c.l.b16 %v2374
      %v2510 = vunpack.c.l.b16 %v2375
      %v2511 = vunpack.c.l.b16 %v2376
      %v2512 = vunpack.c.l.b16 %v2377
      %v2513 = vunpack.c.l.b16 %v2378
      %v2514 = vunpack.c.l.b16 %v2379
      %v2515 = vunpack.c.l.b16 %v2380
      %v2516 = vunpack.c.l.b16 %v2381
      %v2517 = vunpack.c.l.b16 %v2382
      %v2518 = vunpack.c.l.b16 %v2383
      %v2519 = vunpack.c.l.b16 %v2384
      %v2520 = vunpack.c.l.b16 %v2385
      %v2521 = vunpack.c.l.b16 %v2386
      %v2522 = vunpack.c.l.b16 %v2387
      %v2523 = vunpack.c.l.b16 %v2388
      %v2524 = vunpack.c.l.b16 %v2389
      %v2525 = vpack.c.b16 %v2462, %v2461
      %v2526 = vpack.c.b16 %v2464, %v2463
      %v2527 = vpack.c.b16 %v2466, %v2465
      %v2528 = vpack.c.b16 %v2468, %v2467
      %v2529 = vpack.c.b16 %v2470, %v2469
      %v2530 = vpack.c.b16 %v2472, %v2471
      %v2531 = vpack.c.b16 %v2474, %v2473
      %v2532 = vpack.c.b16 %v2476, %v2475
      %v2533 = vpack.c.b16 %v2478, %v2477
      %v2534 = vpack.c.b16 %v2480, %v2479
      %v2535 = vpack.c.b16 %v2482, %v2481
      %v2536 = vpack.c.b16 %v2484, %v2483
      %v2537 = vpack.c.b16 %v2486, %v2485
      %v2538 = vpack.c.b16 %v2488, %v2487
      %v2539 = vpack.c.b16 %v2490, %v2489
      %v2540 = vpack.c.b16 %v2492, %v2491
      %v2541 = vpack.c.b16 %v2494, %v2493
      %v2542 = vpack.c.b16 %v2496, %v2495
      %v2543 = vpack.c.b16 %v2498, %v2497
      %v2544 = vpack.c.b16 %v2500, %v2499
      %v2545 = vpack.c.b16 %v2502, %v2501
      %v2546 = vpack.c.b16 %v2504, %v2503
      %v2547 = vpack.c.b16 %v2506, %v2505
      %v2548 = vpack.c.b16 %v2508, %v2507
      %v2549 = vpack.c.b16 %v2510, %v2509
      %v2550 = vpack.c.b16 %v2512, %v2511
      %v2551 = vpack.c.b16 %v2514, %v2513
      %v2552 = vpack.c.b16 %v2516, %v2515
      %v2553 = vpack.c.b16 %v2518, %v2517
      %v2554 = vpack.c.b16 %v2520, %v2519
      %v2555 = vpack.c.b16 %v2522, %v2521
      %v2556 = vpack.c.b16 %v2524, %v2523
      %2589 = vmatprep.subr.bf16.mxu0 0
      %2590 = vmatpush1.bf16.msra.mxu0 %v2525
      %2591 = vmatprep.subr.bf16.mxu0 0
      %2592 = vmatpush1.bf16.msra.mxu0 %v2526
      %2593 = vmatprep.subr.bf16.mxu0 0
      %2594 = vmatpush1.bf16.msra.mxu0 %v2527
      %2595 = vmatprep.subr.bf16.mxu0 0
      %2596 = vmatpush1.bf16.msra.mxu0 %v2528
      %2597 = vmatprep.subr.bf16.mxu0 0
      %2598 = vmatpush1.bf16.msra.mxu0 %v2529
      %2599 = vmatprep.subr.bf16.mxu0 0
      %2600 = vmatpush1.bf16.msra.mxu0 %v2530
      %2601 = vmatprep.subr.bf16.mxu0 0
      %2602 = vmatpush1.bf16.msra.mxu0 %v2531
      %2603 = vmatprep.subr.bf16.mxu0 0
      %2604 = vmatpush1.bf16.msra.mxu0 %v2532
      %2605 = vmatprep.subr.bf16.mxu0 0
      %2606 = vmatpush1.bf16.msra.mxu0 %v2533
      %2607 = vmatprep.subr.bf16.mxu0 0
      %2608 = vmatpush1.bf16.msra.mxu0 %v2534
      %2609 = vmatprep.subr.bf16.mxu0 0
      %2610 = vmatpush1.bf16.msra.mxu0 %v2535
      %2611 = vmatprep.subr.bf16.mxu0 0
      %2612 = vmatpush1.bf16.msra.mxu0 %v2536
      %2613 = vmatprep.subr.bf16.mxu0 0
      %2614 = vmatpush1.bf16.msra.mxu0 %v2537
      %2615 = vmatprep.subr.bf16.mxu0 0
      %2616 = vmatpush1.bf16.msra.mxu0 %v2538
      %2617 = vmatprep.subr.bf16.mxu0 0
      %2618 = vmatpush1.bf16.msra.mxu0 %v2539
      %2619 = vmatprep.subr.bf16.mxu0 0
      %2620 = vmatpush1.bf16.msra.mxu0 %v2540
      %2621 = vmatprep.mubr.bf16.mxu0 %v2319
      %2622 = vmatmul.mubr.bf16.gmra.mrb[0].mxu0 %v2318
      %v2623 = vpop.f32.mrb[0].mxu0
      %v2624 = vadd.f32 %v2395, %v2623
      %v2625 = vpop.f32.mrb[0].mxu0
      %v2626 = vpop.f32.mrb[0].mxu0
      %v2627 = vadd.f32 %v2395, %v2626
      %v2628 = vpop.f32.mrb[0].mxu0
      %2629 = vmatprep.mubr.bf16.mxu0 %v2323
      %2630 = vmatmul.mubr.bf16.gmra.mrb[0].mxu0 %v2322
      %v2631 = vpop.f32.mrb[0].mxu0
      %v2632 = vadd.f32 %v2395, %v2631
      %v2633 = vpop.f32.mrb[0].mxu0
      %v2634 = vpop.f32.mrb[0].mxu0
      %v2635 = vpop.f32.mrb[0].mxu0
      %2636 = vdwg.mxu0
      %2637 = vmatprep.subr.bf16.mxu0 0
      %2638 = vmatpush1.bf16.msra.mxu0 %v2541
      %2639 = vmatprep.subr.bf16.mxu0 0
      %2640 = vmatpush1.bf16.msra.mxu0 %v2542
      %2641 = vmatprep.subr.bf16.mxu0 0
      %2642 = vmatpush1.bf16.msra.mxu0 %v2543
      %2643 = vmatprep.subr.bf16.mxu0 0
      %2644 = vmatpush1.bf16.msra.mxu0 %v2544
      %2645 = vmatprep.subr.bf16.mxu0 0
      %2646 = vmatpush1.bf16.msra.mxu0 %v2545
      %2647 = vmatprep.subr.bf16.mxu0 0
      %2648 = vmatpush1.bf16.msra.mxu0 %v2546
      %2649 = vmatprep.subr.bf16.mxu0 0
      %2650 = vmatpush1.bf16.msra.mxu0 %v2547
      %2651 = vmatprep.subr.bf16.mxu0 0
      %2652 = vmatpush1.bf16.msra.mxu0 %v2548
      %2653 = vmatprep.subr.bf16.mxu0 0
      %2654 = vmatpush1.bf16.msra.mxu0 %v2549
      %2655 = vmatprep.subr.bf16.mxu0 0
      %2656 = vmatpush1.bf16.msra.mxu0 %v2550
      %2657 = vmatprep.subr.bf16.mxu0 0
      %2658 = vmatpush1.bf16.msra.mxu0 %v2551
      %2659 = vmatprep.subr.bf16.mxu0 0
      %2660 = vmatpush1.bf16.msra.mxu0 %v2552
      %2661 = vmatprep.subr.bf16.mxu0 0
      %2662 = vmatpush1.bf16.msra.mxu0 %v2553
      %2663 = vmatprep.subr.bf16.mxu0 0
      %2664 = vmatpush1.bf16.msra.mxu0 %v2554
      %2665 = vmatprep.subr.bf16.mxu0 0
      %2666 = vmatpush1.bf16.msra.mxu0 %v2555
      %2667 = vmatprep.subr.bf16.mxu0 0
      %2668 = vmatpush1.bf16.msra.mxu0 %v2556
      %2669 = vmatprep.mubr.bf16.mxu0 %v2321
      %2670 = vmatmul.mubr.bf16.gmra.mrb[0].mxu0 %v2320
      %v2671 = vpop.f32.mrb[0].mxu0
      %v2672 = vadd.f32 %v2624, %v2671
      %v2673 = vpop.f32.mrb[0].mxu0
      %v2674 = vpop.f32.mrb[0].mxu0
      %v2675 = vadd.f32 %v2627, %v2674
      %v2676 = vpop.f32.mrb[0].mxu0
      %2677 = vmatprep.mubr.bf16.mxu0 %v2325
      %2678 = vmatmul.mubr.bf16.gmra.mrb[0].mxu0 %v2324
      %v2679 = vpop.f32.mrb[0].mxu0
      %v2680 = vadd.f32 %v2632, %v2679
      %v2681 = vpop.f32.mrb[0].mxu0
      %v2682 = vpop.f32.mrb[0].mxu0
      %v2683 = vpop.f32.mrb[0].mxu0
      %2684 = vdwg.mxu0
      %v2685 = vadd.f32 %v2672, %v1638
      %v2686 = vadd.f32 %v2675, %v1639
      %v2687 = vadd.f32 %v2680, %v1640
      %v2688 = vpack.c.bf16 %v2686, %v2685
      %v2689 = vpack.c.bf16 %v2687, %v2687
      %v2692 = vunpack.c.l.b16 %v2688
      %v2693 = vunpack.c.h.b16 %v2688
      %v2694 = vunpack.c.l.b16 %v2689
      %v2695 = vpack.c.b16 %v2692, %v2692
      %v2696 = vpack.c.b16 %v2693, %v2693
      %v2697 = vpack.c.b16 %v2694, %v2694
      %2701 = vst [vmem:[%s332] sm:$0xf] %v2695
      %2702 = vst [vmem:[%s332 + $0x4] sm:$0xf] %v2696
      %vm2703 = vcmask 1040384
      %vm2704 = vsmask.f32 256
      %vm2705 = vmand %vm2703, %vm2704
      %v2706 = vld [vmem:[%s332 + $0x8] sm:$0x1]
      %v2707 = vsel %vm2705, %v2697, %v2706
      %2708 = vst [vmem:[%s332 + $0x8] sm:$0x1] %v2707
      %p2709 = scmp.lt.s32.totalorder %s20, 1
      %s2710 = scalar_select %p2709, %s20, 1
      %s2711 = smul.addr %s2710, 3
      %s2712 = smul.addr %s2711, 4
      %s2713 = scalar_lea.vmem %s9, %s2712
      // Predicated region
      $region57: #{forward.5} parent=55 // pred_check
        %p2714 = pneg %p232
      $region58: #{forward.5} parent=55 // pred_check_branch
        %2716 = sbr.rel (%p2714) target = $region60
      $region59: #{forward.5} parent=55 // pred_region
        _
      $region60: #{forward.5} parent=55 // pred_fallthru
        _
    $region56: #{forward.5} parent=5 // pred_fallthru
      _
    %p2717 = scmp.le.s32.totalorder 2, %s15
    // Predicated region
    $region61: #{forward.5} parent=5 // pred_check
      %p2718 = pneg %p2717
    $region62: #{forward.5} parent=5 // pred_check_branch
      %2720 = sbr.rel (%p2718) target = $region64
    $region63: #{forward.5} parent=5 // pred_region
      %s2721 = ssub.s32 %s15, 2
      // Predicated region
      $region65: #{forward.5} parent=63 // pred_check
        %p2722 = pneg %p238
      $region66: #{forward.5} parent=63 // pred_check_branch
        %2724 = sbr.rel (%p2722) target = $region68
      $region67: #{forward.5} parent=63 // pred_region
        %p2725 = scmp.lt.s32.totalorder %s21, 1
        %s2726 = scalar_select %p2725, %s21, 1
        %s2727 = smul.addr %s2726, 3
        %s2728 = smul.addr %s2727, 4
        %s2729 = scalar_lea.vmem %s9, %s2728
      $region68: #{forward.5} parent=63 // pred_fallthru
        _
    $region64: #{forward.5} parent=5 // pred_fallthru
      _
  $region6: #{forward.5} parent=0 // loop_footer
    %s19 = sadd.s32 1, %s15
  $region7: #{forward.5} parent=0 // loop_footer_branch
    %14 = sbr.rel target = $region3
  $region8: #{forward.5} parent=0 // loop_exit
    _

</llo_original>
